<compile_context>
chip_gen: v7x
topology: tpu7x:2x2x1
jax: 0.10.0
libtpu: 0.0.40
codegen_flags: <defaults>
</compile_context>

<pallas_src>
import functools

import jax
import jax.numpy as jnp
from jax import lax
from jax.experimental import pallas as pl
from jax.experimental.pallas import tpu as pltpu


def _preact_block_kernel(x_ref, s1_ref, b1_ref, w1_ref, s2_ref, b2_ref, w2_ref,
                         o_ref, pad1_ref, pad2_ref, *, Nb, H, W, Cin, Cout, Cp):
    f32 = jnp.float32

    # Zero only the 1-element halo of the padded staging buffers; the interior
    # is fully rewritten below, so no full-buffer memset is needed.
    def _zero_halo(ref, c):
        row = jnp.zeros((Nb, 1, W + 2, c), ref.dtype)
        col = jnp.zeros((Nb, H + 2, 1, c), ref.dtype)
        ref[:, 0:1, :, :] = row
        ref[:, H + 1:H + 2, :, :] = row
        ref[:, :, 0:1, :] = col
        ref[:, :, W + 1:W + 2, :] = col

    _zero_halo(pad1_ref, Cin)
    _zero_halo(pad2_ref, Cout)

    # Lane-dense (Nb, H, W, 128) fp32 tile; also the residual path.
    x = x_ref[...].astype(f32)

    # ---- bn1 (folded, inference) + relu -------------------------------------
    h1 = jnp.maximum(x * s1_ref[0] + b1_ref[0], 0.0)

    # ---- conv1: 3x3, stride 1, pad 1, no bias -- single im2col matmul -------
    # Stage bf16 activations (true Cin channels only) into the padded buffer.
    pad1_ref[:, 1:H + 1, 1:W + 1, :] = h1[..., :Cin].astype(pad1_ref.dtype)
    p1 = pad1_ref[...]                                     # (Nb, H+2, W+2, Cin)
    patches1 = jnp.concatenate(
        [p1[:, kh:kh + H, kw:kw + W, :] for kh in range(3) for kw in range(3)],
        axis=-1).reshape(Nb * H * W, 9 * Cin)              # (M, 9*Cin) bf16
    out1 = jnp.dot(patches1, w1_ref[...],                  # (M, Cp) fp32
                   preferred_element_type=f32)

    # ---- bn2 + relu ----------------------------------------------------------
    h2 = jnp.maximum(out1 * s2_ref[0] + b2_ref[0], 0.0)    # (M, Cp) fp32

    # ---- conv2: 3x3, stride 1, pad 1, no bias -- single im2col matmul -------
    pad2_ref[:, 1:H + 1, 1:W + 1, :] = (
        h2.reshape(Nb, H, W, Cp)[..., :Cout].astype(pad2_ref.dtype))
    p2 = pad2_ref[...]                                     # (Nb, H+2, W+2, Cout)
    patches2 = jnp.concatenate(
        [p2[:, kh:kh + H, kw:kw + W, :] for kh in range(3) for kw in range(3)],
        axis=-1).reshape(Nb * H * W, 9 * Cout)             # (M, 9*Cout) bf16
    out2 = jnp.dot(patches2, w2_ref[...],                  # (M, Cp) fp32
                   preferred_element_type=f32)

    # ---- residual add (identity; stride=1, downsample=None) -----------------
    o_ref[...] = (out2.reshape(Nb, H, W, Cp) + x).astype(o_ref.dtype)


def _pick_batch_tile(n, max_tile=8):
    """Largest divisor of n that is <= max_tile, preferring >=2 grid steps."""
    divs = [d for d in range(1, min(n, max_tile) + 1) if n % d == 0]
    multi = [d for d in divs if n // d >= 2]
    return max(multi) if multi else max(divs)


def preact_basic_block(x_nchw, params, eps=1e-5, max_batch_tile=8):
    """Forward pass of PreActBasicBlock (stride=1, downsample=None)."""
    N, Cin, H, W = x_nchw.shape
    Cout = params["w1"].shape[0]
    assert Cin == Cout, "identity add requires inplanes == planes when downsample is None"

    # Channel padding to a 128-lane multiple: lane-dense loads/stores and a full
    # MXU N-dim.  The contraction (K) dims stay at the true channel counts.
    Cp = 128 * (-(-max(Cin, Cout) // 128))

    # NCHW -> NHWC, fp32.
    # TODO(synk): keep the whole network in NHWC end-to-end to avoid this
    #             NCHW<->NHWC round trip per block.
    x = jnp.transpose(x_nchw, (0, 2, 3, 1)).astype(jnp.float32)
    x = jnp.pad(x, ((0, 0), (0, 0), (0, 0), (0, Cp - Cin)))

    # Fold BN (inference mode) into per-channel scale/bias; pad to Cp lanes.
    s1 = params["bn1_gamma"] / jnp.sqrt(params["bn1_var"] + eps)
    b1 = params["bn1_beta"] - params["bn1_mean"] * s1
    s2 = params["bn2_gamma"] / jnp.sqrt(params["bn2_var"] + eps)
    b2 = params["bn2_beta"] - params["bn2_mean"] * s2
    s1p = jnp.pad(s1, (0, Cp - Cin)).reshape(1, Cp).astype(jnp.float32)
    b1p = jnp.pad(b1, (0, Cp - Cin)).reshape(1, Cp).astype(jnp.float32)
    s2p = jnp.pad(s2, (0, Cp - Cout)).reshape(1, Cp).astype(jnp.float32)
    b2p = jnp.pad(b2, (0, Cp - Cout)).reshape(1, Cp).astype(jnp.float32)

    # OIHW -> HWIO -> (9*Cin, Cout), zero-padded to Cp output lanes, bf16.
    w1 = jnp.transpose(params["w1"], (2, 3, 1, 0)).reshape(9 * Cin, Cout)
    w2 = jnp.transpose(params["w2"], (2, 3, 1, 0)).reshape(9 * Cout, Cout)
    w1p = jnp.pad(w1, ((0, 0), (0, Cp - Cout))).astype(jnp.bfloat16)
    w2p = jnp.pad(w2, ((0, 0), (0, Cp - Cout))).astype(jnp.bfloat16)

    Nb = _pick_batch_tile(N, max_batch_tile)
    grid = (N // Nb,)

    kernel = functools.partial(_preact_block_kernel,
                               Nb=Nb, H=H, W=W, Cin=Cin, Cout=Cout, Cp=Cp)

    flops = 2 * N * H * W * 9 * (Cin * Cout + Cout * Cout)
    bytes_accessed = int(2 * N * H * W * Cp * 4          # x in + out
                         + (w1p.size + w2p.size) * 2     # bf16 weights
                         + 4 * Cp * 4)                   # folded BN scale/bias
    cost = pl.CostEstimate(flops=int(flops), transcendentals=0,
                           bytes_accessed=bytes_accessed)

    out = pl.pallas_call(
        kernel,
        out_shape=jax.ShapeDtypeStruct((N, H, W, Cp), jnp.float32),
        grid=grid,
        in_specs=[
            pl.BlockSpec((Nb, H, W, Cp), lambda n: (n, 0, 0, 0)),
            pl.BlockSpec((1, Cp), lambda n: (0, 0)),
            pl.BlockSpec((1, Cp), lambda n: (0, 0)),
            pl.BlockSpec((9 * Cin, Cp), lambda n: (0, 0)),
            pl.BlockSpec((1, Cp), lambda n: (0, 0)),
            pl.BlockSpec((1, Cp), lambda n: (0, 0)),
            pl.BlockSpec((9 * Cout, Cp), lambda n: (0, 0)),
        ],
        out_specs=pl.BlockSpec((Nb, H, W, Cp), lambda n: (n, 0, 0, 0)),
        scratch_shapes=[
            pltpu.VMEM((Nb, H + 2, W + 2, Cin), jnp.bfloat16),
            pltpu.VMEM((Nb, H + 2, W + 2, Cout), jnp.bfloat16),
        ],
        compiler_params=pltpu.CompilerParams(
            dimension_semantics=("parallel",),
            vmem_limit_bytes=64 * 1024 * 1024),
        cost_estimate=cost,
    )(x, s1p, b1p, w1p, s2p, b2p, w2p)

    # Drop the lane padding, NHWC -> NCHW.
    out = out[..., :Cout]
    return jnp.transpose(out, (0, 3, 1, 2))


def _reference(x_nchw, params, eps=1e-5, matmul_dtype=jnp.bfloat16):
    """Pure-JAX reference.  matmul_dtype=bfloat16 mirrors the kernel's bf16-MXU
    numerics (fp32 accumulation); matmul_dtype=float32 is the exact fp32 path."""
    x = jnp.transpose(x_nchw, (0, 2, 3, 1)).astype(jnp.float32)
    s1 = params["bn1_gamma"] / jnp.sqrt(params["bn1_var"] + eps)
    b1 = params["bn1_beta"] - params["bn1_mean"] * s1
    s2 = params["bn2_gamma"] / jnp.sqrt(params["bn2_var"] + eps)
    b2 = params["bn2_beta"] - params["bn2_mean"] * s2
    w1 = jnp.transpose(params["w1"], (2, 3, 1, 0)).astype(matmul_dtype)
    w2 = jnp.transpose(params["w2"], (2, 3, 1, 0)).astype(matmul_dtype)
    dn = ("NHWC", "HWIO", "NHWC")
    h1 = jax.nn.relu(x * s1 + b1).astype(matmul_dtype)
    o1 = lax.conv_general_dilated(h1, w1, (1, 1), "SAME", dimension_numbers=dn,
                                  preferred_element_type=jnp.float32)
    h2 = jax.nn.relu(o1 * s2 + b2).astype(matmul_dtype)
    o2 = lax.conv_general_dilated(h2, w2, (1, 1), "SAME", dimension_numbers=dn,
                                  preferred_element_type=jnp.float32)
    return jnp.transpose(o2 + x, (0, 3, 1, 2))


def _make_params(key, inplanes, planes):
    ks = jax.random.split(key, 10)
    fan1 = inplanes * 9
    fan2 = planes * 9
    return {
        "w1": jax.random.normal(ks[0], (planes, inplanes, 3, 3), jnp.float32)
              * jnp.sqrt(2.0 / fan1),
        "w2": jax.random.normal(ks[1], (planes, planes, 3, 3), jnp.float32)
              * jnp.sqrt(2.0 / fan2),
        "bn1_gamma": 0.5 + jax.random.uniform(ks[2], (inplanes,), jnp.float32),
        "bn1_beta": 0.1 * jax.random.normal(ks[3], (inplanes,), jnp.float32),
        "bn1_mean": 0.1 * jax.random.normal(ks[4], (inplanes,), jnp.float32),
        "bn1_var": 0.5 + jax.random.uniform(ks[5], (inplanes,), jnp.float32),
        "bn2_gamma": 0.5 + jax.random.uniform(ks[6], (planes,), jnp.float32),
        "bn2_beta": 0.1 * jax.random.normal(ks[7], (planes,), jnp.float32),
        "bn2_mean": 0.1 * jax.random.normal(ks[8], (planes,), jnp.float32),
        "bn2_var": 0.5 + jax.random.uniform(ks[9], (planes,), jnp.float32),
    }


if __name__ == "__main__":
    key = jax.random.PRNGKey(0)
    k_x, k_p = jax.random.split(key)

    N, C, H, W = 2, 4, 16, 16            # inplanes = planes = 4, stride = 1
    x = jax.random.normal(k_x, (N, C, H, W), jnp.float32)
    params = _make_params(k_p, C, C)

    out = jax.block_until_ready(preact_basic_block(x, params))
    assert out.shape == (N, C, H, W)

    # Tight check against a reference that mirrors the kernel's bf16-operand /
    # fp32-accumulate matmul numerics.
    ref_bf16 = _reference(x, params, matmul_dtype=jnp.bfloat16)
    assert jnp.allclose(out, ref_bf16, atol=5e-3, rtol=5e-3)

    # Loose sanity check against the exact fp32 forward pass.
    ref_f32 = _reference(x, params, matmul_dtype=jnp.float32)
    assert jnp.allclose(out, ref_f32, atol=1e-1, rtol=1e-1)

    print("KERNEL_OK")
</pallas_src>

<mosaic_0001>
module attributes {stable_mosaic.version = 11 : i64} {
  func.func @_preact_block_kernel(%arg0: i32, %arg1: memref<1x16x16x128xf32, #tpu.memory_space<vmem>>, %arg2: memref<1x128xf32, #tpu.memory_space<vmem>>, %arg3: memref<1x128xf32, #tpu.memory_space<vmem>>, %arg4: memref<36x128xbf16, #tpu.memory_space<vmem>>, %arg5: memref<1x128xf32, #tpu.memory_space<vmem>>, %arg6: memref<1x128xf32, #tpu.memory_space<vmem>>, %arg7: memref<36x128xbf16, #tpu.memory_space<vmem>>, %arg8: memref<1x16x16x128xf32, #tpu.memory_space<vmem>>, %arg9: memref<1x18x18x4xbf16, #tpu.memory_space<vmem>>, %arg10: memref<1x18x18x4xbf16, #tpu.memory_space<vmem>>) attributes {dimension_semantics = [#tpu.dimension_semantics<parallel>], iteration_bounds = array<i64: 2>, scalar_prefetch = 0 : i64, scratch_operands = 2 : i64, tpu.core_type = #tpu.core_type<tc>, window_params = [{transform_indices = @transform_0, window_bounds = array<i64: 1, 16, 16, 128>}, {pipeline_mode = #tpu.pipeline_mode<synchronous>, transform_indices = @transform_1, window_bounds = array<i64: 1, 128>}, {pipeline_mode = #tpu.pipeline_mode<synchronous>, transform_indices = @transform_2, window_bounds = array<i64: 1, 128>}, {pipeline_mode = #tpu.pipeline_mode<synchronous>, transform_indices = @transform_3, window_bounds = array<i64: 36, 128>}, {pipeline_mode = #tpu.pipeline_mode<synchronous>, transform_indices = @transform_4, window_bounds = array<i64: 1, 128>}, {pipeline_mode = #tpu.pipeline_mode<synchronous>, transform_indices = @transform_5, window_bounds = array<i64: 1, 128>}, {pipeline_mode = #tpu.pipeline_mode<synchronous>, transform_indices = @transform_6, window_bounds = array<i64: 36, 128>}, {transform_indices = @transform_7, window_bounds = array<i64: 1, 16, 16, 128>}]} {
    %cst = arith.constant 0.000000e+00 : bf16
    %0 = vector.broadcast %cst : bf16 to vector<1x1x18x4xbf16>
    %cst_0 = arith.constant 0.000000e+00 : bf16
    %1 = vector.broadcast %cst_0 : bf16 to vector<1x18x1x4xbf16>
    %c0 = arith.constant 0 : index
    %c0_1 = arith.constant 0 : index
    %c0_2 = arith.constant 0 : index
    %c0_3 = arith.constant 0 : index
    %2 = vector.load %arg9[%c0, %c0_1, %c0_2, %c0_3] : memref<1x18x18x4xbf16, #tpu.memory_space<vmem>>, vector<1x1x18x4xbf16>
    tpu.vector_store %arg9[%c0, %c0_1, %c0_2, %c0_3], %0 {strides = array<i32>} : memref<1x18x18x4xbf16, #tpu.memory_space<vmem>>, vector<1x1x18x4xbf16>,
    %c0_4 = arith.constant 0 : index
    %c17 = arith.constant 17 : index
    %c0_5 = arith.constant 0 : index
    %c0_6 = arith.constant 0 : index
    %3 = vector.load %arg9[%c0_4, %c17, %c0_5, %c0_6] : memref<1x18x18x4xbf16, #tpu.memory_space<vmem>>, vector<1x1x18x4xbf16>
    tpu.vector_store %arg9[%c0_4, %c17, %c0_5, %c0_6], %0 {strides = array<i32>} : memref<1x18x18x4xbf16, #tpu.memory_space<vmem>>, vector<1x1x18x4xbf16>,
    %c0_7 = arith.constant 0 : index
    %c0_8 = arith.constant 0 : index
    %c0_9 = arith.constant 0 : index
    %c0_10 = arith.constant 0 : index
    %4 = vector.load %arg9[%c0_7, %c0_8, %c0_9, %c0_10] : memref<1x18x18x4xbf16, #tpu.memory_space<vmem>>, vector<1x18x1x4xbf16>
    tpu.vector_store %arg9[%c0_7, %c0_8, %c0_9, %c0_10], %1 {strides = array<i32>} : memref<1x18x18x4xbf16, #tpu.memory_space<vmem>>, vector<1x18x1x4xbf16>,
    %c0_11 = arith.constant 0 : index
    %c0_12 = arith.constant 0 : index
    %c17_13 = arith.constant 17 : index
    %c0_14 = arith.constant 0 : index
    %5 = vector.load %arg9[%c0_11, %c0_12, %c17_13, %c0_14] : memref<1x18x18x4xbf16, #tpu.memory_space<vmem>>, vector<1x18x1x4xbf16>
    tpu.vector_store %arg9[%c0_11, %c0_12, %c17_13, %c0_14], %1 {strides = array<i32>} : memref<1x18x18x4xbf16, #tpu.memory_space<vmem>>, vector<1x18x1x4xbf16>,
    %cst_15 = arith.constant 0.000000e+00 : bf16
    %6 = vector.broadcast %cst_15 : bf16 to vector<1x1x18x4xbf16>
    %cst_16 = arith.constant 0.000000e+00 : bf16
    %7 = vector.broadcast %cst_16 : bf16 to vector<1x18x1x4xbf16>
    %c0_17 = arith.constant 0 : index
    %c0_18 = arith.constant 0 : index
    %c0_19 = arith.constant 0 : index
    %c0_20 = arith.constant 0 : index
    %8 = vector.load %arg10[%c0_17, %c0_18, %c0_19, %c0_20] : memref<1x18x18x4xbf16, #tpu.memory_space<vmem>>, vector<1x1x18x4xbf16>
    tpu.vector_store %arg10[%c0_17, %c0_18, %c0_19, %c0_20], %6 {strides = array<i32>} : memref<1x18x18x4xbf16, #tpu.memory_space<vmem>>, vector<1x1x18x4xbf16>,
    %c0_21 = arith.constant 0 : index
    %c17_22 = arith.constant 17 : index
    %c0_23 = arith.constant 0 : index
    %c0_24 = arith.constant 0 : index
    %9 = vector.load %arg10[%c0_21, %c17_22, %c0_23, %c0_24] : memref<1x18x18x4xbf16, #tpu.memory_space<vmem>>, vector<1x1x18x4xbf16>
    tpu.vector_store %arg10[%c0_21, %c17_22, %c0_23, %c0_24], %6 {strides = array<i32>} : memref<1x18x18x4xbf16, #tpu.memory_space<vmem>>, vector<1x1x18x4xbf16>,
    %c0_25 = arith.constant 0 : index
    %c0_26 = arith.constant 0 : index
    %c0_27 = arith.constant 0 : index
    %c0_28 = arith.constant 0 : index
    %10 = vector.load %arg10[%c0_25, %c0_26, %c0_27, %c0_28] : memref<1x18x18x4xbf16, #tpu.memory_space<vmem>>, vector<1x18x1x4xbf16>
    tpu.vector_store %arg10[%c0_25, %c0_26, %c0_27, %c0_28], %7 {strides = array<i32>} : memref<1x18x18x4xbf16, #tpu.memory_space<vmem>>, vector<1x18x1x4xbf16>,
    %c0_29 = arith.constant 0 : index
    %c0_30 = arith.constant 0 : index
    %c17_31 = arith.constant 17 : index
    %c0_32 = arith.constant 0 : index
    %11 = vector.load %arg10[%c0_29, %c0_30, %c17_31, %c0_32] : memref<1x18x18x4xbf16, #tpu.memory_space<vmem>>, vector<1x18x1x4xbf16>
    tpu.vector_store %arg10[%c0_29, %c0_30, %c17_31, %c0_32], %7 {strides = array<i32>} : memref<1x18x18x4xbf16, #tpu.memory_space<vmem>>, vector<1x18x1x4xbf16>,
    %c0_33 = arith.constant 0 : index
    %c0_34 = arith.constant 0 : index
    %c0_35 = arith.constant 0 : index
    %c0_36 = arith.constant 0 : index
    %12 = vector.load %arg1[%c0_33, %c0_34, %c0_35, %c0_36] : memref<1x16x16x128xf32, #tpu.memory_space<vmem>>, vector<1x16x16x128xf32>
    %c0_37 = arith.constant 0 : index
    %c0_38 = arith.constant 0 : index
    %13 = vector.load %arg2[%c0_37, %c0_38] : memref<1x128xf32, #tpu.memory_space<vmem>>, vector<1x128xf32>
    %14 = vector.shape_cast %13 : vector<1x128xf32> to vector<128xf32>
    %15 = vector.shape_cast %14 : vector<128xf32> to vector<1x1x1x128xf32>
    %16 = vector.broadcast %15 : vector<1x1x1x128xf32> to vector<1x16x16x128xf32>
    %17 = arith.mulf %12, %16 : vector<1x16x16x128xf32>
    %c0_39 = arith.constant 0 : index
    %c0_40 = arith.constant 0 : index
    %18 = vector.load %arg3[%c0_39, %c0_40] : memref<1x128xf32, #tpu.memory_space<vmem>>, vector<1x128xf32>
    %19 = vector.shape_cast %18 : vector<1x128xf32> to vector<128xf32>
    %20 = vector.shape_cast %19 : vector<128xf32> to vector<1x1x1x128xf32>
    %21 = vector.broadcast %20 : vector<1x1x1x128xf32> to vector<1x16x16x128xf32>
    %22 = arith.addf %17, %21 : vector<1x16x16x128xf32>
    %cst_41 = arith.constant 0.000000e+00 : f32
    %23 = vector.broadcast %cst_41 : f32 to vector<1x16x16x128xf32>
    %24 = arith.maximumf %22, %23 : vector<1x16x16x128xf32>
    %25 = vector.extract_strided_slice %24 {offsets = [0, 0, 0, 0], sizes = [1, 16, 16, 4], strides = [1, 1, 1, 1]} : vector<1x16x16x128xf32> to vector<1x16x16x4xf32>
    %26 = arith.truncf %25 : vector<1x16x16x4xf32> to vector<1x16x16x4xbf16>
    %c0_42 = arith.constant 0 : index
    %c1 = arith.constant 1 : index
    %c1_43 = arith.constant 1 : index
    %c0_44 = arith.constant 0 : index
    %27 = vector.load %arg9[%c0_42, %c1, %c1_43, %c0_44] : memref<1x18x18x4xbf16, #tpu.memory_space<vmem>>, vector<1x16x16x4xbf16>
    tpu.vector_store %arg9[%c0_42, %c1, %c1_43, %c0_44], %26 {strides = array<i32>} : memref<1x18x18x4xbf16, #tpu.memory_space<vmem>>, vector<1x16x16x4xbf16>,
    %c0_45 = arith.constant 0 : index
    %c0_46 = arith.constant 0 : index
    %c0_47 = arith.constant 0 : index
    %c0_48 = arith.constant 0 : index
    %28 = vector.load %arg9[%c0_45, %c0_46, %c0_47, %c0_48] : memref<1x18x18x4xbf16, #tpu.memory_space<vmem>>, vector<1x18x18x4xbf16>
    %29 = vector.extract_strided_slice %28 {offsets = [0, 0, 0, 0], sizes = [1, 16, 16, 4], strides = [1, 1, 1, 1]} : vector<1x18x18x4xbf16> to vector<1x16x16x4xbf16>
    %30 = vector.extract_strided_slice %28 {offsets = [0, 0, 1, 0], sizes = [1, 16, 16, 4], strides = [1, 1, 1, 1]} : vector<1x18x18x4xbf16> to vector<1x16x16x4xbf16>
    %31 = vector.extract_strided_slice %28 {offsets = [0, 0, 2, 0], sizes = [1, 16, 16, 4], strides = [1, 1, 1, 1]} : vector<1x18x18x4xbf16> to vector<1x16x16x4xbf16>
    %32 = vector.extract_strided_slice %28 {offsets = [0, 1, 0, 0], sizes = [1, 16, 16, 4], strides = [1, 1, 1, 1]} : vector<1x18x18x4xbf16> to vector<1x16x16x4xbf16>
    %33 = vector.extract_strided_slice %28 {offsets = [0, 1, 1, 0], sizes = [1, 16, 16, 4], strides = [1, 1, 1, 1]} : vector<1x18x18x4xbf16> to vector<1x16x16x4xbf16>
    %34 = vector.extract_strided_slice %28 {offsets = [0, 1, 2, 0], sizes = [1, 16, 16, 4], strides = [1, 1, 1, 1]} : vector<1x18x18x4xbf16> to vector<1x16x16x4xbf16>
    %35 = vector.extract_strided_slice %28 {offsets = [0, 2, 0, 0], sizes = [1, 16, 16, 4], strides = [1, 1, 1, 1]} : vector<1x18x18x4xbf16> to vector<1x16x16x4xbf16>
    %36 = vector.extract_strided_slice %28 {offsets = [0, 2, 1, 0], sizes = [1, 16, 16, 4], strides = [1, 1, 1, 1]} : vector<1x18x18x4xbf16> to vector<1x16x16x4xbf16>
    %37 = vector.extract_strided_slice %28 {offsets = [0, 2, 2, 0], sizes = [1, 16, 16, 4], strides = [1, 1, 1, 1]} : vector<1x18x18x4xbf16> to vector<1x16x16x4xbf16>
    %38 = tpu.concatenate %29, %30, %31, %32, %33, %34, %35, %36, %37 in 3 : vector<1x16x16x4xbf16>, vector<1x16x16x4xbf16>, vector<1x16x16x4xbf16>, vector<1x16x16x4xbf16>, vector<1x16x16x4xbf16>, vector<1x16x16x4xbf16>, vector<1x16x16x4xbf16>, vector<1x16x16x4xbf16>, vector<1x16x16x4xbf16> -> vector<1x16x16x36xbf16>
    %39 = vector.shape_cast %38 : vector<1x16x16x36xbf16> to vector<256x36xbf16>
    %c0_49 = arith.constant 0 : index
    %c0_50 = arith.constant 0 : index
    %40 = vector.load %arg4[%c0_49, %c0_50] : memref<36x128xbf16, #tpu.memory_space<vmem>>, vector<36x128xbf16>
    %cst_51 = arith.constant dense<0.000000e+00> : vector<256x128xf32>
    %41 = tpu.matmul %39, %40, %cst_51 {dimension_numbers = #tpu.dot_dimension_numbers<[1], [0], [0], [1], [0, 0, 1, 1], [], []>} : vector<256x36xbf16>, vector<36x128xbf16>, vector<256x128xf32> -> vector<256x128xf32>
    %c0_52 = arith.constant 0 : index
    %c0_53 = arith.constant 0 : index
    %42 = vector.load %arg5[%c0_52, %c0_53] : memref<1x128xf32, #tpu.memory_space<vmem>>, vector<1x128xf32>
    %43 = vector.shape_cast %42 : vector<1x128xf32> to vector<128xf32>
    %44 = vector.shape_cast %43 : vector<128xf32> to vector<1x128xf32>
    %45 = vector.broadcast %44 : vector<1x128xf32> to vector<256x128xf32>
    %46 = arith.mulf %41, %45 : vector<256x128xf32>
    %c0_54 = arith.constant 0 : index
    %c0_55 = arith.constant 0 : index
    %47 = vector.load %arg6[%c0_54, %c0_55] : memref<1x128xf32, #tpu.memory_space<vmem>>, vector<1x128xf32>
    %48 = vector.shape_cast %47 : vector<1x128xf32> to vector<128xf32>
    %49 = vector.shape_cast %48 : vector<128xf32> to vector<1x128xf32>
    %50 = vector.broadcast %49 : vector<1x128xf32> to vector<256x128xf32>
    %51 = arith.addf %46, %50 : vector<256x128xf32>
    %cst_56 = arith.constant 0.000000e+00 : f32
    %52 = vector.broadcast %cst_56 : f32 to vector<256x128xf32>
    %53 = arith.maximumf %51, %52 : vector<256x128xf32>
    %54 = vector.shape_cast %53 : vector<256x128xf32> to vector<1x16x16x128xf32>
    %55 = vector.extract_strided_slice %54 {offsets = [0, 0, 0, 0], sizes = [1, 16, 16, 4], strides = [1, 1, 1, 1]} : vector<1x16x16x128xf32> to vector<1x16x16x4xf32>
    %56 = arith.truncf %55 : vector<1x16x16x4xf32> to vector<1x16x16x4xbf16>
    %c0_57 = arith.constant 0 : index
    %c1_58 = arith.constant 1 : index
    %c1_59 = arith.constant 1 : index
    %c0_60 = arith.constant 0 : index
    %57 = vector.load %arg10[%c0_57, %c1_58, %c1_59, %c0_60] : memref<1x18x18x4xbf16, #tpu.memory_space<vmem>>, vector<1x16x16x4xbf16>
    tpu.vector_store %arg10[%c0_57, %c1_58, %c1_59, %c0_60], %56 {strides = array<i32>} : memref<1x18x18x4xbf16, #tpu.memory_space<vmem>>, vector<1x16x16x4xbf16>,
    %c0_61 = arith.constant 0 : index
    %c0_62 = arith.constant 0 : index
    %c0_63 = arith.constant 0 : index
    %c0_64 = arith.constant 0 : index
    %58 = vector.load %arg10[%c0_61, %c0_62, %c0_63, %c0_64] : memref<1x18x18x4xbf16, #tpu.memory_space<vmem>>, vector<1x18x18x4xbf16>
    %59 = vector.extract_strided_slice %58 {offsets = [0, 0, 0, 0], sizes = [1, 16, 16, 4], strides = [1, 1, 1, 1]} : vector<1x18x18x4xbf16> to vector<1x16x16x4xbf16>
    %60 = vector.extract_strided_slice %58 {offsets = [0, 0, 1, 0], sizes = [1, 16, 16, 4], strides = [1, 1, 1, 1]} : vector<1x18x18x4xbf16> to vector<1x16x16x4xbf16>
    %61 = vector.extract_strided_slice %58 {offsets = [0, 0, 2, 0], sizes = [1, 16, 16, 4], strides = [1, 1, 1, 1]} : vector<1x18x18x4xbf16> to vector<1x16x16x4xbf16>
    %62 = vector.extract_strided_slice %58 {offsets = [0, 1, 0, 0], sizes = [1, 16, 16, 4], strides = [1, 1, 1, 1]} : vector<1x18x18x4xbf16> to vector<1x16x16x4xbf16>
    %63 = vector.extract_strided_slice %58 {offsets = [0, 1, 1, 0], sizes = [1, 16, 16, 4], strides = [1, 1, 1, 1]} : vector<1x18x18x4xbf16> to vector<1x16x16x4xbf16>
    %64 = vector.extract_strided_slice %58 {offsets = [0, 1, 2, 0], sizes = [1, 16, 16, 4], strides = [1, 1, 1, 1]} : vector<1x18x18x4xbf16> to vector<1x16x16x4xbf16>
    %65 = vector.extract_strided_slice %58 {offsets = [0, 2, 0, 0], sizes = [1, 16, 16, 4], strides = [1, 1, 1, 1]} : vector<1x18x18x4xbf16> to vector<1x16x16x4xbf16>
    %66 = vector.extract_strided_slice %58 {offsets = [0, 2, 1, 0], sizes = [1, 16, 16, 4], strides = [1, 1, 1, 1]} : vector<1x18x18x4xbf16> to vector<1x16x16x4xbf16>
    %67 = vector.extract_strided_slice %58 {offsets = [0, 2, 2, 0], sizes = [1, 16, 16, 4], strides = [1, 1, 1, 1]} : vector<1x18x18x4xbf16> to vector<1x16x16x4xbf16>
    %68 = tpu.concatenate %59, %60, %61, %62, %63, %64, %65, %66, %67 in 3 : vector<1x16x16x4xbf16>, vector<1x16x16x4xbf16>, vector<1x16x16x4xbf16>, vector<1x16x16x4xbf16>, vector<1x16x16x4xbf16>, vector<1x16x16x4xbf16>, vector<1x16x16x4xbf16>, vector<1x16x16x4xbf16>, vector<1x16x16x4xbf16> -> vector<1x16x16x36xbf16>
    %69 = vector.shape_cast %68 : vector<1x16x16x36xbf16> to vector<256x36xbf16>
    %c0_65 = arith.constant 0 : index
    %c0_66 = arith.constant 0 : index
    %70 = vector.load %arg7[%c0_65, %c0_66] : memref<36x128xbf16, #tpu.memory_space<vmem>>, vector<36x128xbf16>
    %cst_67 = arith.constant dense<0.000000e+00> : vector<256x128xf32>
    %71 = tpu.matmul %69, %70, %cst_67 {dimension_numbers = #tpu.dot_dimension_numbers<[1], [0], [0], [1], [0, 0, 1, 1], [], []>} : vector<256x36xbf16>, vector<36x128xbf16>, vector<256x128xf32> -> vector<256x128xf32>
    %72 = vector.shape_cast %71 : vector<256x128xf32> to vector<1x16x16x128xf32>
    %73 = arith.addf %72, %12 : vector<1x16x16x128xf32>
    %c0_68 = arith.constant 0 : index
    %c0_69 = arith.constant 0 : index
    %c0_70 = arith.constant 0 : index
    %c0_71 = arith.constant 0 : index
    %74 = vector.load %arg8[%c0_68, %c0_69, %c0_70, %c0_71] : memref<1x16x16x128xf32, #tpu.memory_space<vmem>>, vector<1x16x16x128xf32>
    tpu.vector_store %arg8[%c0_68, %c0_69, %c0_70, %c0_71], %73 {strides = array<i32>} : memref<1x16x16x128xf32, #tpu.memory_space<vmem>>, vector<1x16x16x128xf32>,
    return
  }
  func.func @transform_0(%arg0: i32) -> (i32, i32, i32, i32) {
    %c0_i32 = arith.constant 0 : i32
    %c0_i32_0 = arith.constant 0 : i32
    %c0_i32_1 = arith.constant 0 : i32
    %c0_i32_2 = arith.constant 0 : i32
    return %arg0, %c0_i32, %c0_i32_0, %c0_i32_1 : i32, i32, i32, i32
  }
  func.func @transform_1(%arg0: i32) -> (i32, i32) {
    %c0_i32 = arith.constant 0 : i32
    %c0_i32_0 = arith.constant 0 : i32
    %c0_i32_1 = arith.constant 0 : i32
    return %c0_i32, %c0_i32_0 : i32, i32
  }
  func.func @transform_2(%arg0: i32) -> (i32, i32) {
    %c0_i32 = arith.constant 0 : i32
    %c0_i32_0 = arith.constant 0 : i32
    %c0_i32_1 = arith.constant 0 : i32
    return %c0_i32, %c0_i32_0 : i32, i32
  }
  func.func @transform_3(%arg0: i32) -> (i32, i32) {
    %c0_i32 = arith.constant 0 : i32
    %c0_i32_0 = arith.constant 0 : i32
    %c0_i32_1 = arith.constant 0 : i32
    return %c0_i32, %c0_i32_0 : i32, i32
  }
  func.func @transform_4(%arg0: i32) -> (i32, i32) {
    %c0_i32 = arith.constant 0 : i32
    %c0_i32_0 = arith.constant 0 : i32
    %c0_i32_1 = arith.constant 0 : i32
    return %c0_i32, %c0_i32_0 : i32, i32
  }
  func.func @transform_5(%arg0: i32) -> (i32, i32) {
    %c0_i32 = arith.constant 0 : i32
    %c0_i32_0 = arith.constant 0 : i32
    %c0_i32_1 = arith.constant 0 : i32
    return %c0_i32, %c0_i32_0 : i32, i32
  }
  func.func @transform_6(%arg0: i32) -> (i32, i32) {
    %c0_i32 = arith.constant 0 : i32
    %c0_i32_0 = arith.constant 0 : i32
    %c0_i32_1 = arith.constant 0 : i32
    return %c0_i32, %c0_i32_0 : i32, i32
  }
  func.func @transform_7(%arg0: i32) -> (i32, i32, i32, i32) {
    %c0_i32 = arith.constant 0 : i32
    %c0_i32_0 = arith.constant 0 : i32
    %c0_i32_1 = arith.constant 0 : i32
    %c0_i32_2 = arith.constant 0 : i32
    return %arg0, %c0_i32, %c0_i32_0, %c0_i32_1 : i32, i32, i32, i32
  }
}

</mosaic_0001>

<llo_original>
// kernel: tpu_custom_call.1
$region0: #{tpu_custom_call.1}
  #allocation0 [shape = 'u32[]', space=smem, size = 0x4, offset = 0x4, fixed_abs, tag = 'smem constant byte address 0x4 - core index']
  #allocation1 [shape = 'u32[144,128]{1,0:T(1,128)}', space=vmem, size = 0x12000, scoped, tag = 'internal scratch']
  #allocation2 [shape = 'bf16[1,18,18,4]{3,2,1,0:T(8,128)(2,1)}', space=vmem, size = 0x1b000, scoped, tag = 'scratch operand']
  #allocation3 [shape = 'bf16[1,18,18,4]{3,2,1,0:T(8,128)(2,1)}', space=vmem, size = 0x1b000, scoped, tag = 'scratch operand']
  %s0 = inlined_call_operand.hbm [shape: f32[2,16,16,128], index: 0, kind: input, shape index: {}]
  %s1 = inlined_call_operand.hbm [shape: f32[1,128], index: 1, kind: input, shape index: {}]
  %s2 = inlined_call_operand.hbm [shape: f32[1,128], index: 2, kind: input, shape index: {}]
  %s3 = inlined_call_operand.hbm [shape: bf16[36,128], index: 3, kind: input, shape index: {}]
  %s4 = inlined_call_operand.hbm [shape: f32[1,128], index: 4, kind: input, shape index: {}]
  %s5 = inlined_call_operand.hbm [shape: f32[1,128], index: 5, kind: input, shape index: {}]
  %s6 = inlined_call_operand.hbm [shape: bf16[36,128], index: 6, kind: input, shape index: {}]
  %s7 = inlined_call_operand.hbm [shape: f32[2,16,16,128], index: 7, kind: output, shape index: {}]
  %s8 = sld [smem:[#allocation0]]
  $region89: #{tpu_custom_call.1} parent=0
    _
  %s10 = ssub.s32 1, %s8
  %s11 = scalar_select 0, %s10, %s8
  $region1: #{tpu_custom_call.1} parent=0
    #allocation4 [shape = 'u8[262144]{0}', space=vmem, size = 0x40000, scoped, tag = 'input window, operand 0']
    #allocation5 [shape = 's32[2]{0}', space=sflag, size = 0x8, scoped, tag = 'scoped memory for tpu_custom_call.1']
    #allocation6 [shape = 's32[2]{0}', space=sflag, size = 0x8, scoped, tag = 'scoped memory for tpu_custom_call.1']
    #allocation7 [shape = 'u8[512]{0}', space=vmem, size = 0x400, scoped, tag = 'input window, operand 1, single buffered']
    #allocation8 [shape = 's32[1]{0}', space=sflag, size = 0x4, scoped, tag = 'scoped memory for tpu_custom_call.1']
    #allocation9 [shape = 'u8[512]{0}', space=vmem, size = 0x400, scoped, tag = 'input window, operand 2, single buffered']
    #allocation10 [shape = 'u8[10240]{0}', space=vmem, size = 0x2800, scoped, tag = 'input window, operand 3, single buffered']
    #allocation11 [shape = 's32[1]{0}', space=sflag, size = 0x4, scoped, tag = 'scoped memory for tpu_custom_call.1']
    #allocation12 [shape = 'u8[512]{0}', space=vmem, size = 0x400, scoped, tag = 'input window, operand 4, single buffered']
    #allocation13 [shape = 'u8[512]{0}', space=vmem, size = 0x400, scoped, tag = 'input window, operand 5, single buffered']
    #allocation14 [shape = 's32[1]{0}', space=sflag, size = 0x4, scoped, tag = 'scoped memory for tpu_custom_call.1']
    #allocation15 [shape = 'u8[10240]{0}', space=vmem, size = 0x2800, scoped, tag = 'input window, operand 6, single buffered']
    #allocation16 [shape = 'u8[262144]{0}', space=vmem, size = 0x40000, scoped, tag = 'output window, operand 0']
    %12 = vsyncpa [#allocation5], 0
    %s13 = scalar_lea.sflag [#allocation5], 1
    %14 = vsyncpa %s13, 0
    %15 = vsyncpa [#allocation8], 0
    %16 = vsyncpa [#allocation11], 0
    %17 = vsyncpa [#allocation14], 0
    %18 = vsyncpa [#allocation6], 0
    %s19 = scalar_lea.sflag [#allocation6], 1
    %20 = vsyncpa %s19, 0
    loop: start=0, step=1, limit=4
    $region2: #{tpu_custom_call.1} parent=1 // loop_pre_header
      _
    $region3: #{tpu_custom_call.1} parent=1 // loop_header
      %s22 = sphi 0, %s26
      %p23 = scmp.ge.s32.totalorder %s22, 4
      %s32 = sphi 0, %s34
      %s35 = sphi 0, %s32
      %s36 = sphi 0, %s35
      %s52 = sphi 0, %s36
      %s56 = sphi 0, %s56
      %s58 = sphi 0, %s56
      %s59 = sphi 0, %s58
      %s73 = sphi 0, %s59
      %s77 = sphi 0, %s77
      %s79 = sphi 0, %s77
      %s80 = sphi 0, %s79
      %s94 = sphi 0, %s80
      %s98 = sphi 0, %s98
      %s100 = sphi 0, %s98
      %s101 = sphi 0, %s100
      %s115 = sphi 0, %s101
      %s119 = sphi 0, %s119
      %s121 = sphi 0, %s119
      %s122 = sphi 0, %s121
      %s136 = sphi 0, %s122
      %s140 = sphi 0, %s140
      %s142 = sphi 0, %s140
      %s143 = sphi 0, %s142
      %s157 = sphi 0, %s143
      %s161 = sphi 0, %s161
      %s163 = sphi 0, %s161
      %s164 = sphi 0, %s163
      %s178 = sphi 0, %s164
      %s184 = sphi 0, %s186
      %s187 = sphi 0, %s184
      %s188 = sphi 0, %s187
      %s204 = sphi 0, %s188
    $region4: #{tpu_custom_call.1} parent=1 // loop_header_branch
      %25 = sbr.rel (%p23) target = $region8
    $region5: #{tpu_custom_call.1} parent=1 // loop_body
      %s27 = ssub.s32 %s22, 1
      %s28 = ssub.s32 %s22, 2
      %s29 = sadd.s32 %s22, 1
      %s30 = ssub.s32 %s22, %s29
      %p31 = scmp.eq.s32.totalorder %s30, 0
      %s33 = sadd.s32 %s32, 1
      %s34 = scalar_select %p31, %s32, %s33
      %p37 = pneg %p31
      %p38 = scmp.eq.s32.totalorder %s22, 1
      %p39 = por %p37, %p38
      %p40 = scmp.ne.s32.totalorder %s32, %s35
      %p41 = scmp.eq.s32.totalorder %s22, 0
      %p42 = por %p40, %p41
      %p43 = scmp.ne.s32.totalorder %s32, %s35
      %p44 = scmp.eq.s32.totalorder %s27, 1
      %p45 = por %p43, %p44
      %p46 = scmp.ne.s32.totalorder %s35, %s36
      %p47 = scmp.eq.s32.totalorder %s27, 0
      %p48 = por %p46, %p47
      %p49 = scmp.ne.s32.totalorder %s35, %s36
      %p50 = scmp.eq.s32.totalorder %s28, 1
      %p51 = por %p49, %p50
      %p53 = scmp.ne.s32.totalorder %s36, %s52
      %p54 = scmp.eq.s32.totalorder %s28, 0
      %p55 = por %p53, %p54
      %s57 = sadd.s32 %s56, 1
      %p60 = scmp.eq.s32.totalorder %s22, 1
      %p61 = scmp.ne.s32.totalorder %s56, %s58
      %p62 = scmp.eq.s32.totalorder %s22, 0
      %p63 = por %p61, %p62
      %p64 = scmp.ne.s32.totalorder %s56, %s58
      %p65 = scmp.eq.s32.totalorder %s27, 1
      %p66 = por %p64, %p65
      %p67 = scmp.ne.s32.totalorder %s58, %s59
      %p68 = scmp.eq.s32.totalorder %s27, 0
      %p69 = por %p67, %p68
      %p70 = scmp.ne.s32.totalorder %s58, %s59
      %p71 = scmp.eq.s32.totalorder %s28, 1
      %p72 = por %p70, %p71
      %p74 = scmp.ne.s32.totalorder %s59, %s73
      %p75 = scmp.eq.s32.totalorder %s28, 0
      %p76 = por %p74, %p75
      %s78 = sadd.s32 %s77, 1
      %p81 = scmp.eq.s32.totalorder %s22, 1
      %p82 = scmp.ne.s32.totalorder %s77, %s79
      %p83 = scmp.eq.s32.totalorder %s22, 0
      %p84 = por %p82, %p83
      %p85 = scmp.ne.s32.totalorder %s77, %s79
      %p86 = scmp.eq.s32.totalorder %s27, 1
      %p87 = por %p85, %p86
      %p88 = scmp.ne.s32.totalorder %s79, %s80
      %p89 = scmp.eq.s32.totalorder %s27, 0
      %p90 = por %p88, %p89
      %p91 = scmp.ne.s32.totalorder %s79, %s80
      %p92 = scmp.eq.s32.totalorder %s28, 1
      %p93 = por %p91, %p92
      %p95 = scmp.ne.s32.totalorder %s80, %s94
      %p96 = scmp.eq.s32.totalorder %s28, 0
      %p97 = por %p95, %p96
      %s99 = sadd.s32 %s98, 1
      %p102 = scmp.eq.s32.totalorder %s22, 1
      %p103 = scmp.ne.s32.totalorder %s98, %s100
      %p104 = scmp.eq.s32.totalorder %s22, 0
      %p105 = por %p103, %p104
      %p106 = scmp.ne.s32.totalorder %s98, %s100
      %p107 = scmp.eq.s32.totalorder %s27, 1
      %p108 = por %p106, %p107
      %p109 = scmp.ne.s32.totalorder %s100, %s101
      %p110 = scmp.eq.s32.totalorder %s27, 0
      %p111 = por %p109, %p110
      %p112 = scmp.ne.s32.totalorder %s100, %s101
      %p113 = scmp.eq.s32.totalorder %s28, 1
      %p114 = por %p112, %p113
      %p116 = scmp.ne.s32.totalorder %s101, %s115
      %p117 = scmp.eq.s32.totalorder %s28, 0
      %p118 = por %p116, %p117
      %s120 = sadd.s32 %s119, 1
      %p123 = scmp.eq.s32.totalorder %s22, 1
      %p124 = scmp.ne.s32.totalorder %s119, %s121
      %p125 = scmp.eq.s32.totalorder %s22, 0
      %p126 = por %p124, %p125
      %p127 = scmp.ne.s32.totalorder %s119, %s121
      %p128 = scmp.eq.s32.totalorder %s27, 1
      %p129 = por %p127, %p128
      %p130 = scmp.ne.s32.totalorder %s121, %s122
      %p131 = scmp.eq.s32.totalorder %s27, 0
      %p132 = por %p130, %p131
      %p133 = scmp.ne.s32.totalorder %s121, %s122
      %p134 = scmp.eq.s32.totalorder %s28, 1
      %p135 = por %p133, %p134
      %p137 = scmp.ne.s32.totalorder %s122, %s136
      %p138 = scmp.eq.s32.totalorder %s28, 0
      %p139 = por %p137, %p138
      %s141 = sadd.s32 %s140, 1
      %p144 = scmp.eq.s32.totalorder %s22, 1
      %p145 = scmp.ne.s32.totalorder %s140, %s142
      %p146 = scmp.eq.s32.totalorder %s22, 0
      %p147 = por %p145, %p146
      %p148 = scmp.ne.s32.totalorder %s140, %s142
      %p149 = scmp.eq.s32.totalorder %s27, 1
      %p150 = por %p148, %p149
      %p151 = scmp.ne.s32.totalorder %s142, %s143
      %p152 = scmp.eq.s32.totalorder %s27, 0
      %p153 = por %p151, %p152
      %p154 = scmp.ne.s32.totalorder %s142, %s143
      %p155 = scmp.eq.s32.totalorder %s28, 1
      %p156 = por %p154, %p155
      %p158 = scmp.ne.s32.totalorder %s143, %s157
      %p159 = scmp.eq.s32.totalorder %s28, 0
      %p160 = por %p158, %p159
      %s162 = sadd.s32 %s161, 1
      %p165 = scmp.eq.s32.totalorder %s22, 1
      %p166 = scmp.ne.s32.totalorder %s161, %s163
      %p167 = scmp.eq.s32.totalorder %s22, 0
      %p168 = por %p166, %p167
      %p169 = scmp.ne.s32.totalorder %s161, %s163
      %p170 = scmp.eq.s32.totalorder %s27, 1
      %p171 = por %p169, %p170
      %p172 = scmp.ne.s32.totalorder %s163, %s164
      %p173 = scmp.eq.s32.totalorder %s27, 0
      %p174 = por %p172, %p173
      %p175 = scmp.ne.s32.totalorder %s163, %s164
      %p176 = scmp.eq.s32.totalorder %s28, 1
      %p177 = por %p175, %p176
      %p179 = scmp.ne.s32.totalorder %s164, %s178
      %p180 = scmp.eq.s32.totalorder %s28, 0
      %p181 = por %p179, %p180
      %s182 = ssub.s32 %s22, %s29
      %p183 = scmp.eq.s32.totalorder %s182, 0
      %s185 = sadd.s32 %s184, 1
      %s186 = scalar_select %p183, %s184, %s185
      %p189 = pneg %p183
      %p190 = scmp.eq.s32.totalorder %s22, 1
      %p191 = por %p189, %p190
      %p192 = scmp.ne.s32.totalorder %s184, %s187
      %p193 = scmp.eq.s32.totalorder %s22, 0
      %p194 = por %p192, %p193
      %p195 = scmp.ne.s32.totalorder %s184, %s187
      %p196 = scmp.eq.s32.totalorder %s27, 1
      %p197 = por %p195, %p196
      %p198 = scmp.ne.s32.totalorder %s187, %s188
      %p199 = scmp.eq.s32.totalorder %s27, 0
      %p200 = por %p198, %p199
      %p201 = scmp.ne.s32.totalorder %s187, %s188
      %p202 = scmp.eq.s32.totalorder %s28, 1
      %p203 = por %p201, %p202
      %p205 = scmp.ne.s32.totalorder %s188, %s204
      %p206 = scmp.eq.s32.totalorder %s28, 0
      %p207 = por %p205, %p206
      %p208 = scmp.le.s32.totalorder 1, %s22
      %p209 = scmp.lt.s32.totalorder %s22, 3
      %p210 = pnand %p208, %p209
      %p211 = pneg %p210
      // Predicated region
      $region9: #{tpu_custom_call.1} parent=5 // pred_check
        _
      $region10: #{tpu_custom_call.1} parent=5 // pred_check_branch
        %213 = sbr.rel (%p210) target = $region12
      $region11: #{tpu_custom_call.1} parent=5 // pred_region
        %s214 = ssub.s32 %s22, 1
        // Predicated region
        $region13: #{tpu_custom_call.1} parent=11 // pred_check
          %p215 = pneg %p69
        $region14: #{tpu_custom_call.1} parent=11 // pred_check_branch
          %217 = sbr.rel (%p215) target = $region16
        $region15: #{tpu_custom_call.1} parent=11 // pred_region
          %s219 = ssub.s32 16, 16
          %220 = vsyncadd [#allocation8], %s219
          %s222 = sshll.u32 [#allocation7], 4
          %s223 = int_to_ptr.vmem [resolvable:$true] %s222
          %225 = dma.hbm_to_vmem [thread:$0]  %s1, 16, %s223, [#allocation8]
        $region16: #{tpu_custom_call.1} parent=11 // pred_fallthru
          _
        // Predicated region
        $region17: #{tpu_custom_call.1} parent=11 // pred_check
          %p226 = pneg %p90
        $region18: #{tpu_custom_call.1} parent=11 // pred_check_branch
          %228 = sbr.rel (%p226) target = $region20
        $region19: #{tpu_custom_call.1} parent=11 // pred_region
          %s230 = ssub.s32 16, 16
          %231 = vsyncadd [#allocation8], %s230
          %s233 = sshll.u32 [#allocation9], 4
          %s234 = int_to_ptr.vmem [resolvable:$true] %s233
          %236 = dma.hbm_to_vmem [thread:$0]  %s2, 16, %s234, [#allocation8]
        $region20: #{tpu_custom_call.1} parent=11 // pred_fallthru
          _
        // Predicated region
        $region21: #{tpu_custom_call.1} parent=11 // pred_check
          %p237 = pneg %p111
        $region22: #{tpu_custom_call.1} parent=11 // pred_check_branch
          %239 = sbr.rel (%p237) target = $region24
        $region23: #{tpu_custom_call.1} parent=11 // pred_region
          %s241 = ssub.s32 320, 320
          %242 = vsyncadd [#allocation11], %s241
          %s243 = sshll.u32 [#allocation10], 4
          %s244 = int_to_ptr.vmem [resolvable:$true] %s243
          %249 = dma.hbm_to_vmem [thread:$0]  %s3, 320, %s244, [#allocation11], 64, 64, 4
        $region24: #{tpu_custom_call.1} parent=11 // pred_fallthru
          _
        // Predicated region
        $region25: #{tpu_custom_call.1} parent=11 // pred_check
          %p250 = pneg %p132
        $region26: #{tpu_custom_call.1} parent=11 // pred_check_branch
          %252 = sbr.rel (%p250) target = $region28
        $region27: #{tpu_custom_call.1} parent=11 // pred_region
          %s254 = ssub.s32 16, 16
          %255 = vsyncadd [#allocation11], %s254
          %s257 = sshll.u32 [#allocation12], 4
          %s258 = int_to_ptr.vmem [resolvable:$true] %s257
          %260 = dma.hbm_to_vmem [thread:$0]  %s4, 16, %s258, [#allocation11]
        $region28: #{tpu_custom_call.1} parent=11 // pred_fallthru
          _
        // Predicated region
        $region29: #{tpu_custom_call.1} parent=11 // pred_check
          %p261 = pneg %p153
        $region30: #{tpu_custom_call.1} parent=11 // pred_check_branch
          %263 = sbr.rel (%p261) target = $region32
        $region31: #{tpu_custom_call.1} parent=11 // pred_region
          %s265 = ssub.s32 16, 16
          %266 = vsyncadd [#allocation14], %s265
          %s268 = sshll.u32 [#allocation13], 4
          %s269 = int_to_ptr.vmem [resolvable:$true] %s268
          %271 = dma.hbm_to_vmem [thread:$0]  %s5, 16, %s269, [#allocation14]
        $region32: #{tpu_custom_call.1} parent=11 // pred_fallthru
          _
        // Predicated region
        $region33: #{tpu_custom_call.1} parent=11 // pred_check
          %p272 = pneg %p174
        $region34: #{tpu_custom_call.1} parent=11 // pred_check_branch
          %274 = sbr.rel (%p272) target = $region36
        $region35: #{tpu_custom_call.1} parent=11 // pred_region
          %s276 = ssub.s32 320, 320
          %277 = vsyncadd [#allocation14], %s276
          %s278 = sshll.u32 [#allocation15], 4
          %s279 = int_to_ptr.vmem [resolvable:$true] %s278
          %284 = dma.hbm_to_vmem [thread:$0]  %s6, 320, %s279, [#allocation14], 64, 64, 4
        $region36: #{tpu_custom_call.1} parent=11 // pred_fallthru
          _
      $region12: #{tpu_custom_call.1} parent=5 // pred_fallthru
        _
      %p285 = scmp.lt.s32.totalorder %s22, 2
      // Predicated region
      $region37: #{tpu_custom_call.1} parent=5 // pred_check
        %p286 = pneg %p285
      $region38: #{tpu_custom_call.1} parent=5 // pred_check_branch
        %288 = sbr.rel (%p286) target = $region40
      $region39: #{tpu_custom_call.1} parent=5 // pred_region
        // Predicated region
        $region41: #{tpu_custom_call.1} parent=39 // pred_check
          %p289 = pneg %p42
        $region42: #{tpu_custom_call.1} parent=39 // pred_check_branch
          %291 = sbr.rel (%p289) target = $region44
        $region43: #{tpu_custom_call.1} parent=39 // pred_region
          %s292 = sand.u32 %s32, 1
          %s293 = scalar_lea.sflag [#allocation5], %s292
          %s294 = sand.u32 %s32, 1
          %s295 = smul.addr %s294, 256
          %s296 = scalar_lea.vmem [#allocation4], %s295
          %s298 = ssub.s32 4096, 4096
          %299 = vsyncadd %s293, %s298
          %s300 = smul.addr %s22, 32
          %s301 = smul.addr %s300, 128
          %s302 = scalar_lea.hbm %s0, %s301
          %s303 = sshll.u32 %s296, 4
          %s304 = int_to_ptr.vmem [resolvable:$true] %s303
          %309 = dma.hbm_to_vmem [thread:$0]  %s302, 4096, %s304, %s293, 128, 128, 8
        $region44: #{tpu_custom_call.1} parent=39 // pred_fallthru
          _
      $region40: #{tpu_custom_call.1} parent=5 // pred_fallthru
        _
      %p310 = scmp.le.s32.totalorder 1, %s22
      %p311 = scmp.lt.s32.totalorder %s22, 3
      %p312 = pnand %p310, %p311
      %p313 = pneg %p312
      // Predicated region
      $region45: #{tpu_custom_call.1} parent=5 // pred_check
        _
      $region46: #{tpu_custom_call.1} parent=5 // pred_check_branch
        %315 = sbr.rel (%p312) target = $region48
      $region47: #{tpu_custom_call.1} parent=5 // pred_region
        %s316 = ssub.s32 %s22, 1
        %s317 = sand.u32 %s35, 1
        %s318 = scalar_lea.sflag [#allocation5], %s317
        %s319 = sand.u32 %s35, 1
        %s320 = smul.addr %s319, 256
        %s321 = scalar_lea.vmem [#allocation4], %s320
        // Predicated region
        $region49: #{tpu_custom_call.1} parent=47 // pred_check
          %p322 = pneg %p48
        $region50: #{tpu_custom_call.1} parent=47 // pred_check_branch
          %324 = sbr.rel (%p322) target = $region52
        $region51: #{tpu_custom_call.1} parent=47 // pred_region
          %325 = dma.done %s318, 4096
        $region52: #{tpu_custom_call.1} parent=47 // pred_fallthru
          _
        // Predicated region
        $region53: #{tpu_custom_call.1} parent=47 // pred_check
          %p326 = pneg %p69
        $region54: #{tpu_custom_call.1} parent=47 // pred_check_branch
          %328 = sbr.rel (%p326) target = $region56
        $region55: #{tpu_custom_call.1} parent=47 // pred_region
          %329 = dma.done [#allocation8], 16
        $region56: #{tpu_custom_call.1} parent=47 // pred_fallthru
          _
        // Predicated region
        $region57: #{tpu_custom_call.1} parent=47 // pred_check
          %p330 = pneg %p90
        $region58: #{tpu_custom_call.1} parent=47 // pred_check_branch
          %332 = sbr.rel (%p330) target = $region60
        $region59: #{tpu_custom_call.1} parent=47 // pred_region
          %333 = dma.done [#allocation8], 16
        $region60: #{tpu_custom_call.1} parent=47 // pred_fallthru
          _
        // Predicated region
        $region61: #{tpu_custom_call.1} parent=47 // pred_check
          %p334 = pneg %p111
        $region62: #{tpu_custom_call.1} parent=47 // pred_check_branch
          %336 = sbr.rel (%p334) target = $region64
        $region63: #{tpu_custom_call.1} parent=47 // pred_region
          %337 = dma.done [#allocation11], 320
        $region64: #{tpu_custom_call.1} parent=47 // pred_fallthru
          _
        // Predicated region
        $region65: #{tpu_custom_call.1} parent=47 // pred_check
          %p338 = pneg %p132
        $region66: #{tpu_custom_call.1} parent=47 // pred_check_branch
          %340 = sbr.rel (%p338) target = $region68
        $region67: #{tpu_custom_call.1} parent=47 // pred_region
          %341 = dma.done [#allocation11], 16
        $region68: #{tpu_custom_call.1} parent=47 // pred_fallthru
          _
        // Predicated region
        $region69: #{tpu_custom_call.1} parent=47 // pred_check
          %p342 = pneg %p153
        $region70: #{tpu_custom_call.1} parent=47 // pred_check_branch
          %344 = sbr.rel (%p342) target = $region72
        $region71: #{tpu_custom_call.1} parent=47 // pred_region
          %345 = dma.done [#allocation14], 16
        $region72: #{tpu_custom_call.1} parent=47 // pred_fallthru
          _
        // Predicated region
        $region73: #{tpu_custom_call.1} parent=47 // pred_check
          %p346 = pneg %p174
        $region74: #{tpu_custom_call.1} parent=47 // pred_check_branch
          %348 = sbr.rel (%p346) target = $region76
        $region75: #{tpu_custom_call.1} parent=47 // pred_region
          %349 = dma.done [#allocation14], 320
        $region76: #{tpu_custom_call.1} parent=47 // pred_fallthru
          _
        %s350 = sand.u32 %s35, 1
        %s351 = scalar_lea.sflag [#allocation5], %s350
        %s352 = sand.u32 %s35, 1
        %s353 = smul.addr %s352, 256
        %s354 = scalar_lea.vmem [#allocation4], %s353
        %p355 = pneg %p48
        %p356 = pneg %p45
        %p357 = pneg %p69
        %p358 = pneg %p66
        %p359 = pneg %p90
        %p360 = pneg %p87
        %p361 = pneg %p111
        %p362 = pneg %p108
        %p363 = pneg %p132
        %p364 = pneg %p129
        %p365 = pneg %p153
        %p366 = pneg %p150
        %p367 = pneg %p174
        %p368 = pneg %p171
        %p369 = pneg %p200
        %p370 = pneg %p197
        %s371 = sand.u32 %s187, 1
        %s372 = scalar_lea.sflag [#allocation6], %s371
        %s373 = sand.u32 %s187, 1
        %s374 = smul.addr %s373, 256
        %s375 = scalar_lea.vmem [#allocation16], %s374
        %vm377 = vcmask 27648
        %378 = vst.msk [vmem:[#allocation2] sm:$0xf] %vm377, 0
        %379 = vst.msk [vmem:[#allocation2 + $0x4] sm:$0xf] %vm377, 0
        %vm380 = vcmask 24576
        %381 = vst.msk [vmem:[#allocation2 + $0x8] sm:$0x1] %vm380, 0
        %s382 = scalar_lea.vmem [#allocation2], 204
        %383 = vst.msk [vmem:[%s382] sm:$0xf] %vm377, 0
        %384 = vst.msk [vmem:[%s382 + $0x4] sm:$0xf] %vm377, 0
        %385 = vst.msk [vmem:[%s382 + $0x8] sm:$0x1] %vm380, 0
        %vm386 = vcmask 24576
        %vm387 = vsmask.f32 256
        %vm388 = vmand %vm386, %vm387
        %v389 = vld [vmem:[#allocation2] sm:$0x1]
        %v390 = vsel %vm388, 0, %v389
        %391 = vst [vmem:[#allocation2] sm:$0x1] %v390
        %v392 = vld [vmem:[#allocation2 + $0xc] sm:$0x1]
        %v393 = vsel %vm388, 0, %v392
        %394 = vst [vmem:[#allocation2 + $0xc] sm:$0x1] %v393
        %v395 = vld [vmem:[#allocation2 + $0x18] sm:$0x1]
        %v396 = vsel %vm388, 0, %v395
        %397 = vst [vmem:[#allocation2 + $0x18] sm:$0x1] %v396
        %v398 = vld [vmem:[#allocation2 + $0x24] sm:$0x1]
        %v399 = vsel %vm388, 0, %v398
        %400 = vst [vmem:[#allocation2 + $0x24] sm:$0x1] %v399
        %v401 = vld [vmem:[#allocation2 + $0x30] sm:$0x1]
        %v402 = vsel %vm388, 0, %v401
        %403 = vst [vmem:[#allocation2 + $0x30] sm:$0x1] %v402
        %v404 = vld [vmem:[#allocation2 + $0x3c] sm:$0x1]
        %v405 = vsel %vm388, 0, %v404
        %406 = vst [vmem:[#allocation2 + $0x3c] sm:$0x1] %v405
        %v407 = vld [vmem:[#allocation2 + $0x48] sm:$0x1]
        %v408 = vsel %vm388, 0, %v407
        %409 = vst [vmem:[#allocation2 + $0x48] sm:$0x1] %v408
        %v410 = vld [vmem:[#allocation2 + $0x54] sm:$0x1]
        %v411 = vsel %vm388, 0, %v410
        %412 = vst [vmem:[#allocation2 + $0x54] sm:$0x1] %v411
        %v413 = vld [vmem:[#allocation2 + $0x60] sm:$0x1]
        %v414 = vsel %vm388, 0, %v413
        %415 = vst [vmem:[#allocation2 + $0x60] sm:$0x1] %v414
        %v416 = vld [vmem:[#allocation2 + $0x6c] sm:$0x1]
        %v417 = vsel %vm388, 0, %v416
        %418 = vst [vmem:[#allocation2 + $0x6c] sm:$0x1] %v417
        %v419 = vld [vmem:[#allocation2 + $0x78] sm:$0x1]
        %v420 = vsel %vm388, 0, %v419
        %421 = vst [vmem:[#allocation2 + $0x78] sm:$0x1] %v420
        %v422 = vld [vmem:[#allocation2 + $0x84] sm:$0x1]
        %v423 = vsel %vm388, 0, %v422
        %424 = vst [vmem:[#allocation2 + $0x84] sm:$0x1] %v423
        %v425 = vld [vmem:[#allocation2 + $0x90] sm:$0x1]
        %v426 = vsel %vm388, 0, %v425
        %427 = vst [vmem:[#allocation2 + $0x90] sm:$0x1] %v426
        %v428 = vld [vmem:[#allocation2 + $0x9c] sm:$0x1]
        %v429 = vsel %vm388, 0, %v428
        %430 = vst [vmem:[#allocation2 + $0x9c] sm:$0x1] %v429
        %v431 = vld [vmem:[#allocation2 + $0xa8] sm:$0x1]
        %v432 = vsel %vm388, 0, %v431
        %433 = vst [vmem:[#allocation2 + $0xa8] sm:$0x1] %v432
        %v434 = vld [vmem:[#allocation2 + $0xb4] sm:$0x1]
        %v435 = vsel %vm388, 0, %v434
        %436 = vst [vmem:[#allocation2 + $0xb4] sm:$0x1] %v435
        %v437 = vld [vmem:[#allocation2 + $0xc0] sm:$0x1]
        %v438 = vsel %vm388, 0, %v437
        %439 = vst [vmem:[#allocation2 + $0xc0] sm:$0x1] %v438
        %v440 = vld [vmem:[#allocation2 + $0xcc] sm:$0x1]
        %v441 = vsel %vm388, 0, %v440
        %442 = vst [vmem:[#allocation2 + $0xcc] sm:$0x1] %v441
        %vm443 = vsmask.f32 7938
        %vm444 = vmand %vm386, %vm443
        %v445 = vld [vmem:[#allocation2 + $0x8] sm:$0x1]
        %v446 = vsel %vm444, 0, %v445
        %447 = vst [vmem:[#allocation2 + $0x8] sm:$0x1] %v446
        %v448 = vld [vmem:[#allocation2 + $0x14] sm:$0x1]
        %v449 = vsel %vm444, 0, %v448
        %450 = vst [vmem:[#allocation2 + $0x14] sm:$0x1] %v449
        %v451 = vld [vmem:[#allocation2 + $0x20] sm:$0x1]
        %v452 = vsel %vm444, 0, %v451
        %453 = vst [vmem:[#allocation2 + $0x20] sm:$0x1] %v452
        %v454 = vld [vmem:[#allocation2 + $0x2c] sm:$0x1]
        %v455 = vsel %vm444, 0, %v454
        %456 = vst [vmem:[#allocation2 + $0x2c] sm:$0x1] %v455
        %v457 = vld [vmem:[#allocation2 + $0x38] sm:$0x1]
        %v458 = vsel %vm444, 0, %v457
        %459 = vst [vmem:[#allocation2 + $0x38] sm:$0x1] %v458
        %v460 = vld [vmem:[#allocation2 + $0x44] sm:$0x1]
        %v461 = vsel %vm444, 0, %v460
        %462 = vst [vmem:[#allocation2 + $0x44] sm:$0x1] %v461
        %v463 = vld [vmem:[#allocation2 + $0x50] sm:$0x1]
        %v464 = vsel %vm444, 0, %v463
        %465 = vst [vmem:[#allocation2 + $0x50] sm:$0x1] %v464
        %v466 = vld [vmem:[#allocation2 + $0x5c] sm:$0x1]
        %v467 = vsel %vm444, 0, %v466
        %468 = vst [vmem:[#allocation2 + $0x5c] sm:$0x1] %v467
        %v469 = vld [vmem:[#allocation2 + $0x68] sm:$0x1]
        %v470 = vsel %vm444, 0, %v469
        %471 = vst [vmem:[#allocation2 + $0x68] sm:$0x1] %v470
        %v472 = vld [vmem:[#allocation2 + $0x74] sm:$0x1]
        %v473 = vsel %vm444, 0, %v472
        %474 = vst [vmem:[#allocation2 + $0x74] sm:$0x1] %v473
        %v475 = vld [vmem:[#allocation2 + $0x80] sm:$0x1]
        %v476 = vsel %vm444, 0, %v475
        %477 = vst [vmem:[#allocation2 + $0x80] sm:$0x1] %v476
        %v478 = vld [vmem:[#allocation2 + $0x8c] sm:$0x1]
        %v479 = vsel %vm444, 0, %v478
        %480 = vst [vmem:[#allocation2 + $0x8c] sm:$0x1] %v479
        %v481 = vld [vmem:[#allocation2 + $0x98] sm:$0x1]
        %v482 = vsel %vm444, 0, %v481
        %483 = vst [vmem:[#allocation2 + $0x98] sm:$0x1] %v482
        %v484 = vld [vmem:[#allocation2 + $0xa4] sm:$0x1]
        %v485 = vsel %vm444, 0, %v484
        %486 = vst [vmem:[#allocation2 + $0xa4] sm:$0x1] %v485
        %v487 = vld [vmem:[#allocation2 + $0xb0] sm:$0x1]
        %v488 = vsel %vm444, 0, %v487
        %489 = vst [vmem:[#allocation2 + $0xb0] sm:$0x1] %v488
        %v490 = vld [vmem:[#allocation2 + $0xbc] sm:$0x1]
        %v491 = vsel %vm444, 0, %v490
        %492 = vst [vmem:[#allocation2 + $0xbc] sm:$0x1] %v491
        %v493 = vld [vmem:[#allocation2 + $0xc8] sm:$0x1]
        %v494 = vsel %vm444, 0, %v493
        %495 = vst [vmem:[#allocation2 + $0xc8] sm:$0x1] %v494
        %v496 = vld [vmem:[#allocation2 + $0xd4] sm:$0x1]
        %v497 = vsel %vm444, 0, %v496
        %498 = vst [vmem:[#allocation2 + $0xd4] sm:$0x1] %v497
        %499 = vst.msk [vmem:[#allocation3] sm:$0xf] %vm377, 0
        %500 = vst.msk [vmem:[#allocation3 + $0x4] sm:$0xf] %vm377, 0
        %501 = vst.msk [vmem:[#allocation3 + $0x8] sm:$0x1] %vm380, 0
        %s502 = scalar_lea.vmem [#allocation3], 204
        %503 = vst.msk [vmem:[%s502] sm:$0xf] %vm377, 0
        %504 = vst.msk [vmem:[%s502 + $0x4] sm:$0xf] %vm377, 0
        %505 = vst.msk [vmem:[%s502 + $0x8] sm:$0x1] %vm380, 0
        %v506 = vld [vmem:[#allocation3] sm:$0x1]
        %v507 = vsel %vm388, 0, %v506
        %508 = vst [vmem:[#allocation3] sm:$0x1] %v507
        %v509 = vld [vmem:[#allocation3 + $0xc] sm:$0x1]
        %v510 = vsel %vm388, 0, %v509
        %511 = vst [vmem:[#allocation3 + $0xc] sm:$0x1] %v510
        %v512 = vld [vmem:[#allocation3 + $0x18] sm:$0x1]
        %v513 = vsel %vm388, 0, %v512
        %514 = vst [vmem:[#allocation3 + $0x18] sm:$0x1] %v513
        %v515 = vld [vmem:[#allocation3 + $0x24] sm:$0x1]
        %v516 = vsel %vm388, 0, %v515
        %517 = vst [vmem:[#allocation3 + $0x24] sm:$0x1] %v516
        %v518 = vld [vmem:[#allocation3 + $0x30] sm:$0x1]
        %v519 = vsel %vm388, 0, %v518
        %520 = vst [vmem:[#allocation3 + $0x30] sm:$0x1] %v519
        %v521 = vld [vmem:[#allocation3 + $0x3c] sm:$0x1]
        %v522 = vsel %vm388, 0, %v521
        %523 = vst [vmem:[#allocation3 + $0x3c] sm:$0x1] %v522
        %v524 = vld [vmem:[#allocation3 + $0x48] sm:$0x1]
        %v525 = vsel %vm388, 0, %v524
        %526 = vst [vmem:[#allocation3 + $0x48] sm:$0x1] %v525
        %v527 = vld [vmem:[#allocation3 + $0x54] sm:$0x1]
        %v528 = vsel %vm388, 0, %v527
        %529 = vst [vmem:[#allocation3 + $0x54] sm:$0x1] %v528
        %v530 = vld [vmem:[#allocation3 + $0x60] sm:$0x1]
        %v531 = vsel %vm388, 0, %v530
        %532 = vst [vmem:[#allocation3 + $0x60] sm:$0x1] %v531
        %v533 = vld [vmem:[#allocation3 + $0x6c] sm:$0x1]
        %v534 = vsel %vm388, 0, %v533
        %535 = vst [vmem:[#allocation3 + $0x6c] sm:$0x1] %v534
        %v536 = vld [vmem:[#allocation3 + $0x78] sm:$0x1]
        %v537 = vsel %vm388, 0, %v536
        %538 = vst [vmem:[#allocation3 + $0x78] sm:$0x1] %v537
        %v539 = vld [vmem:[#allocation3 + $0x84] sm:$0x1]
        %v540 = vsel %vm388, 0, %v539
        %541 = vst [vmem:[#allocation3 + $0x84] sm:$0x1] %v540
        %v542 = vld [vmem:[#allocation3 + $0x90] sm:$0x1]
        %v543 = vsel %vm388, 0, %v542
        %544 = vst [vmem:[#allocation3 + $0x90] sm:$0x1] %v543
        %v545 = vld [vmem:[#allocation3 + $0x9c] sm:$0x1]
        %v546 = vsel %vm388, 0, %v545
        %547 = vst [vmem:[#allocation3 + $0x9c] sm:$0x1] %v546
        %v548 = vld [vmem:[#allocation3 + $0xa8] sm:$0x1]
        %v549 = vsel %vm388, 0, %v548
        %550 = vst [vmem:[#allocation3 + $0xa8] sm:$0x1] %v549
        %v551 = vld [vmem:[#allocation3 + $0xb4] sm:$0x1]
        %v552 = vsel %vm388, 0, %v551
        %553 = vst [vmem:[#allocation3 + $0xb4] sm:$0x1] %v552
        %v554 = vld [vmem:[#allocation3 + $0xc0] sm:$0x1]
        %v555 = vsel %vm388, 0, %v554
        %556 = vst [vmem:[#allocation3 + $0xc0] sm:$0x1] %v555
        %v557 = vld [vmem:[#allocation3 + $0xcc] sm:$0x1]
        %v558 = vsel %vm388, 0, %v557
        %559 = vst [vmem:[#allocation3 + $0xcc] sm:$0x1] %v558
        %v560 = vld [vmem:[#allocation3 + $0x8] sm:$0x1]
        %v561 = vsel %vm444, 0, %v560
        %562 = vst [vmem:[#allocation3 + $0x8] sm:$0x1] %v561
        %v563 = vld [vmem:[#allocation3 + $0x14] sm:$0x1]
        %v564 = vsel %vm444, 0, %v563
        %565 = vst [vmem:[#allocation3 + $0x14] sm:$0x1] %v564
        %v566 = vld [vmem:[#allocation3 + $0x20] sm:$0x1]
        %v567 = vsel %vm444, 0, %v566
        %568 = vst [vmem:[#allocation3 + $0x20] sm:$0x1] %v567
        %v569 = vld [vmem:[#allocation3 + $0x2c] sm:$0x1]
        %v570 = vsel %vm444, 0, %v569
        %571 = vst [vmem:[#allocation3 + $0x2c] sm:$0x1] %v570
        %v572 = vld [vmem:[#allocation3 + $0x38] sm:$0x1]
        %v573 = vsel %vm444, 0, %v572
        %574 = vst [vmem:[#allocation3 + $0x38] sm:$0x1] %v573
        %v575 = vld [vmem:[#allocation3 + $0x44] sm:$0x1]
        %v576 = vsel %vm444, 0, %v575
        %577 = vst [vmem:[#allocation3 + $0x44] sm:$0x1] %v576
        %v578 = vld [vmem:[#allocation3 + $0x50] sm:$0x1]
        %v579 = vsel %vm444, 0, %v578
        %580 = vst [vmem:[#allocation3 + $0x50] sm:$0x1] %v579
        %v581 = vld [vmem:[#allocation3 + $0x5c] sm:$0x1]
        %v582 = vsel %vm444, 0, %v581
        %583 = vst [vmem:[#allocation3 + $0x5c] sm:$0x1] %v582
        %v584 = vld [vmem:[#allocation3 + $0x68] sm:$0x1]
        %v585 = vsel %vm444, 0, %v584
        %586 = vst [vmem:[#allocation3 + $0x68] sm:$0x1] %v585
        %v587 = vld [vmem:[#allocation3 + $0x74] sm:$0x1]
        %v588 = vsel %vm444, 0, %v587
        %589 = vst [vmem:[#allocation3 + $0x74] sm:$0x1] %v588
        %v590 = vld [vmem:[#allocation3 + $0x80] sm:$0x1]
        %v591 = vsel %vm444, 0, %v590
        %592 = vst [vmem:[#allocation3 + $0x80] sm:$0x1] %v591
        %v593 = vld [vmem:[#allocation3 + $0x8c] sm:$0x1]
        %v594 = vsel %vm444, 0, %v593
        %595 = vst [vmem:[#allocation3 + $0x8c] sm:$0x1] %v594
        %v596 = vld [vmem:[#allocation3 + $0x98] sm:$0x1]
        %v597 = vsel %vm444, 0, %v596
        %598 = vst [vmem:[#allocation3 + $0x98] sm:$0x1] %v597
        %v599 = vld [vmem:[#allocation3 + $0xa4] sm:$0x1]
        %v600 = vsel %vm444, 0, %v599
        %601 = vst [vmem:[#allocation3 + $0xa4] sm:$0x1] %v600
        %v602 = vld [vmem:[#allocation3 + $0xb0] sm:$0x1]
        %v603 = vsel %vm444, 0, %v602
        %604 = vst [vmem:[#allocation3 + $0xb0] sm:$0x1] %v603
        %v605 = vld [vmem:[#allocation3 + $0xbc] sm:$0x1]
        %v606 = vsel %vm444, 0, %v605
        %607 = vst [vmem:[#allocation3 + $0xbc] sm:$0x1] %v606
        %v608 = vld [vmem:[#allocation3 + $0xc8] sm:$0x1]
        %v609 = vsel %vm444, 0, %v608
        %610 = vst [vmem:[#allocation3 + $0xc8] sm:$0x1] %v609
        %v611 = vld [vmem:[#allocation3 + $0xd4] sm:$0x1]
        %v612 = vsel %vm444, 0, %v611
        %613 = vst [vmem:[#allocation3 + $0xd4] sm:$0x1] %v612
        %v614 = vld [vmem:[%s321] sm:$0xff]
        %v615 = vld [vmem:[%s321 + $0x8] sm:$0xff]
        %v616 = vld [vmem:[%s321 + $0x10] sm:$0xff]
        %v617 = vld [vmem:[%s321 + $0x18] sm:$0xff]
        %v618 = vld [vmem:[%s321 + $0x20] sm:$0xff]
        %v619 = vld [vmem:[%s321 + $0x28] sm:$0xff]
        %v620 = vld [vmem:[%s321 + $0x30] sm:$0xff]
        %v621 = vld [vmem:[%s321 + $0x38] sm:$0xff]
        %v622 = vld [vmem:[%s321 + $0x40] sm:$0xff]
        %v623 = vld [vmem:[%s321 + $0x48] sm:$0xff]
        %v624 = vld [vmem:[%s321 + $0x50] sm:$0xff]
        %v625 = vld [vmem:[%s321 + $0x58] sm:$0xff]
        %v626 = vld [vmem:[%s321 + $0x60] sm:$0xff]
        %v627 = vld [vmem:[%s321 + $0x68] sm:$0xff]
        %v628 = vld [vmem:[%s321 + $0x70] sm:$0xff]
        %v629 = vld [vmem:[%s321 + $0x78] sm:$0xff]
        %v630 = vld [vmem:[%s321 + $0x80] sm:$0xff]
        %v631 = vld [vmem:[%s321 + $0x88] sm:$0xff]
        %v632 = vld [vmem:[%s321 + $0x90] sm:$0xff]
        %v633 = vld [vmem:[%s321 + $0x98] sm:$0xff]
        %v634 = vld [vmem:[%s321 + $0xa0] sm:$0xff]
        %v635 = vld [vmem:[%s321 + $0xa8] sm:$0xff]
        %v636 = vld [vmem:[%s321 + $0xb0] sm:$0xff]
        %v637 = vld [vmem:[%s321 + $0xb8] sm:$0xff]
        %v638 = vld [vmem:[%s321 + $0xc0] sm:$0xff]
        %v639 = vld [vmem:[%s321 + $0xc8] sm:$0xff]
        %v640 = vld [vmem:[%s321 + $0xd0] sm:$0xff]
        %v641 = vld [vmem:[%s321 + $0xd8] sm:$0xff]
        %v642 = vld [vmem:[%s321 + $0xe0] sm:$0xff]
        %v643 = vld [vmem:[%s321 + $0xe8] sm:$0xff]
        %v644 = vld [vmem:[%s321 + $0xf0] sm:$0xff]
        %v645 = vld [vmem:[%s321 + $0xf8] sm:$0xff]
        %v646 = vld [vmem:[#allocation7] sm:$0x1]
        %v648 = vlaneseq
        %v649 = vshrl.u32 %v648, 7
        %v650 = vsub.s32 0, %v649
        %v651 = vrot.slane %v646, %v650
        %v653 = vmul.f32 %v614, %v651
        %v654 = vmul.f32 %v615, %v651
        %v655 = vmul.f32 %v616, %v651
        %v656 = vmul.f32 %v617, %v651
        %v657 = vmul.f32 %v618, %v651
        %v658 = vmul.f32 %v619, %v651
        %v659 = vmul.f32 %v620, %v651
        %v660 = vmul.f32 %v621, %v651
        %v661 = vmul.f32 %v622, %v651
        %v662 = vmul.f32 %v623, %v651
        %v663 = vmul.f32 %v624, %v651
        %v664 = vmul.f32 %v625, %v651
        %v665 = vmul.f32 %v626, %v651
        %v666 = vmul.f32 %v627, %v651
        %v667 = vmul.f32 %v628, %v651
        %v668 = vmul.f32 %v629, %v651
        %v669 = vmul.f32 %v630, %v651
        %v670 = vmul.f32 %v631, %v651
        %v671 = vmul.f32 %v632, %v651
        %v672 = vmul.f32 %v633, %v651
        %v673 = vmul.f32 %v634, %v651
        %v674 = vmul.f32 %v635, %v651
        %v675 = vmul.f32 %v636, %v651
        %v676 = vmul.f32 %v637, %v651
        %v677 = vmul.f32 %v638, %v651
        %v678 = vmul.f32 %v639, %v651
        %v679 = vmul.f32 %v640, %v651
        %v680 = vmul.f32 %v641, %v651
        %v681 = vmul.f32 %v642, %v651
        %v682 = vmul.f32 %v643, %v651
        %v683 = vmul.f32 %v644, %v651
        %v684 = vmul.f32 %v645, %v651
        %v685 = vld [vmem:[#allocation9] sm:$0x1]
        %v687 = vlaneseq
        %v688 = vshrl.u32 %v687, 7
        %v689 = vsub.s32 0, %v688
        %v690 = vrot.slane %v685, %v689
        %v692 = vadd.f32 %v653, %v690
        %v693 = vadd.f32 %v654, %v690
        %v694 = vadd.f32 %v655, %v690
        %v695 = vadd.f32 %v656, %v690
        %v696 = vadd.f32 %v657, %v690
        %v697 = vadd.f32 %v658, %v690
        %v698 = vadd.f32 %v659, %v690
        %v699 = vadd.f32 %v660, %v690
        %v700 = vadd.f32 %v661, %v690
        %v701 = vadd.f32 %v662, %v690
        %v702 = vadd.f32 %v663, %v690
        %v703 = vadd.f32 %v664, %v690
        %v704 = vadd.f32 %v665, %v690
        %v705 = vadd.f32 %v666, %v690
        %v706 = vadd.f32 %v667, %v690
        %v707 = vadd.f32 %v668, %v690
        %v708 = vadd.f32 %v669, %v690
        %v709 = vadd.f32 %v670, %v690
        %v710 = vadd.f32 %v671, %v690
        %v711 = vadd.f32 %v672, %v690
        %v712 = vadd.f32 %v673, %v690
        %v713 = vadd.f32 %v674, %v690
        %v714 = vadd.f32 %v675, %v690
        %v715 = vadd.f32 %v676, %v690
        %v716 = vadd.f32 %v677, %v690
        %v717 = vadd.f32 %v678, %v690
        %v718 = vadd.f32 %v679, %v690
        %v719 = vadd.f32 %v680, %v690
        %v720 = vadd.f32 %v681, %v690
        %v721 = vadd.f32 %v682, %v690
        %v722 = vadd.f32 %v683, %v690
        %v723 = vadd.f32 %v684, %v690
        %v724 = vmax.f32 %v692, 0.0
        %v725 = vmax.f32 %v693, 0.0
        %v726 = vmax.f32 %v694, 0.0
        %v727 = vmax.f32 %v695, 0.0
        %v728 = vmax.f32 %v696, 0.0
        %v729 = vmax.f32 %v697, 0.0
        %v730 = vmax.f32 %v698, 0.0
        %v731 = vmax.f32 %v699, 0.0
        %v732 = vmax.f32 %v700, 0.0
        %v733 = vmax.f32 %v701, 0.0
        %v734 = vmax.f32 %v702, 0.0
        %v735 = vmax.f32 %v703, 0.0
        %v736 = vmax.f32 %v704, 0.0
        %v737 = vmax.f32 %v705, 0.0
        %v738 = vmax.f32 %v706, 0.0
        %v739 = vmax.f32 %v707, 0.0
        %v740 = vmax.f32 %v708, 0.0
        %v741 = vmax.f32 %v709, 0.0
        %v742 = vmax.f32 %v710, 0.0
        %v743 = vmax.f32 %v711, 0.0
        %v744 = vmax.f32 %v712, 0.0
        %v745 = vmax.f32 %v713, 0.0
        %v746 = vmax.f32 %v714, 0.0
        %v747 = vmax.f32 %v715, 0.0
        %v748 = vmax.f32 %v716, 0.0
        %v749 = vmax.f32 %v717, 0.0
        %v750 = vmax.f32 %v718, 0.0
        %v751 = vmax.f32 %v719, 0.0
        %v752 = vmax.f32 %v720, 0.0
        %v753 = vmax.f32 %v721, 0.0
        %v754 = vmax.f32 %v722, 0.0
        %v755 = vmax.f32 %v723, 0.0
        %v756 = vpack.c.bf16 %v725, %v724
        %v757 = vpack.c.bf16 %v727, %v726
        %v758 = vpack.c.bf16 %v729, %v728
        %v759 = vpack.c.bf16 %v731, %v730
        %v760 = vpack.c.bf16 %v733, %v732
        %v761 = vpack.c.bf16 %v735, %v734
        %v762 = vpack.c.bf16 %v737, %v736
        %v763 = vpack.c.bf16 %v739, %v738
        %v764 = vpack.c.bf16 %v741, %v740
        %v765 = vpack.c.bf16 %v743, %v742
        %v766 = vpack.c.bf16 %v745, %v744
        %v767 = vpack.c.bf16 %v747, %v746
        %v768 = vpack.c.bf16 %v749, %v748
        %v769 = vpack.c.bf16 %v751, %v750
        %v770 = vpack.c.bf16 %v753, %v752
        %v771 = vpack.c.bf16 %v755, %v754
        %v788 = vunpack.c.l.b16 %v756
        %v789 = vunpack.c.h.b16 %v756
        %v790 = vunpack.c.l.b16 %v757
        %v791 = vunpack.c.h.b16 %v757
        %v792 = vunpack.c.l.b16 %v758
        %v793 = vunpack.c.h.b16 %v758
        %v794 = vunpack.c.l.b16 %v759
        %v795 = vunpack.c.h.b16 %v759
        %v796 = vunpack.c.l.b16 %v760
        %v797 = vunpack.c.h.b16 %v760
        %v798 = vunpack.c.l.b16 %v761
        %v799 = vunpack.c.h.b16 %v761
        %v800 = vunpack.c.l.b16 %v762
        %v801 = vunpack.c.h.b16 %v762
        %v802 = vunpack.c.l.b16 %v763
        %v803 = vunpack.c.h.b16 %v763
        %v804 = vunpack.c.l.b16 %v764
        %v805 = vunpack.c.h.b16 %v764
        %v806 = vunpack.c.l.b16 %v765
        %v807 = vunpack.c.h.b16 %v765
        %v808 = vunpack.c.l.b16 %v766
        %v809 = vunpack.c.h.b16 %v766
        %v810 = vunpack.c.l.b16 %v767
        %v811 = vunpack.c.h.b16 %v767
        %v812 = vunpack.c.l.b16 %v768
        %v813 = vunpack.c.h.b16 %v768
        %v814 = vunpack.c.l.b16 %v769
        %v815 = vunpack.c.h.b16 %v769
        %v816 = vunpack.c.l.b16 %v770
        %v817 = vunpack.c.h.b16 %v770
        %v818 = vunpack.c.l.b16 %v771
        %v819 = vunpack.c.h.b16 %v771
        %v820 = vpack.c.b16 %v788, %v788
        %v821 = vpack.c.b16 %v789, %v789
        %v822 = vpack.c.b16 %v790, %v790
        %v823 = vpack.c.b16 %v791, %v791
        %v824 = vpack.c.b16 %v792, %v792
        %v825 = vpack.c.b16 %v793, %v793
        %v826 = vpack.c.b16 %v794, %v794
        %v827 = vpack.c.b16 %v795, %v795
        %v828 = vpack.c.b16 %v796, %v796
        %v829 = vpack.c.b16 %v797, %v797
        %v830 = vpack.c.b16 %v798, %v798
        %v831 = vpack.c.b16 %v799, %v799
        %v832 = vpack.c.b16 %v800, %v800
        %v833 = vpack.c.b16 %v801, %v801
        %v834 = vpack.c.b16 %v802, %v802
        %v835 = vpack.c.b16 %v803, %v803
        %v836 = vpack.c.b16 %v804, %v804
        %v837 = vpack.c.b16 %v805, %v805
        %v838 = vpack.c.b16 %v806, %v806
        %v839 = vpack.c.b16 %v807, %v807
        %v840 = vpack.c.b16 %v808, %v808
        %v841 = vpack.c.b16 %v809, %v809
        %v842 = vpack.c.b16 %v810, %v810
        %v843 = vpack.c.b16 %v811, %v811
        %v844 = vpack.c.b16 %v812, %v812
        %v845 = vpack.c.b16 %v813, %v813
        %v846 = vpack.c.b16 %v814, %v814
        %v847 = vpack.c.b16 %v815, %v815
        %v848 = vpack.c.b16 %v816, %v816
        %v849 = vpack.c.b16 %v817, %v817
        %v850 = vpack.c.b16 %v818, %v818
        %v851 = vpack.c.b16 %v819, %v819
        %vm852 = vsmask.f32 4368
        %vm853 = vmor %vm387, %vm852
        %v855 = vshrl.u32 %v820, 16
        %v857 = vrot.slane %v855, 7
        %v858 = vshll.u32 %v820, 16
        %v860 = vor.u32 %v857, %v858
        %v861 = vrot.slane %v857, 4
        %v863 = vshrl.u32 %v821, 16
        %v865 = vrot.slane %v863, 7
        %v866 = vshll.u32 %v821, 16
        %v868 = vor.u32 %v865, %v866
        %v869 = vsel %vm853, %v861, %v868
        %v870 = vrot.slane %v865, 4
        %v872 = vshrl.u32 %v822, 16
        %v874 = vrot.slane %v872, 7
        %v875 = vshll.u32 %v822, 16
        %v877 = vor.u32 %v874, %v875
        %v878 = vrot.slane %v874, 4
        %v880 = vshrl.u32 %v823, 16
        %v882 = vrot.slane %v880, 7
        %v883 = vshll.u32 %v823, 16
        %v885 = vor.u32 %v882, %v883
        %v886 = vsel %vm853, %v878, %v885
        %v887 = vrot.slane %v882, 4
        %v889 = vshrl.u32 %v824, 16
        %v891 = vrot.slane %v889, 7
        %v892 = vshll.u32 %v824, 16
        %v894 = vor.u32 %v891, %v892
        %v895 = vrot.slane %v891, 4
        %v897 = vshrl.u32 %v825, 16
        %v899 = vrot.slane %v897, 7
        %v900 = vshll.u32 %v825, 16
        %v902 = vor.u32 %v899, %v900
        %v903 = vsel %vm853, %v895, %v902
        %v904 = vrot.slane %v899, 4
        %v906 = vshrl.u32 %v826, 16
        %v908 = vrot.slane %v906, 7
        %v909 = vshll.u32 %v826, 16
        %v911 = vor.u32 %v908, %v909
        %v912 = vrot.slane %v908, 4
        %v914 = vshrl.u32 %v827, 16
        %v916 = vrot.slane %v914, 7
        %v917 = vshll.u32 %v827, 16
        %v919 = vor.u32 %v916, %v917
        %v920 = vsel %vm853, %v912, %v919
        %v921 = vrot.slane %v916, 4
        %v923 = vshrl.u32 %v828, 16
        %v925 = vrot.slane %v923, 7
        %v926 = vshll.u32 %v828, 16
        %v928 = vor.u32 %v925, %v926
        %v929 = vrot.slane %v925, 4
        %v931 = vshrl.u32 %v829, 16
        %v933 = vrot.slane %v931, 7
        %v934 = vshll.u32 %v829, 16
        %v936 = vor.u32 %v933, %v934
        %v937 = vsel %vm853, %v929, %v936
        %v938 = vrot.slane %v933, 4
        %v940 = vshrl.u32 %v830, 16
        %v942 = vrot.slane %v940, 7
        %v943 = vshll.u32 %v830, 16
        %v945 = vor.u32 %v942, %v943
        %v946 = vrot.slane %v942, 4
        %v948 = vshrl.u32 %v831, 16
        %v950 = vrot.slane %v948, 7
        %v951 = vshll.u32 %v831, 16
        %v953 = vor.u32 %v950, %v951
        %v954 = vsel %vm853, %v946, %v953
        %v955 = vrot.slane %v950, 4
        %v957 = vshrl.u32 %v832, 16
        %v959 = vrot.slane %v957, 7
        %v960 = vshll.u32 %v832, 16
        %v962 = vor.u32 %v959, %v960
        %v963 = vrot.slane %v959, 4
        %v965 = vshrl.u32 %v833, 16
        %v967 = vrot.slane %v965, 7
        %v968 = vshll.u32 %v833, 16
        %v970 = vor.u32 %v967, %v968
        %v971 = vsel %vm853, %v963, %v970
        %v972 = vrot.slane %v967, 4
        %v974 = vshrl.u32 %v834, 16
        %v976 = vrot.slane %v974, 7
        %v977 = vshll.u32 %v834, 16
        %v979 = vor.u32 %v976, %v977
        %v980 = vrot.slane %v976, 4
        %v982 = vshrl.u32 %v835, 16
        %v984 = vrot.slane %v982, 7
        %v985 = vshll.u32 %v835, 16
        %v987 = vor.u32 %v984, %v985
        %v988 = vsel %vm853, %v980, %v987
        %v989 = vrot.slane %v984, 4
        %v991 = vshrl.u32 %v836, 16
        %v993 = vrot.slane %v991, 7
        %v994 = vshll.u32 %v836, 16
        %v996 = vor.u32 %v993, %v994
        %v997 = vrot.slane %v993, 4
        %v999 = vshrl.u32 %v837, 16
        %v1001 = vrot.slane %v999, 7
        %v1002 = vshll.u32 %v837, 16
        %v1004 = vor.u32 %v1001, %v1002
        %v1005 = vsel %vm853, %v997, %v1004
        %v1006 = vrot.slane %v1001, 4
        %v1008 = vshrl.u32 %v838, 16
        %v1010 = vrot.slane %v1008, 7
        %v1011 = vshll.u32 %v838, 16
        %v1013 = vor.u32 %v1010, %v1011
        %v1014 = vrot.slane %v1010, 4
        %v1016 = vshrl.u32 %v839, 16
        %v1018 = vrot.slane %v1016, 7
        %v1019 = vshll.u32 %v839, 16
        %v1021 = vor.u32 %v1018, %v1019
        %v1022 = vsel %vm853, %v1014, %v1021
        %v1023 = vrot.slane %v1018, 4
        %v1025 = vshrl.u32 %v840, 16
        %v1027 = vrot.slane %v1025, 7
        %v1028 = vshll.u32 %v840, 16
        %v1030 = vor.u32 %v1027, %v1028
        %v1031 = vrot.slane %v1027, 4
        %v1033 = vshrl.u32 %v841, 16
        %v1035 = vrot.slane %v1033, 7
        %v1036 = vshll.u32 %v841, 16
        %v1038 = vor.u32 %v1035, %v1036
        %v1039 = vsel %vm853, %v1031, %v1038
        %v1040 = vrot.slane %v1035, 4
        %v1042 = vshrl.u32 %v842, 16
        %v1044 = vrot.slane %v1042, 7
        %v1045 = vshll.u32 %v842, 16
        %v1047 = vor.u32 %v1044, %v1045
        %v1048 = vrot.slane %v1044, 4
        %v1050 = vshrl.u32 %v843, 16
        %v1052 = vrot.slane %v1050, 7
        %v1053 = vshll.u32 %v843, 16
        %v1055 = vor.u32 %v1052, %v1053
        %v1056 = vsel %vm853, %v1048, %v1055
        %v1057 = vrot.slane %v1052, 4
        %v1059 = vshrl.u32 %v844, 16
        %v1061 = vrot.slane %v1059, 7
        %v1062 = vshll.u32 %v844, 16
        %v1064 = vor.u32 %v1061, %v1062
        %v1065 = vrot.slane %v1061, 4
        %v1067 = vshrl.u32 %v845, 16
        %v1069 = vrot.slane %v1067, 7
        %v1070 = vshll.u32 %v845, 16
        %v1072 = vor.u32 %v1069, %v1070
        %v1073 = vsel %vm853, %v1065, %v1072
        %v1074 = vrot.slane %v1069, 4
        %v1076 = vshrl.u32 %v846, 16
        %v1078 = vrot.slane %v1076, 7
        %v1079 = vshll.u32 %v846, 16
        %v1081 = vor.u32 %v1078, %v1079
        %v1082 = vrot.slane %v1078, 4
        %v1084 = vshrl.u32 %v847, 16
        %v1086 = vrot.slane %v1084, 7
        %v1087 = vshll.u32 %v847, 16
        %v1089 = vor.u32 %v1086, %v1087
        %v1090 = vsel %vm853, %v1082, %v1089
        %v1091 = vrot.slane %v1086, 4
        %v1093 = vshrl.u32 %v848, 16
        %v1095 = vrot.slane %v1093, 7
        %v1096 = vshll.u32 %v848, 16
        %v1098 = vor.u32 %v1095, %v1096
        %v1099 = vrot.slane %v1095, 4
        %v1101 = vshrl.u32 %v849, 16
        %v1103 = vrot.slane %v1101, 7
        %v1104 = vshll.u32 %v849, 16
        %v1106 = vor.u32 %v1103, %v1104
        %v1107 = vsel %vm853, %v1099, %v1106
        %v1108 = vrot.slane %v1103, 4
        %v1110 = vshrl.u32 %v850, 16
        %v1112 = vrot.slane %v1110, 7
        %v1113 = vshll.u32 %v850, 16
        %v1115 = vor.u32 %v1112, %v1113
        %v1116 = vrot.slane %v1112, 4
        %v1118 = vshrl.u32 %v851, 16
        %v1120 = vrot.slane %v1118, 7
        %v1121 = vshll.u32 %v851, 16
        %v1123 = vor.u32 %v1120, %v1121
        %v1124 = vsel %vm853, %v1116, %v1123
        %v1125 = vrot.slane %v1120, 4
        %s1174 = scalar_lea.vmem [#allocation2], 12
        %vm1175 = vcmask 27648
        %vm1176 = vmand %vm1175, %vm443
        %v1177 = vld [vmem:[%s1174] sm:$0xf]
        %v1178 = vsel %vm1176, %v860, %v1177
        %1179 = vst [vmem:[%s1174] sm:$0xf] %v1178
        %1180 = vst.msk [vmem:[%s1174 + $0x4] sm:$0xf] %vm377, %v869
        %v1181 = vld [vmem:[%s1174 + $0x8] sm:$0x1]
        %v1182 = vsel %vm388, %v870, %v1181
        %1183 = vst [vmem:[%s1174 + $0x8] sm:$0x1] %v1182
        %v1184 = vld [vmem:[%s1174 + $0xc] sm:$0xf]
        %v1185 = vsel %vm1176, %v877, %v1184
        %1186 = vst [vmem:[%s1174 + $0xc] sm:$0xf] %v1185
        %1187 = vst.msk [vmem:[%s1174 + $0x10] sm:$0xf] %vm377, %v886
        %v1188 = vld [vmem:[%s1174 + $0x14] sm:$0x1]
        %v1189 = vsel %vm388, %v887, %v1188
        %1190 = vst [vmem:[%s1174 + $0x14] sm:$0x1] %v1189
        %v1191 = vld [vmem:[%s1174 + $0x18] sm:$0xf]
        %v1192 = vsel %vm1176, %v894, %v1191
        %1193 = vst [vmem:[%s1174 + $0x18] sm:$0xf] %v1192
        %1194 = vst.msk [vmem:[%s1174 + $0x1c] sm:$0xf] %vm377, %v903
        %v1195 = vld [vmem:[%s1174 + $0x20] sm:$0x1]
        %v1196 = vsel %vm388, %v904, %v1195
        %1197 = vst [vmem:[%s1174 + $0x20] sm:$0x1] %v1196
        %v1198 = vld [vmem:[%s1174 + $0x24] sm:$0xf]
        %v1199 = vsel %vm1176, %v911, %v1198
        %1200 = vst [vmem:[%s1174 + $0x24] sm:$0xf] %v1199
        %1201 = vst.msk [vmem:[%s1174 + $0x28] sm:$0xf] %vm377, %v920
        %v1202 = vld [vmem:[%s1174 + $0x2c] sm:$0x1]
        %v1203 = vsel %vm388, %v921, %v1202
        %1204 = vst [vmem:[%s1174 + $0x2c] sm:$0x1] %v1203
        %v1205 = vld [vmem:[%s1174 + $0x30] sm:$0xf]
        %v1206 = vsel %vm1176, %v928, %v1205
        %1207 = vst [vmem:[%s1174 + $0x30] sm:$0xf] %v1206
        %1208 = vst.msk [vmem:[%s1174 + $0x34] sm:$0xf] %vm377, %v937
        %v1209 = vld [vmem:[%s1174 + $0x38] sm:$0x1]
        %v1210 = vsel %vm388, %v938, %v1209
        %1211 = vst [vmem:[%s1174 + $0x38] sm:$0x1] %v1210
        %v1212 = vld [vmem:[%s1174 + $0x3c] sm:$0xf]
        %v1213 = vsel %vm1176, %v945, %v1212
        %1214 = vst [vmem:[%s1174 + $0x3c] sm:$0xf] %v1213
        %1215 = vst.msk [vmem:[%s1174 + $0x40] sm:$0xf] %vm377, %v954
        %v1216 = vld [vmem:[%s1174 + $0x44] sm:$0x1]
        %v1217 = vsel %vm388, %v955, %v1216
        %1218 = vst [vmem:[%s1174 + $0x44] sm:$0x1] %v1217
        %v1219 = vld [vmem:[%s1174 + $0x48] sm:$0xf]
        %v1220 = vsel %vm1176, %v962, %v1219
        %1221 = vst [vmem:[%s1174 + $0x48] sm:$0xf] %v1220
        %1222 = vst.msk [vmem:[%s1174 + $0x4c] sm:$0xf] %vm377, %v971
        %v1223 = vld [vmem:[%s1174 + $0x50] sm:$0x1]
        %v1224 = vsel %vm388, %v972, %v1223
        %1225 = vst [vmem:[%s1174 + $0x50] sm:$0x1] %v1224
        %v1226 = vld [vmem:[%s1174 + $0x54] sm:$0xf]
        %v1227 = vsel %vm1176, %v979, %v1226
        %1228 = vst [vmem:[%s1174 + $0x54] sm:$0xf] %v1227
        %1229 = vst.msk [vmem:[%s1174 + $0x58] sm:$0xf] %vm377, %v988
        %v1230 = vld [vmem:[%s1174 + $0x5c] sm:$0x1]
        %v1231 = vsel %vm388, %v989, %v1230
        %1232 = vst [vmem:[%s1174 + $0x5c] sm:$0x1] %v1231
        %v1233 = vld [vmem:[%s1174 + $0x60] sm:$0xf]
        %v1234 = vsel %vm1176, %v996, %v1233
        %1235 = vst [vmem:[%s1174 + $0x60] sm:$0xf] %v1234
        %1236 = vst.msk [vmem:[%s1174 + $0x64] sm:$0xf] %vm377, %v1005
        %v1237 = vld [vmem:[%s1174 + $0x68] sm:$0x1]
        %v1238 = vsel %vm388, %v1006, %v1237
        %1239 = vst [vmem:[%s1174 + $0x68] sm:$0x1] %v1238
        %v1240 = vld [vmem:[%s1174 + $0x6c] sm:$0xf]
        %v1241 = vsel %vm1176, %v1013, %v1240
        %1242 = vst [vmem:[%s1174 + $0x6c] sm:$0xf] %v1241
        %1243 = vst.msk [vmem:[%s1174 + $0x70] sm:$0xf] %vm377, %v1022
        %v1244 = vld [vmem:[%s1174 + $0x74] sm:$0x1]
        %v1245 = vsel %vm388, %v1023, %v1244
        %1246 = vst [vmem:[%s1174 + $0x74] sm:$0x1] %v1245
        %v1247 = vld [vmem:[%s1174 + $0x78] sm:$0xf]
        %v1248 = vsel %vm1176, %v1030, %v1247
        %1249 = vst [vmem:[%s1174 + $0x78] sm:$0xf] %v1248
        %1250 = vst.msk [vmem:[%s1174 + $0x7c] sm:$0xf] %vm377, %v1039
        %v1251 = vld [vmem:[%s1174 + $0x80] sm:$0x1]
        %v1252 = vsel %vm388, %v1040, %v1251
        %1253 = vst [vmem:[%s1174 + $0x80] sm:$0x1] %v1252
        %v1254 = vld [vmem:[%s1174 + $0x84] sm:$0xf]
        %v1255 = vsel %vm1176, %v1047, %v1254
        %1256 = vst [vmem:[%s1174 + $0x84] sm:$0xf] %v1255
        %1257 = vst.msk [vmem:[%s1174 + $0x88] sm:$0xf] %vm377, %v1056
        %v1258 = vld [vmem:[%s1174 + $0x8c] sm:$0x1]
        %v1259 = vsel %vm388, %v1057, %v1258
        %1260 = vst [vmem:[%s1174 + $0x8c] sm:$0x1] %v1259
        %v1261 = vld [vmem:[%s1174 + $0x90] sm:$0xf]
        %v1262 = vsel %vm1176, %v1064, %v1261
        %1263 = vst [vmem:[%s1174 + $0x90] sm:$0xf] %v1262
        %1264 = vst.msk [vmem:[%s1174 + $0x94] sm:$0xf] %vm377, %v1073
        %v1265 = vld [vmem:[%s1174 + $0x98] sm:$0x1]
        %v1266 = vsel %vm388, %v1074, %v1265
        %1267 = vst [vmem:[%s1174 + $0x98] sm:$0x1] %v1266
        %v1268 = vld [vmem:[%s1174 + $0x9c] sm:$0xf]
        %v1269 = vsel %vm1176, %v1081, %v1268
        %1270 = vst [vmem:[%s1174 + $0x9c] sm:$0xf] %v1269
        %1271 = vst.msk [vmem:[%s1174 + $0xa0] sm:$0xf] %vm377, %v1090
        %v1272 = vld [vmem:[%s1174 + $0xa4] sm:$0x1]
        %v1273 = vsel %vm388, %v1091, %v1272
        %1274 = vst [vmem:[%s1174 + $0xa4] sm:$0x1] %v1273
        %v1275 = vld [vmem:[%s1174 + $0xa8] sm:$0xf]
        %v1276 = vsel %vm1176, %v1098, %v1275
        %1277 = vst [vmem:[%s1174 + $0xa8] sm:$0xf] %v1276
        %1278 = vst.msk [vmem:[%s1174 + $0xac] sm:$0xf] %vm377, %v1107
        %v1279 = vld [vmem:[%s1174 + $0xb0] sm:$0x1]
        %v1280 = vsel %vm388, %v1108, %v1279
        %1281 = vst [vmem:[%s1174 + $0xb0] sm:$0x1] %v1280
        %v1282 = vld [vmem:[%s1174 + $0xb4] sm:$0xf]
        %v1283 = vsel %vm1176, %v1115, %v1282
        %1284 = vst [vmem:[%s1174 + $0xb4] sm:$0xf] %v1283
        %1285 = vst.msk [vmem:[%s1174 + $0xb8] sm:$0xf] %vm377, %v1124
        %v1286 = vld [vmem:[%s1174 + $0xbc] sm:$0x1]
        %v1287 = vsel %vm388, %v1125, %v1286
        %1288 = vst [vmem:[%s1174 + $0xbc] sm:$0x1] %v1287
        %v1289 = vld [vmem:[#allocation2] sm:$0xf]
        %v1290 = vld [vmem:[#allocation2 + $0x4] sm:$0xf]
        %v1291 = vld [vmem:[#allocation2 + $0x8] sm:$0x1]
        %v1292 = vld [vmem:[#allocation2 + $0xc] sm:$0xf]
        %v1293 = vld [vmem:[#allocation2 + $0x10] sm:$0xf]
        %v1294 = vld [vmem:[#allocation2 + $0x14] sm:$0x1]
        %v1295 = vld [vmem:[#allocation2 + $0x18] sm:$0xf]
        %v1296 = vld [vmem:[#allocation2 + $0x1c] sm:$0xf]
        %v1297 = vld [vmem:[#allocation2 + $0x20] sm:$0x1]
        %v1298 = vld [vmem:[#allocation2 + $0x24] sm:$0xf]
        %v1299 = vld [vmem:[#allocation2 + $0x28] sm:$0xf]
        %v1300 = vld [vmem:[#allocation2 + $0x2c] sm:$0x1]
        %v1301 = vld [vmem:[#allocation2 + $0x30] sm:$0xf]
        %v1302 = vld [vmem:[#allocation2 + $0x34] sm:$0xf]
        %v1303 = vld [vmem:[#allocation2 + $0x38] sm:$0x1]
        %v1304 = vld [vmem:[#allocation2 + $0x3c] sm:$0xf]
        %v1305 = vld [vmem:[#allocation2 + $0x40] sm:$0xf]
        %v1306 = vld [vmem:[#allocation2 + $0x44] sm:$0x1]
        %v1307 = vld [vmem:[#allocation2 + $0x48] sm:$0xf]
        %v1308 = vld [vmem:[#allocation2 + $0x4c] sm:$0xf]
        %v1309 = vld [vmem:[#allocation2 + $0x50] sm:$0x1]
        %v1310 = vld [vmem:[#allocation2 + $0x54] sm:$0xf]
        %v1311 = vld [vmem:[#allocation2 + $0x58] sm:$0xf]
        %v1312 = vld [vmem:[#allocation2 + $0x5c] sm:$0x1]
        %v1313 = vld [vmem:[#allocation2 + $0x60] sm:$0xf]
        %v1314 = vld [vmem:[#allocation2 + $0x64] sm:$0xf]
        %v1315 = vld [vmem:[#allocation2 + $0x68] sm:$0x1]
        %v1316 = vld [vmem:[#allocation2 + $0x6c] sm:$0xf]
        %v1317 = vld [vmem:[#allocation2 + $0x70] sm:$0xf]
        %v1318 = vld [vmem:[#allocation2 + $0x74] sm:$0x1]
        %v1319 = vld [vmem:[#allocation2 + $0x78] sm:$0xf]
        %v1320 = vld [vmem:[#allocation2 + $0x7c] sm:$0xf]
        %v1321 = vld [vmem:[#allocation2 + $0x80] sm:$0x1]
        %v1322 = vld [vmem:[#allocation2 + $0x84] sm:$0xf]
        %v1323 = vld [vmem:[#allocation2 + $0x88] sm:$0xf]
        %v1324 = vld [vmem:[#allocation2 + $0x8c] sm:$0x1]
        %v1325 = vld [vmem:[#allocation2 + $0x90] sm:$0xf]
        %v1326 = vld [vmem:[#allocation2 + $0x94] sm:$0xf]
        %v1327 = vld [vmem:[#allocation2 + $0x98] sm:$0x1]
        %v1328 = vld [vmem:[#allocation2 + $0x9c] sm:$0xf]
        %v1329 = vld [vmem:[#allocation2 + $0xa0] sm:$0xf]
        %v1330 = vld [vmem:[#allocation2 + $0xa4] sm:$0x1]
        %v1331 = vld [vmem:[#allocation2 + $0xa8] sm:$0xf]
        %v1332 = vld [vmem:[#allocation2 + $0xac] sm:$0xf]
        %v1333 = vld [vmem:[#allocation2 + $0xb0] sm:$0x1]
        %v1334 = vld [vmem:[#allocation2 + $0xb4] sm:$0xf]
        %v1335 = vld [vmem:[#allocation2 + $0xb8] sm:$0xf]
        %v1336 = vld [vmem:[#allocation2 + $0xbc] sm:$0x1]
        %v1337 = vld [vmem:[#allocation2 + $0xc0] sm:$0xf]
        %v1338 = vld [vmem:[#allocation2 + $0xc4] sm:$0xf]
        %v1339 = vld [vmem:[#allocation2 + $0xc8] sm:$0x1]
        %v1340 = vld [vmem:[#allocation2 + $0xcc] sm:$0xf]
        %v1341 = vld [vmem:[#allocation2 + $0xd0] sm:$0xf]
        %v1342 = vld [vmem:[#allocation2 + $0xd4] sm:$0x1]
        %v1375 = vunpack.c.l.b16 %v1289
        %v1376 = vunpack.c.l.b16 %v1290
        %v1377 = vunpack.c.l.b16 %v1292
        %v1378 = vunpack.c.l.b16 %v1293
        %v1379 = vunpack.c.l.b16 %v1295
        %v1380 = vunpack.c.l.b16 %v1296
        %v1381 = vunpack.c.l.b16 %v1298
        %v1382 = vunpack.c.l.b16 %v1299
        %v1383 = vunpack.c.l.b16 %v1301
        %v1384 = vunpack.c.l.b16 %v1302
        %v1385 = vunpack.c.l.b16 %v1304
        %v1386 = vunpack.c.l.b16 %v1305
        %v1387 = vunpack.c.l.b16 %v1307
        %v1388 = vunpack.c.l.b16 %v1308
        %v1389 = vunpack.c.l.b16 %v1310
        %v1390 = vunpack.c.l.b16 %v1311
        %v1391 = vunpack.c.l.b16 %v1313
        %v1392 = vunpack.c.l.b16 %v1314
        %v1393 = vunpack.c.l.b16 %v1316
        %v1394 = vunpack.c.l.b16 %v1317
        %v1395 = vunpack.c.l.b16 %v1319
        %v1396 = vunpack.c.l.b16 %v1320
        %v1397 = vunpack.c.l.b16 %v1322
        %v1398 = vunpack.c.l.b16 %v1323
        %v1399 = vunpack.c.l.b16 %v1325
        %v1400 = vunpack.c.l.b16 %v1326
        %v1401 = vunpack.c.l.b16 %v1328
        %v1402 = vunpack.c.l.b16 %v1329
        %v1403 = vunpack.c.l.b16 %v1331
        %v1404 = vunpack.c.l.b16 %v1332
        %v1405 = vunpack.c.l.b16 %v1334
        %v1406 = vunpack.c.l.b16 %v1335
        %v1407 = vpack.c.b16 %v1376, %v1375
        %v1408 = vpack.c.b16 %v1378, %v1377
        %v1409 = vpack.c.b16 %v1380, %v1379
        %v1410 = vpack.c.b16 %v1382, %v1381
        %v1411 = vpack.c.b16 %v1384, %v1383
        %v1412 = vpack.c.b16 %v1386, %v1385
        %v1413 = vpack.c.b16 %v1388, %v1387
        %v1414 = vpack.c.b16 %v1390, %v1389
        %v1415 = vpack.c.b16 %v1392, %v1391
        %v1416 = vpack.c.b16 %v1394, %v1393
        %v1417 = vpack.c.b16 %v1396, %v1395
        %v1418 = vpack.c.b16 %v1398, %v1397
        %v1419 = vpack.c.b16 %v1400, %v1399
        %v1420 = vpack.c.b16 %v1402, %v1401
        %v1421 = vpack.c.b16 %v1404, %v1403
        %v1422 = vpack.c.b16 %v1406, %v1405
        %v1439 = vunpack.c.l.b16 %v1291
        %v1440 = vunpack.c.l.b16 %v1294
        %v1441 = vunpack.c.l.b16 %v1297
        %v1442 = vunpack.c.l.b16 %v1300
        %v1443 = vunpack.c.l.b16 %v1303
        %v1444 = vunpack.c.l.b16 %v1306
        %v1445 = vunpack.c.l.b16 %v1309
        %v1446 = vunpack.c.l.b16 %v1312
        %v1447 = vunpack.c.l.b16 %v1315
        %v1448 = vunpack.c.l.b16 %v1318
        %v1449 = vunpack.c.l.b16 %v1321
        %v1450 = vunpack.c.l.b16 %v1324
        %v1451 = vunpack.c.l.b16 %v1327
        %v1452 = vunpack.c.l.b16 %v1330
        %v1453 = vunpack.c.l.b16 %v1333
        %v1454 = vunpack.c.l.b16 %v1336
        %v1455 = vpack.c.b16 %v1439, %v1439
        %v1456 = vpack.c.b16 %v1440, %v1440
        %v1457 = vpack.c.b16 %v1441, %v1441
        %v1458 = vpack.c.b16 %v1442, %v1442
        %v1459 = vpack.c.b16 %v1443, %v1443
        %v1460 = vpack.c.b16 %v1444, %v1444
        %v1461 = vpack.c.b16 %v1445, %v1445
        %v1462 = vpack.c.b16 %v1446, %v1446
        %v1463 = vpack.c.b16 %v1447, %v1447
        %v1464 = vpack.c.b16 %v1448, %v1448
        %v1465 = vpack.c.b16 %v1449, %v1449
        %v1466 = vpack.c.b16 %v1450, %v1450
        %v1467 = vpack.c.b16 %v1451, %v1451
        %v1468 = vpack.c.b16 %v1452, %v1452
        %v1469 = vpack.c.b16 %v1453, %v1453
        %v1470 = vpack.c.b16 %v1454, %v1454
        %vm1471 = vsmask.f32 7424
        %v1473 = vshrl.u32 %v1407, 16
        %v1475 = vshll.u32 %v1407, 16
        %v1477 = vrot.slane %v1475, 1
        %v1478 = vor.u32 %v1473, %v1477
        %v1480 = vshll.u32 %v1455, 16
        %v1482 = vrot.slane %v1480, 1
        %v1483 = vsel %vm1471, %v1478, %v1482
        %v1485 = vshrl.u32 %v1408, 16
        %v1487 = vshll.u32 %v1408, 16
        %v1489 = vrot.slane %v1487, 1
        %v1490 = vor.u32 %v1485, %v1489
        %v1492 = vshll.u32 %v1456, 16
        %v1494 = vrot.slane %v1492, 1
        %v1495 = vsel %vm1471, %v1490, %v1494
        %v1497 = vshrl.u32 %v1409, 16
        %v1499 = vshll.u32 %v1409, 16
        %v1501 = vrot.slane %v1499, 1
        %v1502 = vor.u32 %v1497, %v1501
        %v1504 = vshll.u32 %v1457, 16
        %v1506 = vrot.slane %v1504, 1
        %v1507 = vsel %vm1471, %v1502, %v1506
        %v1509 = vshrl.u32 %v1410, 16
        %v1511 = vshll.u32 %v1410, 16
        %v1513 = vrot.slane %v1511, 1
        %v1514 = vor.u32 %v1509, %v1513
        %v1516 = vshll.u32 %v1458, 16
        %v1518 = vrot.slane %v1516, 1
        %v1519 = vsel %vm1471, %v1514, %v1518
        %v1521 = vshrl.u32 %v1411, 16
        %v1523 = vshll.u32 %v1411, 16
        %v1525 = vrot.slane %v1523, 1
        %v1526 = vor.u32 %v1521, %v1525
        %v1528 = vshll.u32 %v1459, 16
        %v1530 = vrot.slane %v1528, 1
        %v1531 = vsel %vm1471, %v1526, %v1530
        %v1533 = vshrl.u32 %v1412, 16
        %v1535 = vshll.u32 %v1412, 16
        %v1537 = vrot.slane %v1535, 1
        %v1538 = vor.u32 %v1533, %v1537
        %v1540 = vshll.u32 %v1460, 16
        %v1542 = vrot.slane %v1540, 1
        %v1543 = vsel %vm1471, %v1538, %v1542
        %v1545 = vshrl.u32 %v1413, 16
        %v1547 = vshll.u32 %v1413, 16
        %v1549 = vrot.slane %v1547, 1
        %v1550 = vor.u32 %v1545, %v1549
        %v1552 = vshll.u32 %v1461, 16
        %v1554 = vrot.slane %v1552, 1
        %v1555 = vsel %vm1471, %v1550, %v1554
        %v1557 = vshrl.u32 %v1414, 16
        %v1559 = vshll.u32 %v1414, 16
        %v1561 = vrot.slane %v1559, 1
        %v1562 = vor.u32 %v1557, %v1561
        %v1564 = vshll.u32 %v1462, 16
        %v1566 = vrot.slane %v1564, 1
        %v1567 = vsel %vm1471, %v1562, %v1566
        %v1569 = vshrl.u32 %v1415, 16
        %v1571 = vshll.u32 %v1415, 16
        %v1573 = vrot.slane %v1571, 1
        %v1574 = vor.u32 %v1569, %v1573
        %v1576 = vshll.u32 %v1463, 16
        %v1578 = vrot.slane %v1576, 1
        %v1579 = vsel %vm1471, %v1574, %v1578
        %v1581 = vshrl.u32 %v1416, 16
        %v1583 = vshll.u32 %v1416, 16
        %v1585 = vrot.slane %v1583, 1
        %v1586 = vor.u32 %v1581, %v1585
        %v1588 = vshll.u32 %v1464, 16
        %v1590 = vrot.slane %v1588, 1
        %v1591 = vsel %vm1471, %v1586, %v1590
        %v1593 = vshrl.u32 %v1417, 16
        %v1595 = vshll.u32 %v1417, 16
        %v1597 = vrot.slane %v1595, 1
        %v1598 = vor.u32 %v1593, %v1597
        %v1600 = vshll.u32 %v1465, 16
        %v1602 = vrot.slane %v1600, 1
        %v1603 = vsel %vm1471, %v1598, %v1602
        %v1605 = vshrl.u32 %v1418, 16
        %v1607 = vshll.u32 %v1418, 16
        %v1609 = vrot.slane %v1607, 1
        %v1610 = vor.u32 %v1605, %v1609
        %v1612 = vshll.u32 %v1466, 16
        %v1614 = vrot.slane %v1612, 1
        %v1615 = vsel %vm1471, %v1610, %v1614
        %v1617 = vshrl.u32 %v1419, 16
        %v1619 = vshll.u32 %v1419, 16
        %v1621 = vrot.slane %v1619, 1
        %v1622 = vor.u32 %v1617, %v1621
        %v1624 = vshll.u32 %v1467, 16
        %v1626 = vrot.slane %v1624, 1
        %v1627 = vsel %vm1471, %v1622, %v1626
        %v1629 = vshrl.u32 %v1420, 16
        %v1631 = vshll.u32 %v1420, 16
        %v1633 = vrot.slane %v1631, 1
        %v1634 = vor.u32 %v1629, %v1633
        %v1636 = vshll.u32 %v1468, 16
        %v1638 = vrot.slane %v1636, 1
        %v1639 = vsel %vm1471, %v1634, %v1638
        %v1641 = vshrl.u32 %v1421, 16
        %v1643 = vshll.u32 %v1421, 16
        %v1645 = vrot.slane %v1643, 1
        %v1646 = vor.u32 %v1641, %v1645
        %v1648 = vshll.u32 %v1469, 16
        %v1650 = vrot.slane %v1648, 1
        %v1651 = vsel %vm1471, %v1646, %v1650
        %v1653 = vshrl.u32 %v1422, 16
        %v1655 = vshll.u32 %v1422, 16
        %v1657 = vrot.slane %v1655, 1
        %v1658 = vor.u32 %v1653, %v1657
        %v1660 = vshll.u32 %v1470, 16
        %v1662 = vrot.slane %v1660, 1
        %v1663 = vsel %vm1471, %v1658, %v1662
        %1664 = vrot.lane.b32.xlu0 %v1483, 4
        %v1665 = vpop.permute.xlu0 %1664
        %1666 = vrot.lane.b32.xlu0 %v1495, 4
        %v1667 = vpop.permute.xlu0 %1666
        %1668 = vrot.lane.b32.xlu0 %v1507, 4
        %v1669 = vpop.permute.xlu0 %1668
        %1670 = vrot.lane.b32.xlu0 %v1519, 4
        %v1671 = vpop.permute.xlu0 %1670
        %1672 = vrot.lane.b32.xlu0 %v1531, 4
        %v1673 = vpop.permute.xlu0 %1672
        %1674 = vrot.lane.b32.xlu0 %v1543, 4
        %v1675 = vpop.permute.xlu0 %1674
        %1676 = vrot.lane.b32.xlu0 %v1555, 4
        %v1677 = vpop.permute.xlu0 %1676
        %1678 = vrot.lane.b32.xlu0 %v1567, 4
        %v1679 = vpop.permute.xlu0 %1678
        %1680 = vrot.lane.b32.xlu0 %v1579, 4
        %v1681 = vpop.permute.xlu0 %1680
        %1682 = vrot.lane.b32.xlu0 %v1591, 4
        %v1683 = vpop.permute.xlu0 %1682
        %1684 = vrot.lane.b32.xlu0 %v1603, 4
        %v1685 = vpop.permute.xlu0 %1684
        %1686 = vrot.lane.b32.xlu0 %v1615, 4
        %v1687 = vpop.permute.xlu0 %1686
        %1688 = vrot.lane.b32.xlu0 %v1627, 4
        %v1689 = vpop.permute.xlu0 %1688
        %1690 = vrot.lane.b32.xlu0 %v1639, 4
        %v1691 = vpop.permute.xlu0 %1690
        %1692 = vrot.lane.b32.xlu0 %v1651, 4
        %v1693 = vpop.permute.xlu0 %1692
        %1694 = vrot.lane.b32.xlu0 %v1663, 4
        %v1695 = vpop.permute.xlu0 %1694
        %vm1696 = vcmask 1046528
        %v1697 = vrot.slane %v1407, 1
        %v1698 = vrot.slane %v1455, 1
        %v1699 = vsel %vm1696, %v1697, %v1698
        %v1700 = vrot.slane %v1408, 1
        %v1701 = vrot.slane %v1456, 1
        %v1702 = vsel %vm1696, %v1700, %v1701
        %v1703 = vrot.slane %v1409, 1
        %v1704 = vrot.slane %v1457, 1
        %v1705 = vsel %vm1696, %v1703, %v1704
        %v1706 = vrot.slane %v1410, 1
        %v1707 = vrot.slane %v1458, 1
        %v1708 = vsel %vm1696, %v1706, %v1707
        %v1709 = vrot.slane %v1411, 1
        %v1710 = vrot.slane %v1459, 1
        %v1711 = vsel %vm1696, %v1709, %v1710
        %v1712 = vrot.slane %v1412, 1
        %v1713 = vrot.slane %v1460, 1
        %v1714 = vsel %vm1696, %v1712, %v1713
        %v1715 = vrot.slane %v1413, 1
        %v1716 = vrot.slane %v1461, 1
        %v1717 = vsel %vm1696, %v1715, %v1716
        %v1718 = vrot.slane %v1414, 1
        %v1719 = vrot.slane %v1462, 1
        %v1720 = vsel %vm1696, %v1718, %v1719
        %v1721 = vrot.slane %v1415, 1
        %v1722 = vrot.slane %v1463, 1
        %v1723 = vsel %vm1696, %v1721, %v1722
        %v1724 = vrot.slane %v1416, 1
        %v1725 = vrot.slane %v1464, 1
        %v1726 = vsel %vm1696, %v1724, %v1725
        %v1727 = vrot.slane %v1417, 1
        %v1728 = vrot.slane %v1465, 1
        %v1729 = vsel %vm1696, %v1727, %v1728
        %v1730 = vrot.slane %v1418, 1
        %v1731 = vrot.slane %v1466, 1
        %v1732 = vsel %vm1696, %v1730, %v1731
        %v1733 = vrot.slane %v1419, 1
        %v1734 = vrot.slane %v1467, 1
        %v1735 = vsel %vm1696, %v1733, %v1734
        %v1736 = vrot.slane %v1420, 1
        %v1737 = vrot.slane %v1468, 1
        %v1738 = vsel %vm1696, %v1736, %v1737
        %v1739 = vrot.slane %v1421, 1
        %v1740 = vrot.slane %v1469, 1
        %v1741 = vsel %vm1696, %v1739, %v1740
        %v1742 = vrot.slane %v1422, 1
        %v1743 = vrot.slane %v1470, 1
        %v1744 = vsel %vm1696, %v1742, %v1743
        %1745 = vrot.lane.b32.xlu0 %v1699, 8
        %v1746 = vpop.permute.xlu0 %1745
        %1747 = vrot.lane.b32.xlu0 %v1702, 8
        %v1748 = vpop.permute.xlu0 %1747
        %1749 = vrot.lane.b32.xlu0 %v1705, 8
        %v1750 = vpop.permute.xlu0 %1749
        %1751 = vrot.lane.b32.xlu0 %v1708, 8
        %v1752 = vpop.permute.xlu0 %1751
        %1753 = vrot.lane.b32.xlu0 %v1711, 8
        %v1754 = vpop.permute.xlu0 %1753
        %1755 = vrot.lane.b32.xlu0 %v1714, 8
        %v1756 = vpop.permute.xlu0 %1755
        %1757 = vrot.lane.b32.xlu0 %v1717, 8
        %v1758 = vpop.permute.xlu0 %1757
        %1759 = vrot.lane.b32.xlu0 %v1720, 8
        %v1760 = vpop.permute.xlu0 %1759
        %1761 = vrot.lane.b32.xlu0 %v1723, 8
        %v1762 = vpop.permute.xlu0 %1761
        %1763 = vrot.lane.b32.xlu0 %v1726, 8
        %v1764 = vpop.permute.xlu0 %1763
        %1765 = vrot.lane.b32.xlu0 %v1729, 8
        %v1766 = vpop.permute.xlu0 %1765
        %1767 = vrot.lane.b32.xlu0 %v1732, 8
        %v1768 = vpop.permute.xlu0 %1767
        %1769 = vrot.lane.b32.xlu0 %v1735, 8
        %v1770 = vpop.permute.xlu0 %1769
        %1771 = vrot.lane.b32.xlu0 %v1738, 8
        %v1772 = vpop.permute.xlu0 %1771
        %1773 = vrot.lane.b32.xlu0 %v1741, 8
        %v1774 = vpop.permute.xlu0 %1773
        %1775 = vrot.lane.b32.xlu0 %v1744, 8
        %v1776 = vpop.permute.xlu0 %1775
        %v1779 = vunpack.c.l.b16 %v1337
        %v1780 = vunpack.c.l.b16 %v1338
        %v1781 = vpack.c.b16 %v1780, %v1779
        %1782 = vrot.lane.b32.xlu0 %v1408, 12
        %v1783 = vpop.permute.xlu0 %1782
        %1784 = vrot.lane.b32.xlu0 %v1409, 12
        %v1785 = vpop.permute.xlu0 %1784
        %1786 = vrot.lane.b32.xlu0 %v1410, 12
        %v1787 = vpop.permute.xlu0 %1786
        %1788 = vrot.lane.b32.xlu0 %v1411, 12
        %v1789 = vpop.permute.xlu0 %1788
        %1790 = vrot.lane.b32.xlu0 %v1412, 12
        %v1791 = vpop.permute.xlu0 %1790
        %1792 = vrot.lane.b32.xlu0 %v1413, 12
        %v1793 = vpop.permute.xlu0 %1792
        %1794 = vrot.lane.b32.xlu0 %v1414, 12
        %v1795 = vpop.permute.xlu0 %1794
        %1796 = vrot.lane.b32.xlu0 %v1415, 12
        %v1797 = vpop.permute.xlu0 %1796
        %1798 = vrot.lane.b32.xlu0 %v1416, 12
        %v1799 = vpop.permute.xlu0 %1798
        %1800 = vrot.lane.b32.xlu0 %v1417, 12
        %v1801 = vpop.permute.xlu0 %1800
        %1802 = vrot.lane.b32.xlu0 %v1418, 12
        %v1803 = vpop.permute.xlu0 %1802
        %1804 = vrot.lane.b32.xlu0 %v1419, 12
        %v1805 = vpop.permute.xlu0 %1804
        %1806 = vrot.lane.b32.xlu0 %v1420, 12
        %v1807 = vpop.permute.xlu0 %1806
        %1808 = vrot.lane.b32.xlu0 %v1421, 12
        %v1809 = vpop.permute.xlu0 %1808
        %1810 = vrot.lane.b32.xlu0 %v1422, 12
        %v1811 = vpop.permute.xlu0 %1810
        %1812 = vrot.lane.b32.xlu0 %v1781, 12
        %v1813 = vpop.permute.xlu0 %1812
        %v1815 = vunpack.c.l.b16 %v1339
        %v1816 = vpack.c.b16 %v1815, %v1815
        %v1818 = vshrl.u32 %v1781, 16
        %v1820 = vshll.u32 %v1781, 16
        %v1822 = vrot.slane %v1820, 1
        %v1823 = vor.u32 %v1818, %v1822
        %v1825 = vshll.u32 %v1816, 16
        %v1827 = vrot.slane %v1825, 1
        %v1828 = vsel %vm1471, %v1823, %v1827
        %1829 = vrot.lane.b32.xlu0 %v1495, 16
        %v1830 = vpop.permute.xlu0 %1829
        %1831 = vrot.lane.b32.xlu0 %v1507, 16
        %v1832 = vpop.permute.xlu0 %1831
        %1833 = vrot.lane.b32.xlu0 %v1519, 16
        %v1834 = vpop.permute.xlu0 %1833
        %1835 = vrot.lane.b32.xlu0 %v1531, 16
        %v1836 = vpop.permute.xlu0 %1835
        %1837 = vrot.lane.b32.xlu0 %v1543, 16
        %v1838 = vpop.permute.xlu0 %1837
        %1839 = vrot.lane.b32.xlu0 %v1555, 16
        %v1840 = vpop.permute.xlu0 %1839
        %1841 = vrot.lane.b32.xlu0 %v1567, 16
        %v1842 = vpop.permute.xlu0 %1841
        %1843 = vrot.lane.b32.xlu0 %v1579, 16
        %v1844 = vpop.permute.xlu0 %1843
        %1845 = vrot.lane.b32.xlu0 %v1591, 16
        %v1846 = vpop.permute.xlu0 %1845
        %1847 = vrot.lane.b32.xlu0 %v1603, 16
        %v1848 = vpop.permute.xlu0 %1847
        %1849 = vrot.lane.b32.xlu0 %v1615, 16
        %v1850 = vpop.permute.xlu0 %1849
        %1851 = vrot.lane.b32.xlu0 %v1627, 16
        %v1852 = vpop.permute.xlu0 %1851
        %1853 = vrot.lane.b32.xlu0 %v1639, 16
        %v1854 = vpop.permute.xlu0 %1853
        %1855 = vrot.lane.b32.xlu0 %v1651, 16
        %v1856 = vpop.permute.xlu0 %1855
        %1857 = vrot.lane.b32.xlu0 %v1663, 16
        %v1858 = vpop.permute.xlu0 %1857
        %1859 = vrot.lane.b32.xlu0 %v1828, 16
        %v1860 = vpop.permute.xlu0 %1859
        %v1861 = vrot.slane %v1781, 1
        %v1862 = vrot.slane %v1816, 1
        %v1863 = vsel %vm1696, %v1861, %v1862
        %1864 = vrot.lane.b32.xlu0 %v1702, 20
        %v1865 = vpop.permute.xlu0 %1864
        %1866 = vrot.lane.b32.xlu0 %v1705, 20
        %v1867 = vpop.permute.xlu0 %1866
        %1868 = vrot.lane.b32.xlu0 %v1708, 20
        %v1869 = vpop.permute.xlu0 %1868
        %1870 = vrot.lane.b32.xlu0 %v1711, 20
        %v1871 = vpop.permute.xlu0 %1870
        %1872 = vrot.lane.b32.xlu0 %v1714, 20
        %v1873 = vpop.permute.xlu0 %1872
        %1874 = vrot.lane.b32.xlu0 %v1717, 20
        %v1875 = vpop.permute.xlu0 %1874
        %1876 = vrot.lane.b32.xlu0 %v1720, 20
        %v1877 = vpop.permute.xlu0 %1876
        %1878 = vrot.lane.b32.xlu0 %v1723, 20
        %v1879 = vpop.permute.xlu0 %1878
        %1880 = vrot.lane.b32.xlu0 %v1726, 20
        %v1881 = vpop.permute.xlu0 %1880
        %1882 = vrot.lane.b32.xlu0 %v1729, 20
        %v1883 = vpop.permute.xlu0 %1882
        %1884 = vrot.lane.b32.xlu0 %v1732, 20
        %v1885 = vpop.permute.xlu0 %1884
        %1886 = vrot.lane.b32.xlu0 %v1735, 20
        %v1887 = vpop.permute.xlu0 %1886
        %1888 = vrot.lane.b32.xlu0 %v1738, 20
        %v1889 = vpop.permute.xlu0 %1888
        %1890 = vrot.lane.b32.xlu0 %v1741, 20
        %v1891 = vpop.permute.xlu0 %1890
        %1892 = vrot.lane.b32.xlu0 %v1744, 20
        %v1893 = vpop.permute.xlu0 %1892
        %1894 = vrot.lane.b32.xlu0 %v1863, 20
        %v1895 = vpop.permute.xlu0 %1894
        %v1898 = vunpack.c.l.b16 %v1340
        %v1899 = vunpack.c.l.b16 %v1341
        %v1900 = vpack.c.b16 %v1899, %v1898
        %1901 = vrot.lane.b32.xlu0 %v1409, 24
        %v1902 = vpop.permute.xlu0 %1901
        %1903 = vrot.lane.b32.xlu0 %v1410, 24
        %v1904 = vpop.permute.xlu0 %1903
        %1905 = vrot.lane.b32.xlu0 %v1411, 24
        %v1906 = vpop.permute.xlu0 %1905
        %1907 = vrot.lane.b32.xlu0 %v1412, 24
        %v1908 = vpop.permute.xlu0 %1907
        %1909 = vrot.lane.b32.xlu0 %v1413, 24
        %v1910 = vpop.permute.xlu0 %1909
        %1911 = vrot.lane.b32.xlu0 %v1414, 24
        %v1912 = vpop.permute.xlu0 %1911
        %1913 = vrot.lane.b32.xlu0 %v1415, 24
        %v1914 = vpop.permute.xlu0 %1913
        %1915 = vrot.lane.b32.xlu0 %v1416, 24
        %v1916 = vpop.permute.xlu0 %1915
        %1917 = vrot.lane.b32.xlu0 %v1417, 24
        %v1918 = vpop.permute.xlu0 %1917
        %1919 = vrot.lane.b32.xlu0 %v1418, 24
        %v1920 = vpop.permute.xlu0 %1919
        %1921 = vrot.lane.b32.xlu0 %v1419, 24
        %v1922 = vpop.permute.xlu0 %1921
        %1923 = vrot.lane.b32.xlu0 %v1420, 24
        %v1924 = vpop.permute.xlu0 %1923
        %1925 = vrot.lane.b32.xlu0 %v1421, 24
        %v1926 = vpop.permute.xlu0 %1925
        %1927 = vrot.lane.b32.xlu0 %v1422, 24
        %v1928 = vpop.permute.xlu0 %1927
        %1929 = vrot.lane.b32.xlu0 %v1781, 24
        %v1930 = vpop.permute.xlu0 %1929
        %1931 = vrot.lane.b32.xlu0 %v1900, 24
        %v1932 = vpop.permute.xlu0 %1931
        %v1934 = vunpack.c.l.b16 %v1342
        %v1935 = vpack.c.b16 %v1934, %v1934
        %v1937 = vshrl.u32 %v1900, 16
        %v1939 = vshll.u32 %v1900, 16
        %v1941 = vrot.slane %v1939, 1
        %v1942 = vor.u32 %v1937, %v1941
        %v1944 = vshll.u32 %v1935, 16
        %v1946 = vrot.slane %v1944, 1
        %v1947 = vsel %vm1471, %v1942, %v1946
        %1948 = vrot.lane.b32.xlu0 %v1507, 28
        %v1949 = vpop.permute.xlu0 %1948
        %1950 = vrot.lane.b32.xlu0 %v1519, 28
        %v1951 = vpop.permute.xlu0 %1950
        %1952 = vrot.lane.b32.xlu0 %v1531, 28
        %v1953 = vpop.permute.xlu0 %1952
        %1954 = vrot.lane.b32.xlu0 %v1543, 28
        %v1955 = vpop.permute.xlu0 %1954
        %1956 = vrot.lane.b32.xlu0 %v1555, 28
        %v1957 = vpop.permute.xlu0 %1956
        %1958 = vrot.lane.b32.xlu0 %v1567, 28
        %v1959 = vpop.permute.xlu0 %1958
        %1960 = vrot.lane.b32.xlu0 %v1579, 28
        %v1961 = vpop.permute.xlu0 %1960
        %1962 = vrot.lane.b32.xlu0 %v1591, 28
        %v1963 = vpop.permute.xlu0 %1962
        %1964 = vrot.lane.b32.xlu0 %v1603, 28
        %v1965 = vpop.permute.xlu0 %1964
        %1966 = vrot.lane.b32.xlu0 %v1615, 28
        %v1967 = vpop.permute.xlu0 %1966
        %1968 = vrot.lane.b32.xlu0 %v1627, 28
        %v1969 = vpop.permute.xlu0 %1968
        %1970 = vrot.lane.b32.xlu0 %v1639, 28
        %v1971 = vpop.permute.xlu0 %1970
        %1972 = vrot.lane.b32.xlu0 %v1651, 28
        %v1973 = vpop.permute.xlu0 %1972
        %1974 = vrot.lane.b32.xlu0 %v1663, 28
        %v1975 = vpop.permute.xlu0 %1974
        %1976 = vrot.lane.b32.xlu0 %v1828, 28
        %v1977 = vpop.permute.xlu0 %1976
        %1978 = vrot.lane.b32.xlu0 %v1947, 28
        %v1979 = vpop.permute.xlu0 %1978
        %v1980 = vrot.slane %v1900, 1
        %v1981 = vrot.slane %v1935, 1
        %v1982 = vsel %vm1696, %v1980, %v1981
        %1983 = vrot.lane.b32.xlu0 %v1705, 32
        %v1984 = vpop.permute.xlu0 %1983
        %1985 = vrot.lane.b32.xlu0 %v1708, 32
        %v1986 = vpop.permute.xlu0 %1985
        %1987 = vrot.lane.b32.xlu0 %v1711, 32
        %v1988 = vpop.permute.xlu0 %1987
        %1989 = vrot.lane.b32.xlu0 %v1714, 32
        %v1990 = vpop.permute.xlu0 %1989
        %1991 = vrot.lane.b32.xlu0 %v1717, 32
        %v1992 = vpop.permute.xlu0 %1991
        %1993 = vrot.lane.b32.xlu0 %v1720, 32
        %v1994 = vpop.permute.xlu0 %1993
        %1995 = vrot.lane.b32.xlu0 %v1723, 32
        %v1996 = vpop.permute.xlu0 %1995
        %1997 = vrot.lane.b32.xlu0 %v1726, 32
        %v1998 = vpop.permute.xlu0 %1997
        %1999 = vrot.lane.b32.xlu0 %v1729, 32
        %v2000 = vpop.permute.xlu0 %1999
        %2001 = vrot.lane.b32.xlu0 %v1732, 32
        %v2002 = vpop.permute.xlu0 %2001
        %2003 = vrot.lane.b32.xlu0 %v1735, 32
        %v2004 = vpop.permute.xlu0 %2003
        %2005 = vrot.lane.b32.xlu0 %v1738, 32
        %v2006 = vpop.permute.xlu0 %2005
        %2007 = vrot.lane.b32.xlu0 %v1741, 32
        %v2008 = vpop.permute.xlu0 %2007
        %2009 = vrot.lane.b32.xlu0 %v1744, 32
        %v2010 = vpop.permute.xlu0 %2009
        %2011 = vrot.lane.b32.xlu0 %v1863, 32
        %v2012 = vpop.permute.xlu0 %2011
        %2013 = vrot.lane.b32.xlu0 %v1982, 32
        %v2014 = vpop.permute.xlu0 %2013
        %vm2015 = vcmask 31744
        %v2017 = vsel %vm2015, %v1407, %v1665
        %v2019 = vsel %vm2015, %v1408, %v1667
        %v2021 = vsel %vm2015, %v1409, %v1669
        %v2023 = vsel %vm2015, %v1410, %v1671
        %v2025 = vsel %vm2015, %v1411, %v1673
        %v2027 = vsel %vm2015, %v1412, %v1675
        %v2029 = vsel %vm2015, %v1413, %v1677
        %v2031 = vsel %vm2015, %v1414, %v1679
        %v2033 = vsel %vm2015, %v1415, %v1681
        %v2035 = vsel %vm2015, %v1416, %v1683
        %v2037 = vsel %vm2015, %v1417, %v1685
        %v2039 = vsel %vm2015, %v1418, %v1687
        %v2041 = vsel %vm2015, %v1419, %v1689
        %v2043 = vsel %vm2015, %v1420, %v1691
        %v2045 = vsel %vm2015, %v1421, %v1693
        %v2047 = vsel %vm2015, %v1422, %v1695
        %vm2048 = vcmask 64512
        %v2050 = vsel %vm2048, %v2017, %v1746
        %v2052 = vsel %vm2048, %v2019, %v1748
        %v2054 = vsel %vm2048, %v2021, %v1750
        %v2056 = vsel %vm2048, %v2023, %v1752
        %v2058 = vsel %vm2048, %v2025, %v1754
        %v2060 = vsel %vm2048, %v2027, %v1756
        %v2062 = vsel %vm2048, %v2029, %v1758
        %v2064 = vsel %vm2048, %v2031, %v1760
        %v2066 = vsel %vm2048, %v2033, %v1762
        %v2068 = vsel %vm2048, %v2035, %v1764
        %v2070 = vsel %vm2048, %v2037, %v1766
        %v2072 = vsel %vm2048, %v2039, %v1768
        %v2074 = vsel %vm2048, %v2041, %v1770
        %v2076 = vsel %vm2048, %v2043, %v1772
        %v2078 = vsel %vm2048, %v2045, %v1774
        %v2080 = vsel %vm2048, %v2047, %v1776
        %vm2081 = vcmask 97280
        %v2083 = vsel %vm2081, %v2050, %v1783
        %v2085 = vsel %vm2081, %v2052, %v1785
        %v2087 = vsel %vm2081, %v2054, %v1787
        %v2089 = vsel %vm2081, %v2056, %v1789
        %v2091 = vsel %vm2081, %v2058, %v1791
        %v2093 = vsel %vm2081, %v2060, %v1793
        %v2095 = vsel %vm2081, %v2062, %v1795
        %v2097 = vsel %vm2081, %v2064, %v1797
        %v2099 = vsel %vm2081, %v2066, %v1799
        %v2101 = vsel %vm2081, %v2068, %v1801
        %v2103 = vsel %vm2081, %v2070, %v1803
        %v2105 = vsel %vm2081, %v2072, %v1805
        %v2107 = vsel %vm2081, %v2074, %v1807
        %v2109 = vsel %vm2081, %v2076, %v1809
        %v2111 = vsel %vm2081, %v2078, %v1811
        %v2113 = vsel %vm2081, %v2080, %v1813
        %vm2114 = vcmask 130048
        %v2116 = vsel %vm2114, %v2083, %v1830
        %v2118 = vsel %vm2114, %v2085, %v1832
        %v2120 = vsel %vm2114, %v2087, %v1834
        %v2122 = vsel %vm2114, %v2089, %v1836
        %v2124 = vsel %vm2114, %v2091, %v1838
        %v2126 = vsel %vm2114, %v2093, %v1840
        %v2128 = vsel %vm2114, %v2095, %v1842
        %v2130 = vsel %vm2114, %v2097, %v1844
        %v2132 = vsel %vm2114, %v2099, %v1846
        %v2134 = vsel %vm2114, %v2101, %v1848
        %v2136 = vsel %vm2114, %v2103, %v1850
        %v2138 = vsel %vm2114, %v2105, %v1852
        %v2140 = vsel %vm2114, %v2107, %v1854
        %v2142 = vsel %vm2114, %v2109, %v1856
        %v2144 = vsel %vm2114, %v2111, %v1858
        %v2146 = vsel %vm2114, %v2113, %v1860
        %vm2147 = vcmask 162816
        %v2149 = vsel %vm2147, %v2116, %v1865
        %v2151 = vsel %vm2147, %v2118, %v1867
        %v2153 = vsel %vm2147, %v2120, %v1869
        %v2155 = vsel %vm2147, %v2122, %v1871
        %v2157 = vsel %vm2147, %v2124, %v1873
        %v2159 = vsel %vm2147, %v2126, %v1875
        %v2161 = vsel %vm2147, %v2128, %v1877
        %v2163 = vsel %vm2147, %v2130, %v1879
        %v2165 = vsel %vm2147, %v2132, %v1881
        %v2167 = vsel %vm2147, %v2134, %v1883
        %v2169 = vsel %vm2147, %v2136, %v1885
        %v2171 = vsel %vm2147, %v2138, %v1887
        %v2173 = vsel %vm2147, %v2140, %v1889
        %v2175 = vsel %vm2147, %v2142, %v1891
        %v2177 = vsel %vm2147, %v2144, %v1893
        %v2179 = vsel %vm2147, %v2146, %v1895
        %vm2180 = vcmask 195584
        %v2182 = vsel %vm2180, %v2149, %v1902
        %v2184 = vsel %vm2180, %v2151, %v1904
        %v2186 = vsel %vm2180, %v2153, %v1906
        %v2188 = vsel %vm2180, %v2155, %v1908
        %v2190 = vsel %vm2180, %v2157, %v1910
        %v2192 = vsel %vm2180, %v2159, %v1912
        %v2194 = vsel %vm2180, %v2161, %v1914
        %v2196 = vsel %vm2180, %v2163, %v1916
        %v2198 = vsel %vm2180, %v2165, %v1918
        %v2200 = vsel %vm2180, %v2167, %v1920
        %v2202 = vsel %vm2180, %v2169, %v1922
        %v2204 = vsel %vm2180, %v2171, %v1924
        %v2206 = vsel %vm2180, %v2173, %v1926
        %v2208 = vsel %vm2180, %v2175, %v1928
        %v2210 = vsel %vm2180, %v2177, %v1930
        %v2212 = vsel %vm2180, %v2179, %v1932
        %vm2213 = vcmask 228352
        %v2215 = vsel %vm2213, %v2182, %v1949
        %v2217 = vsel %vm2213, %v2184, %v1951
        %v2219 = vsel %vm2213, %v2186, %v1953
        %v2221 = vsel %vm2213, %v2188, %v1955
        %v2223 = vsel %vm2213, %v2190, %v1957
        %v2225 = vsel %vm2213, %v2192, %v1959
        %v2227 = vsel %vm2213, %v2194, %v1961
        %v2229 = vsel %vm2213, %v2196, %v1963
        %v2231 = vsel %vm2213, %v2198, %v1965
        %v2233 = vsel %vm2213, %v2200, %v1967
        %v2235 = vsel %vm2213, %v2202, %v1969
        %v2237 = vsel %vm2213, %v2204, %v1971
        %v2239 = vsel %vm2213, %v2206, %v1973
        %v2241 = vsel %vm2213, %v2208, %v1975
        %v2243 = vsel %vm2213, %v2210, %v1977
        %v2245 = vsel %vm2213, %v2212, %v1979
        %vm2246 = vcmask 261120
        %v2248 = vsel %vm2246, %v2215, %v1984
        %v2250 = vsel %vm2246, %v2217, %v1986
        %v2252 = vsel %vm2246, %v2219, %v1988
        %v2254 = vsel %vm2246, %v2221, %v1990
        %v2256 = vsel %vm2246, %v2223, %v1992
        %v2258 = vsel %vm2246, %v2225, %v1994
        %v2260 = vsel %vm2246, %v2227, %v1996
        %v2262 = vsel %vm2246, %v2229, %v1998
        %v2264 = vsel %vm2246, %v2231, %v2000
        %v2266 = vsel %vm2246, %v2233, %v2002
        %v2268 = vsel %vm2246, %v2235, %v2004
        %v2270 = vsel %vm2246, %v2237, %v2006
        %v2272 = vsel %vm2246, %v2239, %v2008
        %v2274 = vsel %vm2246, %v2241, %v2010
        %v2276 = vsel %vm2246, %v2243, %v2012
        %v2278 = vsel %vm2246, %v2245, %v2014
        %v2279 = vld [vmem:[#allocation10] sm:$0xf]
        %v2280 = vld [vmem:[#allocation10 + $0x4] sm:$0xf]
        %v2281 = vld [vmem:[#allocation10 + $0x8] sm:$0xf]
        %v2282 = vld [vmem:[#allocation10 + $0xc] sm:$0xf]
        %v2283 = vld [vmem:[#allocation10 + $0x10] sm:$0x3]
        %v2289 = vunpack.c.l.b16 %v2279
        %v2290 = vunpack.c.l.b16 %v2280
        %v2291 = vunpack.c.l.b16 %v2281
        %v2292 = vunpack.c.l.b16 %v2282
        %v2293 = vunpack.c.l.b16 %v2283
        %v2294 = vpack.c.b16 %v2290, %v2289
        %v2295 = vpack.c.b16 %v2292, %v2291
        %v2296 = vpack.c.b16 %v2293, %v2293
        %vm2299 = vcmask 293888
        %v2300 = vsel %vm2299, %v2248, 0
        %v2302 = vsel %vm2299, %v2250, 0
        %v2304 = vsel %vm2299, %v2252, 0
        %v2306 = vsel %vm2299, %v2254, 0
        %v2308 = vsel %vm2299, %v2256, 0
        %v2310 = vsel %vm2299, %v2258, 0
        %v2312 = vsel %vm2299, %v2260, 0
        %v2314 = vsel %vm2299, %v2262, 0
        %v2316 = vsel %vm2299, %v2264, 0
        %v2318 = vsel %vm2299, %v2266, 0
        %v2320 = vsel %vm2299, %v2268, 0
        %v2322 = vsel %vm2299, %v2270, 0
        %v2324 = vsel %vm2299, %v2272, 0
        %v2326 = vsel %vm2299, %v2274, 0
        %v2328 = vsel %vm2299, %v2276, 0
        %v2330 = vsel %vm2299, %v2278, 0
        %vm2332 = vcmask 1041408
        %v2334 = vsel %vm2332, %v2296, 0
        %2336 = vmatprep.subr.bf16.mxu0 0
        %2337 = vmatpush1.bf16.msra.mxu0 %v2294
        %2338 = vmatprep.subr.bf16.mxu0 0
        %2339 = vmatpush1.bf16.msra.mxu0 %v2295
        %2340 = vmatprep.subr.bf16.mxu0 0
        %2341 = vmatpush1.bf16.msra.mxu0 %v2334
        %2342 = vmatprep.subr.bf16.mxu0 0
        %2343 = vmatpush1.bf16.msra.mxu0 0
        %2344 = vmatprep.subr.bf16.mxu0 0
        %2345 = vmatpush1.bf16.msra.mxu0 0
        %2346 = vmatprep.subr.bf16.mxu0 0
        %2347 = vmatpush1.bf16.msra.mxu0 0
        %2348 = vmatprep.subr.bf16.mxu0 0
        %2349 = vmatpush1.bf16.msra.mxu0 0
        %2350 = vmatprep.subr.bf16.mxu0 0
        %2351 = vmatpush1.bf16.msra.mxu0 0
        %2352 = vmatprep.subr.bf16.mxu0 0
        %2353 = vmatpush1.bf16.msra.mxu0 0
        %2354 = vmatprep.subr.bf16.mxu0 0
        %2355 = vmatpush1.bf16.msra.mxu0 0
        %2356 = vmatprep.subr.bf16.mxu0 0
        %2357 = vmatpush1.bf16.msra.mxu0 0
        %2358 = vmatprep.subr.bf16.mxu0 0
        %2359 = vmatpush1.bf16.msra.mxu0 0
        %2360 = vmatprep.subr.bf16.mxu0 0
        %2361 = vmatpush1.bf16.msra.mxu0 0
        %2362 = vmatprep.subr.bf16.mxu0 0
        %2363 = vmatpush1.bf16.msra.mxu0 0
        %2364 = vmatprep.subr.bf16.mxu0 0
        %2365 = vmatpush1.bf16.msra.mxu0 0
        %2366 = vmatprep.subr.bf16.mxu0 0
        %2367 = vmatpush1.bf16.msra.mxu0 0
        %2368 = vmatprep.mubr.bf16.mxu0 0
        %2369 = vmatmul.mubr.bf16.gmra.mrb[0].mxu0 %v2300
        %v2370 = vpop.f32.mrb[0].mxu0
        %v2371 = vadd.f32 0.0, %v2370
        %v2372 = vpop.f32.mrb[0].mxu0
        %v2373 = vpop.f32.mrb[0].mxu0
        %v2374 = vadd.f32 0.0, %v2373
        %v2375 = vpop.f32.mrb[0].mxu0
        %2376 = vmatprep.mubr.bf16.mxu0 0
        %2377 = vmatmul.mubr.bf16.gmra.mrb[0].mxu0 %v2302
        %v2378 = vpop.f32.mrb[0].mxu0
        %v2379 = vadd.f32 0.0, %v2378
        %v2380 = vpop.f32.mrb[0].mxu0
        %v2381 = vpop.f32.mrb[0].mxu0
        %v2382 = vadd.f32 0.0, %v2381
        %v2383 = vpop.f32.mrb[0].mxu0
        %2384 = vmatprep.mubr.bf16.mxu0 0
        %2385 = vmatmul.mubr.bf16.gmra.mrb[0].mxu0 %v2304
        %v2386 = vpop.f32.mrb[0].mxu0
        %v2387 = vadd.f32 0.0, %v2386
        %v2388 = vpop.f32.mrb[0].mxu0
        %v2389 = vpop.f32.mrb[0].mxu0
        %v2390 = vadd.f32 0.0, %v2389
        %v2391 = vpop.f32.mrb[0].mxu0
        %2392 = vmatprep.mubr.bf16.mxu0 0
        %2393 = vmatmul.mubr.bf16.gmra.mrb[0].mxu0 %v2306
        %v2394 = vpop.f32.mrb[0].mxu0
        %v2395 = vadd.f32 0.0, %v2394
        %v2396 = vpop.f32.mrb[0].mxu0
        %v2397 = vpop.f32.mrb[0].mxu0
        %v2398 = vadd.f32 0.0, %v2397
        %v2399 = vpop.f32.mrb[0].mxu0
        %2400 = vmatprep.mubr.bf16.mxu0 0
        %2401 = vmatmul.mubr.bf16.gmra.mrb[0].mxu0 %v2308
        %v2402 = vpop.f32.mrb[0].mxu0
        %v2403 = vadd.f32 0.0, %v2402
        %v2404 = vpop.f32.mrb[0].mxu0
        %v2405 = vpop.f32.mrb[0].mxu0
        %v2406 = vadd.f32 0.0, %v2405
        %v2407 = vpop.f32.mrb[0].mxu0
        %2408 = vmatprep.mubr.bf16.mxu0 0
        %2409 = vmatmul.mubr.bf16.gmra.mrb[0].mxu0 %v2310
        %v2410 = vpop.f32.mrb[0].mxu0
        %v2411 = vadd.f32 0.0, %v2410
        %v2412 = vpop.f32.mrb[0].mxu0
        %v2413 = vpop.f32.mrb[0].mxu0
        %v2414 = vadd.f32 0.0, %v2413
        %v2415 = vpop.f32.mrb[0].mxu0
        %2416 = vmatprep.mubr.bf16.mxu0 0
        %2417 = vmatmul.mubr.bf16.gmra.mrb[0].mxu0 %v2312
        %v2418 = vpop.f32.mrb[0].mxu0
        %v2419 = vadd.f32 0.0, %v2418
        %v2420 = vpop.f32.mrb[0].mxu0
        %v2421 = vpop.f32.mrb[0].mxu0
        %v2422 = vadd.f32 0.0, %v2421
        %v2423 = vpop.f32.mrb[0].mxu0
        %2424 = vmatprep.mubr.bf16.mxu0 0
        %2425 = vmatmul.mubr.bf16.gmra.mrb[0].mxu0 %v2314
        %v2426 = vpop.f32.mrb[0].mxu0
        %v2427 = vadd.f32 0.0, %v2426
        %v2428 = vpop.f32.mrb[0].mxu0
        %v2429 = vpop.f32.mrb[0].mxu0
        %v2430 = vadd.f32 0.0, %v2429
        %v2431 = vpop.f32.mrb[0].mxu0
        %2432 = vmatprep.mubr.bf16.mxu0 0
        %2433 = vmatmul.mubr.bf16.gmra.mrb[0].mxu0 %v2316
        %v2434 = vpop.f32.mrb[0].mxu0
        %v2435 = vadd.f32 0.0, %v2434
        %v2436 = vpop.f32.mrb[0].mxu0
        %v2437 = vpop.f32.mrb[0].mxu0
        %v2438 = vadd.f32 0.0, %v2437
        %v2439 = vpop.f32.mrb[0].mxu0
        %2440 = vmatprep.mubr.bf16.mxu0 0
        %2441 = vmatmul.mubr.bf16.gmra.mrb[0].mxu0 %v2318
        %v2442 = vpop.f32.mrb[0].mxu0
        %v2443 = vadd.f32 0.0, %v2442
        %v2444 = vpop.f32.mrb[0].mxu0
        %v2445 = vpop.f32.mrb[0].mxu0
        %v2446 = vadd.f32 0.0, %v2445
        %v2447 = vpop.f32.mrb[0].mxu0
        %2448 = vmatprep.mubr.bf16.mxu0 0
        %2449 = vmatmul.mubr.bf16.gmra.mrb[0].mxu0 %v2320
        %v2450 = vpop.f32.mrb[0].mxu0
        %v2451 = vadd.f32 0.0, %v2450
        %v2452 = vpop.f32.mrb[0].mxu0
        %v2453 = vpop.f32.mrb[0].mxu0
        %v2454 = vadd.f32 0.0, %v2453
        %v2455 = vpop.f32.mrb[0].mxu0
        %2456 = vmatprep.mubr.bf16.mxu0 0
        %2457 = vmatmul.mubr.bf16.gmra.mrb[0].mxu0 %v2322
        %v2458 = vpop.f32.mrb[0].mxu0
        %v2459 = vadd.f32 0.0, %v2458
        %v2460 = vpop.f32.mrb[0].mxu0
        %v2461 = vpop.f32.mrb[0].mxu0
        %v2462 = vadd.f32 0.0, %v2461
        %v2463 = vpop.f32.mrb[0].mxu0
        %2464 = vmatprep.mubr.bf16.mxu0 0
        %2465 = vmatmul.mubr.bf16.gmra.mrb[0].mxu0 %v2324
        %v2466 = vpop.f32.mrb[0].mxu0
        %v2467 = vadd.f32 0.0, %v2466
        %v2468 = vpop.f32.mrb[0].mxu0
        %v2469 = vpop.f32.mrb[0].mxu0
        %v2470 = vadd.f32 0.0, %v2469
        %v2471 = vpop.f32.mrb[0].mxu0
        %2472 = vmatprep.mubr.bf16.mxu0 0
        %2473 = vmatmul.mubr.bf16.gmra.mrb[0].mxu0 %v2326
        %v2474 = vpop.f32.mrb[0].mxu0
        %v2475 = vadd.f32 0.0, %v2474
        %v2476 = vpop.f32.mrb[0].mxu0
        %v2477 = vpop.f32.mrb[0].mxu0
        %v2478 = vadd.f32 0.0, %v2477
        %v2479 = vpop.f32.mrb[0].mxu0
        %2480 = vmatprep.mubr.bf16.mxu0 0
        %2481 = vmatmul.mubr.bf16.gmra.mrb[0].mxu0 %v2328
        %v2482 = vpop.f32.mrb[0].mxu0
        %v2483 = vadd.f32 0.0, %v2482
        %v2484 = vpop.f32.mrb[0].mxu0
        %v2485 = vpop.f32.mrb[0].mxu0
        %v2486 = vadd.f32 0.0, %v2485
        %v2487 = vpop.f32.mrb[0].mxu0
        %2488 = vmatprep.mubr.bf16.mxu0 0
        %2489 = vmatmul.mubr.bf16.gmra.mrb[0].mxu0 %v2330
        %v2490 = vpop.f32.mrb[0].mxu0
        %v2491 = vadd.f32 0.0, %v2490
        %v2492 = vpop.f32.mrb[0].mxu0
        %v2493 = vpop.f32.mrb[0].mxu0
        %v2494 = vadd.f32 0.0, %v2493
        %v2495 = vpop.f32.mrb[0].mxu0
        %2496 = vdwg.mxu0
        %v2497 = vld [vmem:[#allocation12] sm:$0x1]
        %v2499 = vlaneseq
        %v2500 = vshrl.u32 %v2499, 7
        %v2501 = vsub.s32 0, %v2500
        %v2502 = vrot.slane %v2497, %v2501
        %v2504 = vmul.f32 %v2371, %v2502
        %v2505 = vmul.f32 %v2374, %v2502
        %v2506 = vmul.f32 %v2379, %v2502
        %v2507 = vmul.f32 %v2382, %v2502
        %v2508 = vmul.f32 %v2387, %v2502
        %v2509 = vmul.f32 %v2390, %v2502
        %v2510 = vmul.f32 %v2395, %v2502
        %v2511 = vmul.f32 %v2398, %v2502
        %v2512 = vmul.f32 %v2403, %v2502
        %v2513 = vmul.f32 %v2406, %v2502
        %v2514 = vmul.f32 %v2411, %v2502
        %v2515 = vmul.f32 %v2414, %v2502
        %v2516 = vmul.f32 %v2419, %v2502
        %v2517 = vmul.f32 %v2422, %v2502
        %v2518 = vmul.f32 %v2427, %v2502
        %v2519 = vmul.f32 %v2430, %v2502
        %v2520 = vmul.f32 %v2435, %v2502
        %v2521 = vmul.f32 %v2438, %v2502
        %v2522 = vmul.f32 %v2443, %v2502
        %v2523 = vmul.f32 %v2446, %v2502
        %v2524 = vmul.f32 %v2451, %v2502
        %v2525 = vmul.f32 %v2454, %v2502
        %v2526 = vmul.f32 %v2459, %v2502
        %v2527 = vmul.f32 %v2462, %v2502
        %v2528 = vmul.f32 %v2467, %v2502
        %v2529 = vmul.f32 %v2470, %v2502
        %v2530 = vmul.f32 %v2475, %v2502
        %v2531 = vmul.f32 %v2478, %v2502
        %v2532 = vmul.f32 %v2483, %v2502
        %v2533 = vmul.f32 %v2486, %v2502
        %v2534 = vmul.f32 %v2491, %v2502
        %v2535 = vmul.f32 %v2494, %v2502
        %v2536 = vld [vmem:[#allocation13] sm:$0x1]
        %v2538 = vlaneseq
        %v2539 = vshrl.u32 %v2538, 7
        %v2540 = vsub.s32 0, %v2539
        %v2541 = vrot.slane %v2536, %v2540
        %v2543 = vadd.f32 %v2504, %v2541
        %v2544 = vadd.f32 %v2505, %v2541
        %v2545 = vadd.f32 %v2506, %v2541
        %v2546 = vadd.f32 %v2507, %v2541
        %v2547 = vadd.f32 %v2508, %v2541
        %v2548 = vadd.f32 %v2509, %v2541
        %v2549 = vadd.f32 %v2510, %v2541
        %v2550 = vadd.f32 %v2511, %v2541
        %v2551 = vadd.f32 %v2512, %v2541
        %v2552 = vadd.f32 %v2513, %v2541
        %v2553 = vadd.f32 %v2514, %v2541
        %v2554 = vadd.f32 %v2515, %v2541
        %v2555 = vadd.f32 %v2516, %v2541
        %v2556 = vadd.f32 %v2517, %v2541
        %v2557 = vadd.f32 %v2518, %v2541
        %v2558 = vadd.f32 %v2519, %v2541
        %v2559 = vadd.f32 %v2520, %v2541
        %v2560 = vadd.f32 %v2521, %v2541
        %v2561 = vadd.f32 %v2522, %v2541
        %v2562 = vadd.f32 %v2523, %v2541
        %v2563 = vadd.f32 %v2524, %v2541
        %v2564 = vadd.f32 %v2525, %v2541
        %v2565 = vadd.f32 %v2526, %v2541
        %v2566 = vadd.f32 %v2527, %v2541
        %v2567 = vadd.f32 %v2528, %v2541
        %v2568 = vadd.f32 %v2529, %v2541
        %v2569 = vadd.f32 %v2530, %v2541
        %v2570 = vadd.f32 %v2531, %v2541
        %v2571 = vadd.f32 %v2532, %v2541
        %v2572 = vadd.f32 %v2533, %v2541
        %v2573 = vadd.f32 %v2534, %v2541
        %v2574 = vadd.f32 %v2535, %v2541
        %v2575 = vmax.f32 %v2543, 0.0
        %v2576 = vmax.f32 %v2544, 0.0
        %v2577 = vmax.f32 %v2545, 0.0
        %v2578 = vmax.f32 %v2546, 0.0
        %v2579 = vmax.f32 %v2547, 0.0
        %v2580 = vmax.f32 %v2548, 0.0
        %v2581 = vmax.f32 %v2549, 0.0
        %v2582 = vmax.f32 %v2550, 0.0
        %v2583 = vmax.f32 %v2551, 0.0
        %v2584 = vmax.f32 %v2552, 0.0
        %v2585 = vmax.f32 %v2553, 0.0
        %v2586 = vmax.f32 %v2554, 0.0
        %v2587 = vmax.f32 %v2555, 0.0
        %v2588 = vmax.f32 %v2556, 0.0
        %v2589 = vmax.f32 %v2557, 0.0
        %v2590 = vmax.f32 %v2558, 0.0
        %v2591 = vmax.f32 %v2559, 0.0
        %v2592 = vmax.f32 %v2560, 0.0
        %v2593 = vmax.f32 %v2561, 0.0
        %v2594 = vmax.f32 %v2562, 0.0
        %v2595 = vmax.f32 %v2563, 0.0
        %v2596 = vmax.f32 %v2564, 0.0
        %v2597 = vmax.f32 %v2565, 0.0
        %v2598 = vmax.f32 %v2566, 0.0
        %v2599 = vmax.f32 %v2567, 0.0
        %v2600 = vmax.f32 %v2568, 0.0
        %v2601 = vmax.f32 %v2569, 0.0
        %v2602 = vmax.f32 %v2570, 0.0
        %v2603 = vmax.f32 %v2571, 0.0
        %v2604 = vmax.f32 %v2572, 0.0
        %v2605 = vmax.f32 %v2573, 0.0
        %v2606 = vmax.f32 %v2574, 0.0
        %v2607 = vpack.c.bf16 %v2576, %v2575
        %v2608 = vpack.c.bf16 %v2578, %v2577
        %v2609 = vpack.c.bf16 %v2580, %v2579
        %v2610 = vpack.c.bf16 %v2582, %v2581
        %v2611 = vpack.c.bf16 %v2584, %v2583
        %v2612 = vpack.c.bf16 %v2586, %v2585
        %v2613 = vpack.c.bf16 %v2588, %v2587
        %v2614 = vpack.c.bf16 %v2590, %v2589
        %v2615 = vpack.c.bf16 %v2592, %v2591
        %v2616 = vpack.c.bf16 %v2594, %v2593
        %v2617 = vpack.c.bf16 %v2596, %v2595
        %v2618 = vpack.c.bf16 %v2598, %v2597
        %v2619 = vpack.c.bf16 %v2600, %v2599
        %v2620 = vpack.c.bf16 %v2602, %v2601
        %v2621 = vpack.c.bf16 %v2604, %v2603
        %v2622 = vpack.c.bf16 %v2606, %v2605
        %v2639 = vunpack.c.l.b16 %v2607
        %v2640 = vunpack.c.h.b16 %v2607
        %v2641 = vunpack.c.l.b16 %v2608
        %v2642 = vunpack.c.h.b16 %v2608
        %v2643 = vunpack.c.l.b16 %v2609
        %v2644 = vunpack.c.h.b16 %v2609
        %v2645 = vunpack.c.l.b16 %v2610
        %v2646 = vunpack.c.h.b16 %v2610
        %v2647 = vunpack.c.l.b16 %v2611
        %v2648 = vunpack.c.h.b16 %v2611
        %v2649 = vunpack.c.l.b16 %v2612
        %v2650 = vunpack.c.h.b16 %v2612
        %v2651 = vunpack.c.l.b16 %v2613
        %v2652 = vunpack.c.h.b16 %v2613
        %v2653 = vunpack.c.l.b16 %v2614
        %v2654 = vunpack.c.h.b16 %v2614
        %v2655 = vunpack.c.l.b16 %v2615
        %v2656 = vunpack.c.h.b16 %v2615
        %v2657 = vunpack.c.l.b16 %v2616
        %v2658 = vunpack.c.h.b16 %v2616
        %v2659 = vunpack.c.l.b16 %v2617
        %v2660 = vunpack.c.h.b16 %v2617
        %v2661 = vunpack.c.l.b16 %v2618
        %v2662 = vunpack.c.h.b16 %v2618
        %v2663 = vunpack.c.l.b16 %v2619
        %v2664 = vunpack.c.h.b16 %v2619
        %v2665 = vunpack.c.l.b16 %v2620
        %v2666 = vunpack.c.h.b16 %v2620
        %v2667 = vunpack.c.l.b16 %v2621
        %v2668 = vunpack.c.h.b16 %v2621
        %v2669 = vunpack.c.l.b16 %v2622
        %v2670 = vunpack.c.h.b16 %v2622
        %v2671 = vpack.c.b16 %v2639, %v2639
        %v2672 = vpack.c.b16 %v2640, %v2640
        %v2673 = vpack.c.b16 %v2641, %v2641
        %v2674 = vpack.c.b16 %v2642, %v2642
        %v2675 = vpack.c.b16 %v2643, %v2643
        %v2676 = vpack.c.b16 %v2644, %v2644
        %v2677 = vpack.c.b16 %v2645, %v2645
        %v2678 = vpack.c.b16 %v2646, %v2646
        %v2679 = vpack.c.b16 %v2647, %v2647
        %v2680 = vpack.c.b16 %v2648, %v2648
        %v2681 = vpack.c.b16 %v2649, %v2649
        %v2682 = vpack.c.b16 %v2650, %v2650
        %v2683 = vpack.c.b16 %v2651, %v2651
        %v2684 = vpack.c.b16 %v2652, %v2652
        %v2685 = vpack.c.b16 %v2653, %v2653
        %v2686 = vpack.c.b16 %v2654, %v2654
        %v2687 = vpack.c.b16 %v2655, %v2655
        %v2688 = vpack.c.b16 %v2656, %v2656
        %v2689 = vpack.c.b16 %v2657, %v2657
        %v2690 = vpack.c.b16 %v2658, %v2658
        %v2691 = vpack.c.b16 %v2659, %v2659
        %v2692 = vpack.c.b16 %v2660, %v2660
        %v2693 = vpack.c.b16 %v2661, %v2661
        %v2694 = vpack.c.b16 %v2662, %v2662
        %v2695 = vpack.c.b16 %v2663, %v2663
        %v2696 = vpack.c.b16 %v2664, %v2664
        %v2697 = vpack.c.b16 %v2665, %v2665
        %v2698 = vpack.c.b16 %v2666, %v2666
        %v2699 = vpack.c.b16 %v2667, %v2667
        %v2700 = vpack.c.b16 %v2668, %v2668
        %v2701 = vpack.c.b16 %v2669, %v2669
        %v2702 = vpack.c.b16 %v2670, %v2670
        %v2704 = vshrl.u32 %v2671, 16
        %v2706 = vrot.slane %v2704, 7
        %v2707 = vshll.u32 %v2671, 16
        %v2709 = vor.u32 %v2706, %v2707
        %v2710 = vrot.slane %v2706, 4
        %v2712 = vshrl.u32 %v2672, 16
        %v2714 = vrot.slane %v2712, 7
        %v2715 = vshll.u32 %v2672, 16
        %v2717 = vor.u32 %v2714, %v2715
        %v2718 = vsel %vm853, %v2710, %v2717
        %v2719 = vrot.slane %v2714, 4
        %v2721 = vshrl.u32 %v2673, 16
        %v2723 = vrot.slane %v2721, 7
        %v2724 = vshll.u32 %v2673, 16
        %v2726 = vor.u32 %v2723, %v2724
        %v2727 = vrot.slane %v2723, 4
        %v2729 = vshrl.u32 %v2674, 16
        %v2731 = vrot.slane %v2729, 7
        %v2732 = vshll.u32 %v2674, 16
        %v2734 = vor.u32 %v2731, %v2732
        %v2735 = vsel %vm853, %v2727, %v2734
        %v2736 = vrot.slane %v2731, 4
        %v2738 = vshrl.u32 %v2675, 16
        %v2740 = vrot.slane %v2738, 7
        %v2741 = vshll.u32 %v2675, 16
        %v2743 = vor.u32 %v2740, %v2741
        %v2744 = vrot.slane %v2740, 4
        %v2746 = vshrl.u32 %v2676, 16
        %v2748 = vrot.slane %v2746, 7
        %v2749 = vshll.u32 %v2676, 16
        %v2751 = vor.u32 %v2748, %v2749
        %v2752 = vsel %vm853, %v2744, %v2751
        %v2753 = vrot.slane %v2748, 4
        %v2755 = vshrl.u32 %v2677, 16
        %v2757 = vrot.slane %v2755, 7
        %v2758 = vshll.u32 %v2677, 16
        %v2760 = vor.u32 %v2757, %v2758
        %v2761 = vrot.slane %v2757, 4
        %v2763 = vshrl.u32 %v2678, 16
        %v2765 = vrot.slane %v2763, 7
        %v2766 = vshll.u32 %v2678, 16
        %v2768 = vor.u32 %v2765, %v2766
        %v2769 = vsel %vm853, %v2761, %v2768
        %v2770 = vrot.slane %v2765, 4
        %v2772 = vshrl.u32 %v2679, 16
        %v2774 = vrot.slane %v2772, 7
        %v2775 = vshll.u32 %v2679, 16
        %v2777 = vor.u32 %v2774, %v2775
        %v2778 = vrot.slane %v2774, 4
        %v2780 = vshrl.u32 %v2680, 16
        %v2782 = vrot.slane %v2780, 7
        %v2783 = vshll.u32 %v2680, 16
        %v2785 = vor.u32 %v2782, %v2783
        %v2786 = vsel %vm853, %v2778, %v2785
        %v2787 = vrot.slane %v2782, 4
        %v2789 = vshrl.u32 %v2681, 16
        %v2791 = vrot.slane %v2789, 7
        %v2792 = vshll.u32 %v2681, 16
        %v2794 = vor.u32 %v2791, %v2792
        %v2795 = vrot.slane %v2791, 4
        %v2797 = vshrl.u32 %v2682, 16
        %v2799 = vrot.slane %v2797, 7
        %v2800 = vshll.u32 %v2682, 16
        %v2802 = vor.u32 %v2799, %v2800
        %v2803 = vsel %vm853, %v2795, %v2802
        %v2804 = vrot.slane %v2799, 4
        %v2806 = vshrl.u32 %v2683, 16
        %v2808 = vrot.slane %v2806, 7
        %v2809 = vshll.u32 %v2683, 16
        %v2811 = vor.u32 %v2808, %v2809
        %v2812 = vrot.slane %v2808, 4
        %v2814 = vshrl.u32 %v2684, 16
        %v2816 = vrot.slane %v2814, 7
        %v2817 = vshll.u32 %v2684, 16
        %v2819 = vor.u32 %v2816, %v2817
        %v2820 = vsel %vm853, %v2812, %v2819
        %v2821 = vrot.slane %v2816, 4
        %v2823 = vshrl.u32 %v2685, 16
        %v2825 = vrot.slane %v2823, 7
        %v2826 = vshll.u32 %v2685, 16
        %v2828 = vor.u32 %v2825, %v2826
        %v2829 = vrot.slane %v2825, 4
        %v2831 = vshrl.u32 %v2686, 16
        %v2833 = vrot.slane %v2831, 7
        %v2834 = vshll.u32 %v2686, 16
        %v2836 = vor.u32 %v2833, %v2834
        %v2837 = vsel %vm853, %v2829, %v2836
        %v2838 = vrot.slane %v2833, 4
        %v2840 = vshrl.u32 %v2687, 16
        %v2842 = vrot.slane %v2840, 7
        %v2843 = vshll.u32 %v2687, 16
        %v2845 = vor.u32 %v2842, %v2843
        %v2846 = vrot.slane %v2842, 4
        %v2848 = vshrl.u32 %v2688, 16
        %v2850 = vrot.slane %v2848, 7
        %v2851 = vshll.u32 %v2688, 16
        %v2853 = vor.u32 %v2850, %v2851
        %v2854 = vsel %vm853, %v2846, %v2853
        %v2855 = vrot.slane %v2850, 4
        %v2857 = vshrl.u32 %v2689, 16
        %v2859 = vrot.slane %v2857, 7
        %v2860 = vshll.u32 %v2689, 16
        %v2862 = vor.u32 %v2859, %v2860
        %v2863 = vrot.slane %v2859, 4
        %v2865 = vshrl.u32 %v2690, 16
        %v2867 = vrot.slane %v2865, 7
        %v2868 = vshll.u32 %v2690, 16
        %v2870 = vor.u32 %v2867, %v2868
        %v2871 = vsel %vm853, %v2863, %v2870
        %v2872 = vrot.slane %v2867, 4
        %v2874 = vshrl.u32 %v2691, 16
        %v2876 = vrot.slane %v2874, 7
        %v2877 = vshll.u32 %v2691, 16
        %v2879 = vor.u32 %v2876, %v2877
        %v2880 = vrot.slane %v2876, 4
        %v2882 = vshrl.u32 %v2692, 16
        %v2884 = vrot.slane %v2882, 7
        %v2885 = vshll.u32 %v2692, 16
        %v2887 = vor.u32 %v2884, %v2885
        %v2888 = vsel %vm853, %v2880, %v2887
        %v2889 = vrot.slane %v2884, 4
        %v2891 = vshrl.u32 %v2693, 16
        %v2893 = vrot.slane %v2891, 7
        %v2894 = vshll.u32 %v2693, 16
        %v2896 = vor.u32 %v2893, %v2894
        %v2897 = vrot.slane %v2893, 4
        %v2899 = vshrl.u32 %v2694, 16
        %v2901 = vrot.slane %v2899, 7
        %v2902 = vshll.u32 %v2694, 16
        %v2904 = vor.u32 %v2901, %v2902
        %v2905 = vsel %vm853, %v2897, %v2904
        %v2906 = vrot.slane %v2901, 4
        %v2908 = vshrl.u32 %v2695, 16
        %v2910 = vrot.slane %v2908, 7
        %v2911 = vshll.u32 %v2695, 16
        %v2913 = vor.u32 %v2910, %v2911
        %v2914 = vrot.slane %v2910, 4
        %v2916 = vshrl.u32 %v2696, 16
        %v2918 = vrot.slane %v2916, 7
        %v2919 = vshll.u32 %v2696, 16
        %v2921 = vor.u32 %v2918, %v2919
        %v2922 = vsel %vm853, %v2914, %v2921
        %v2923 = vrot.slane %v2918, 4
        %v2925 = vshrl.u32 %v2697, 16
        %v2927 = vrot.slane %v2925, 7
        %v2928 = vshll.u32 %v2697, 16
        %v2930 = vor.u32 %v2927, %v2928
        %v2931 = vrot.slane %v2927, 4
        %v2933 = vshrl.u32 %v2698, 16
        %v2935 = vrot.slane %v2933, 7
        %v2936 = vshll.u32 %v2698, 16
        %v2938 = vor.u32 %v2935, %v2936
        %v2939 = vsel %vm853, %v2931, %v2938
        %v2940 = vrot.slane %v2935, 4
        %v2942 = vshrl.u32 %v2699, 16
        %v2944 = vrot.slane %v2942, 7
        %v2945 = vshll.u32 %v2699, 16
        %v2947 = vor.u32 %v2944, %v2945
        %v2948 = vrot.slane %v2944, 4
        %v2950 = vshrl.u32 %v2700, 16
        %v2952 = vrot.slane %v2950, 7
        %v2953 = vshll.u32 %v2700, 16
        %v2955 = vor.u32 %v2952, %v2953
        %v2956 = vsel %vm853, %v2948, %v2955
        %v2957 = vrot.slane %v2952, 4
        %v2959 = vshrl.u32 %v2701, 16
        %v2961 = vrot.slane %v2959, 7
        %v2962 = vshll.u32 %v2701, 16
        %v2964 = vor.u32 %v2961, %v2962
        %v2965 = vrot.slane %v2961, 4
        %v2967 = vshrl.u32 %v2702, 16
        %v2969 = vrot.slane %v2967, 7
        %v2970 = vshll.u32 %v2702, 16
        %v2972 = vor.u32 %v2969, %v2970
        %v2973 = vsel %vm853, %v2965, %v2972
        %v2974 = vrot.slane %v2969, 4
        %s3023 = scalar_lea.vmem [#allocation3], 12
        %v3024 = vld [vmem:[%s3023] sm:$0xf]
        %v3025 = vsel %vm1176, %v2709, %v3024
        %3026 = vst [vmem:[%s3023] sm:$0xf] %v3025
        %3027 = vst.msk [vmem:[%s3023 + $0x4] sm:$0xf] %vm377, %v2718
        %v3028 = vld [vmem:[%s3023 + $0x8] sm:$0x1]
        %v3029 = vsel %vm388, %v2719, %v3028
        %3030 = vst [vmem:[%s3023 + $0x8] sm:$0x1] %v3029
        %v3031 = vld [vmem:[%s3023 + $0xc] sm:$0xf]
        %v3032 = vsel %vm1176, %v2726, %v3031
        %3033 = vst [vmem:[%s3023 + $0xc] sm:$0xf] %v3032
        %3034 = vst.msk [vmem:[%s3023 + $0x10] sm:$0xf] %vm377, %v2735
        %v3035 = vld [vmem:[%s3023 + $0x14] sm:$0x1]
        %v3036 = vsel %vm388, %v2736, %v3035
        %3037 = vst [vmem:[%s3023 + $0x14] sm:$0x1] %v3036
        %v3038 = vld [vmem:[%s3023 + $0x18] sm:$0xf]
        %v3039 = vsel %vm1176, %v2743, %v3038
        %3040 = vst [vmem:[%s3023 + $0x18] sm:$0xf] %v3039
        %3041 = vst.msk [vmem:[%s3023 + $0x1c] sm:$0xf] %vm377, %v2752
        %v3042 = vld [vmem:[%s3023 + $0x20] sm:$0x1]
        %v3043 = vsel %vm388, %v2753, %v3042
        %3044 = vst [vmem:[%s3023 + $0x20] sm:$0x1] %v3043
        %v3045 = vld [vmem:[%s3023 + $0x24] sm:$0xf]
        %v3046 = vsel %vm1176, %v2760, %v3045
        %3047 = vst [vmem:[%s3023 + $0x24] sm:$0xf] %v3046
        %3048 = vst.msk [vmem:[%s3023 + $0x28] sm:$0xf] %vm377, %v2769
        %v3049 = vld [vmem:[%s3023 + $0x2c] sm:$0x1]
        %v3050 = vsel %vm388, %v2770, %v3049
        %3051 = vst [vmem:[%s3023 + $0x2c] sm:$0x1] %v3050
        %v3052 = vld [vmem:[%s3023 + $0x30] sm:$0xf]
        %v3053 = vsel %vm1176, %v2777, %v3052
        %3054 = vst [vmem:[%s3023 + $0x30] sm:$0xf] %v3053
        %3055 = vst.msk [vmem:[%s3023 + $0x34] sm:$0xf] %vm377, %v2786
        %v3056 = vld [vmem:[%s3023 + $0x38] sm:$0x1]
        %v3057 = vsel %vm388, %v2787, %v3056
        %3058 = vst [vmem:[%s3023 + $0x38] sm:$0x1] %v3057
        %v3059 = vld [vmem:[%s3023 + $0x3c] sm:$0xf]
        %v3060 = vsel %vm1176, %v2794, %v3059
        %3061 = vst [vmem:[%s3023 + $0x3c] sm:$0xf] %v3060
        %3062 = vst.msk [vmem:[%s3023 + $0x40] sm:$0xf] %vm377, %v2803
        %v3063 = vld [vmem:[%s3023 + $0x44] sm:$0x1]
        %v3064 = vsel %vm388, %v2804, %v3063
        %3065 = vst [vmem:[%s3023 + $0x44] sm:$0x1] %v3064
        %v3066 = vld [vmem:[%s3023 + $0x48] sm:$0xf]
        %v3067 = vsel %vm1176, %v2811, %v3066
        %3068 = vst [vmem:[%s3023 + $0x48] sm:$0xf] %v3067
        %3069 = vst.msk [vmem:[%s3023 + $0x4c] sm:$0xf] %vm377, %v2820
        %v3070 = vld [vmem:[%s3023 + $0x50] sm:$0x1]
        %v3071 = vsel %vm388, %v2821, %v3070
        %3072 = vst [vmem:[%s3023 + $0x50] sm:$0x1] %v3071
        %v3073 = vld [vmem:[%s3023 + $0x54] sm:$0xf]
        %v3074 = vsel %vm1176, %v2828, %v3073
        %3075 = vst [vmem:[%s3023 + $0x54] sm:$0xf] %v3074
        %3076 = vst.msk [vmem:[%s3023 + $0x58] sm:$0xf] %vm377, %v2837
        %v3077 = vld [vmem:[%s3023 + $0x5c] sm:$0x1]
        %v3078 = vsel %vm388, %v2838, %v3077
        %3079 = vst [vmem:[%s3023 + $0x5c] sm:$0x1] %v3078
        %v3080 = vld [vmem:[%s3023 + $0x60] sm:$0xf]
        %v3081 = vsel %vm1176, %v2845, %v3080
        %3082 = vst [vmem:[%s3023 + $0x60] sm:$0xf] %v3081
        %3083 = vst.msk [vmem:[%s3023 + $0x64] sm:$0xf] %vm377, %v2854
        %v3084 = vld [vmem:[%s3023 + $0x68] sm:$0x1]
        %v3085 = vsel %vm388, %v2855, %v3084
        %3086 = vst [vmem:[%s3023 + $0x68] sm:$0x1] %v3085
        %v3087 = vld [vmem:[%s3023 + $0x6c] sm:$0xf]
        %v3088 = vsel %vm1176, %v2862, %v3087
        %3089 = vst [vmem:[%s3023 + $0x6c] sm:$0xf] %v3088
        %3090 = vst.msk [vmem:[%s3023 + $0x70] sm:$0xf] %vm377, %v2871
        %v3091 = vld [vmem:[%s3023 + $0x74] sm:$0x1]
        %v3092 = vsel %vm388, %v2872, %v3091
        %3093 = vst [vmem:[%s3023 + $0x74] sm:$0x1] %v3092
        %v3094 = vld [vmem:[%s3023 + $0x78] sm:$0xf]
        %v3095 = vsel %vm1176, %v2879, %v3094
        %3096 = vst [vmem:[%s3023 + $0x78] sm:$0xf] %v3095
        %3097 = vst.msk [vmem:[%s3023 + $0x7c] sm:$0xf] %vm377, %v2888
        %v3098 = vld [vmem:[%s3023 + $0x80] sm:$0x1]
        %v3099 = vsel %vm388, %v2889, %v3098
        %3100 = vst [vmem:[%s3023 + $0x80] sm:$0x1] %v3099
        %v3101 = vld [vmem:[%s3023 + $0x84] sm:$0xf]
        %v3102 = vsel %vm1176, %v2896, %v3101
        %3103 = vst [vmem:[%s3023 + $0x84] sm:$0xf] %v3102
        %3104 = vst.msk [vmem:[%s3023 + $0x88] sm:$0xf] %vm377, %v2905
        %v3105 = vld [vmem:[%s3023 + $0x8c] sm:$0x1]
        %v3106 = vsel %vm388, %v2906, %v3105
        %3107 = vst [vmem:[%s3023 + $0x8c] sm:$0x1] %v3106
        %v3108 = vld [vmem:[%s3023 + $0x90] sm:$0xf]
        %v3109 = vsel %vm1176, %v2913, %v3108
        %3110 = vst [vmem:[%s3023 + $0x90] sm:$0xf] %v3109
        %3111 = vst.msk [vmem:[%s3023 + $0x94] sm:$0xf] %vm377, %v2922
        %v3112 = vld [vmem:[%s3023 + $0x98] sm:$0x1]
        %v3113 = vsel %vm388, %v2923, %v3112
        %3114 = vst [vmem:[%s3023 + $0x98] sm:$0x1] %v3113
        %v3115 = vld [vmem:[%s3023 + $0x9c] sm:$0xf]
        %v3116 = vsel %vm1176, %v2930, %v3115
        %3117 = vst [vmem:[%s3023 + $0x9c] sm:$0xf] %v3116
        %3118 = vst.msk [vmem:[%s3023 + $0xa0] sm:$0xf] %vm377, %v2939
        %v3119 = vld [vmem:[%s3023 + $0xa4] sm:$0x1]
        %v3120 = vsel %vm388, %v2940, %v3119
        %3121 = vst [vmem:[%s3023 + $0xa4] sm:$0x1] %v3120
        %v3122 = vld [vmem:[%s3023 + $0xa8] sm:$0xf]
        %v3123 = vsel %vm1176, %v2947, %v3122
        %3124 = vst [vmem:[%s3023 + $0xa8] sm:$0xf] %v3123
        %3125 = vst.msk [vmem:[%s3023 + $0xac] sm:$0xf] %vm377, %v2956
        %v3126 = vld [vmem:[%s3023 + $0xb0] sm:$0x1]
        %v3127 = vsel %vm388, %v2957, %v3126
        %3128 = vst [vmem:[%s3023 + $0xb0] sm:$0x1] %v3127
        %v3129 = vld [vmem:[%s3023 + $0xb4] sm:$0xf]
        %v3130 = vsel %vm1176, %v2964, %v3129
        %3131 = vst [vmem:[%s3023 + $0xb4] sm:$0xf] %v3130
        %3132 = vst.msk [vmem:[%s3023 + $0xb8] sm:$0xf] %vm377, %v2973
        %v3133 = vld [vmem:[%s3023 + $0xbc] sm:$0x1]
        %v3134 = vsel %vm388, %v2974, %v3133
        %3135 = vst [vmem:[%s3023 + $0xbc] sm:$0x1] %v3134
        %v3136 = vld [vmem:[#allocation3] sm:$0xf]
        %v3137 = vld [vmem:[#allocation3 + $0x4] sm:$0xf]
        %v3138 = vld [vmem:[#allocation3 + $0x8] sm:$0x1]
        %v3139 = vld [vmem:[#allocation3 + $0xc] sm:$0xf]
        %v3140 = vld [vmem:[#allocation3 + $0x10] sm:$0xf]
        %v3141 = vld [vmem:[#allocation3 + $0x14] sm:$0x1]
        %v3142 = vld [vmem:[#allocation3 + $0x18] sm:$0xf]
        %v3143 = vld [vmem:[#allocation3 + $0x1c] sm:$0xf]
        %v3144 = vld [vmem:[#allocation3 + $0x20] sm:$0x1]
        %v3145 = vld [vmem:[#allocation3 + $0x24] sm:$0xf]
        %v3146 = vld [vmem:[#allocation3 + $0x28] sm:$0xf]
        %v3147 = vld [vmem:[#allocation3 + $0x2c] sm:$0x1]
        %v3148 = vld [vmem:[#allocation3 + $0x30] sm:$0xf]
        %v3149 = vld [vmem:[#allocation3 + $0x34] sm:$0xf]
        %v3150 = vld [vmem:[#allocation3 + $0x38] sm:$0x1]
        %v3151 = vld [vmem:[#allocation3 + $0x3c] sm:$0xf]
        %v3152 = vld [vmem:[#allocation3 + $0x40] sm:$0xf]
        %v3153 = vld [vmem:[#allocation3 + $0x44] sm:$0x1]
        %v3154 = vld [vmem:[#allocation3 + $0x48] sm:$0xf]
        %v3155 = vld [vmem:[#allocation3 + $0x4c] sm:$0xf]
        %v3156 = vld [vmem:[#allocation3 + $0x50] sm:$0x1]
        %v3157 = vld [vmem:[#allocation3 + $0x54] sm:$0xf]
        %v3158 = vld [vmem:[#allocation3 + $0x58] sm:$0xf]
        %v3159 = vld [vmem:[#allocation3 + $0x5c] sm:$0x1]
        %v3160 = vld [vmem:[#allocation3 + $0x60] sm:$0xf]
        %v3161 = vld [vmem:[#allocation3 + $0x64] sm:$0xf]
        %v3162 = vld [vmem:[#allocation3 + $0x68] sm:$0x1]
        %v3163 = vld [vmem:[#allocation3 + $0x6c] sm:$0xf]
        %v3164 = vld [vmem:[#allocation3 + $0x70] sm:$0xf]
        %v3165 = vld [vmem:[#allocation3 + $0x74] sm:$0x1]
        %v3166 = vld [vmem:[#allocation3 + $0x78] sm:$0xf]
        %v3167 = vld [vmem:[#allocation3 + $0x7c] sm:$0xf]
        %v3168 = vld [vmem:[#allocation3 + $0x80] sm:$0x1]
        %v3169 = vld [vmem:[#allocation3 + $0x84] sm:$0xf]
        %v3170 = vld [vmem:[#allocation3 + $0x88] sm:$0xf]
        %v3171 = vld [vmem:[#allocation3 + $0x8c] sm:$0x1]
        %v3172 = vld [vmem:[#allocation3 + $0x90] sm:$0xf]
        %v3173 = vld [vmem:[#allocation3 + $0x94] sm:$0xf]
        %v3174 = vld [vmem:[#allocation3 + $0x98] sm:$0x1]
        %v3175 = vld [vmem:[#allocation3 + $0x9c] sm:$0xf]
        %v3176 = vld [vmem:[#allocation3 + $0xa0] sm:$0xf]
        %v3177 = vld [vmem:[#allocation3 + $0xa4] sm:$0x1]
        %v3178 = vld [vmem:[#allocation3 + $0xa8] sm:$0xf]
        %v3179 = vld [vmem:[#allocation3 + $0xac] sm:$0xf]
        %v3180 = vld [vmem:[#allocation3 + $0xb0] sm:$0x1]
        %v3181 = vld [vmem:[#allocation3 + $0xb4] sm:$0xf]
        %v3182 = vld [vmem:[#allocation3 + $0xb8] sm:$0xf]
        %v3183 = vld [vmem:[#allocation3 + $0xbc] sm:$0x1]
        %v3184 = vld [vmem:[#allocation3 + $0xc0] sm:$0xf]
        %v3185 = vld [vmem:[#allocation3 + $0xc4] sm:$0xf]
        %v3186 = vld [vmem:[#allocation3 + $0xc8] sm:$0x1]
        %v3187 = vld [vmem:[#allocation3 + $0xcc] sm:$0xf]
        %v3188 = vld [vmem:[#allocation3 + $0xd0] sm:$0xf]
        %v3189 = vld [vmem:[#allocation3 + $0xd4] sm:$0x1]
        %v3222 = vunpack.c.l.b16 %v3136
        %v3223 = vunpack.c.l.b16 %v3137
        %v3224 = vunpack.c.l.b16 %v3139
        %v3225 = vunpack.c.l.b16 %v3140
        %v3226 = vunpack.c.l.b16 %v3142
        %v3227 = vunpack.c.l.b16 %v3143
        %v3228 = vunpack.c.l.b16 %v3145
        %v3229 = vunpack.c.l.b16 %v3146
        %v3230 = vunpack.c.l.b16 %v3148
        %v3231 = vunpack.c.l.b16 %v3149
        %v3232 = vunpack.c.l.b16 %v3151
        %v3233 = vunpack.c.l.b16 %v3152
        %v3234 = vunpack.c.l.b16 %v3154
        %v3235 = vunpack.c.l.b16 %v3155
        %v3236 = vunpack.c.l.b16 %v3157
        %v3237 = vunpack.c.l.b16 %v3158
        %v3238 = vunpack.c.l.b16 %v3160
        %v3239 = vunpack.c.l.b16 %v3161
        %v3240 = vunpack.c.l.b16 %v3163
        %v3241 = vunpack.c.l.b16 %v3164
        %v3242 = vunpack.c.l.b16 %v3166
        %v3243 = vunpack.c.l.b16 %v3167
        %v3244 = vunpack.c.l.b16 %v3169
        %v3245 = vunpack.c.l.b16 %v3170
        %v3246 = vunpack.c.l.b16 %v3172
        %v3247 = vunpack.c.l.b16 %v3173
        %v3248 = vunpack.c.l.b16 %v3175
        %v3249 = vunpack.c.l.b16 %v3176
        %v3250 = vunpack.c.l.b16 %v3178
        %v3251 = vunpack.c.l.b16 %v3179
        %v3252 = vunpack.c.l.b16 %v3181
        %v3253 = vunpack.c.l.b16 %v3182
        %v3254 = vpack.c.b16 %v3223, %v3222
        %v3255 = vpack.c.b16 %v3225, %v3224
        %v3256 = vpack.c.b16 %v3227, %v3226
        %v3257 = vpack.c.b16 %v3229, %v3228
        %v3258 = vpack.c.b16 %v3231, %v3230
        %v3259 = vpack.c.b16 %v3233, %v3232
        %v3260 = vpack.c.b16 %v3235, %v3234
        %v3261 = vpack.c.b16 %v3237, %v3236
        %v3262 = vpack.c.b16 %v3239, %v3238
        %v3263 = vpack.c.b16 %v3241, %v3240
        %v3264 = vpack.c.b16 %v3243, %v3242
        %v3265 = vpack.c.b16 %v3245, %v3244
        %v3266 = vpack.c.b16 %v3247, %v3246
        %v3267 = vpack.c.b16 %v3249, %v3248
        %v3268 = vpack.c.b16 %v3251, %v3250
        %v3269 = vpack.c.b16 %v3253, %v3252
        %v3286 = vunpack.c.l.b16 %v3138
        %v3287 = vunpack.c.l.b16 %v3141
        %v3288 = vunpack.c.l.b16 %v3144
        %v3289 = vunpack.c.l.b16 %v3147
        %v3290 = vunpack.c.l.b16 %v3150
        %v3291 = vunpack.c.l.b16 %v3153
        %v3292 = vunpack.c.l.b16 %v3156
        %v3293 = vunpack.c.l.b16 %v3159
        %v3294 = vunpack.c.l.b16 %v3162
        %v3295 = vunpack.c.l.b16 %v3165
        %v3296 = vunpack.c.l.b16 %v3168
        %v3297 = vunpack.c.l.b16 %v3171
        %v3298 = vunpack.c.l.b16 %v3174
        %v3299 = vunpack.c.l.b16 %v3177
        %v3300 = vunpack.c.l.b16 %v3180
        %v3301 = vunpack.c.l.b16 %v3183
        %v3302 = vpack.c.b16 %v3286, %v3286
        %v3303 = vpack.c.b16 %v3287, %v3287
        %v3304 = vpack.c.b16 %v3288, %v3288
        %v3305 = vpack.c.b16 %v3289, %v3289
        %v3306 = vpack.c.b16 %v3290, %v3290
        %v3307 = vpack.c.b16 %v3291, %v3291
        %v3308 = vpack.c.b16 %v3292, %v3292
        %v3309 = vpack.c.b16 %v3293, %v3293
        %v3310 = vpack.c.b16 %v3294, %v3294
        %v3311 = vpack.c.b16 %v3295, %v3295
        %v3312 = vpack.c.b16 %v3296, %v3296
        %v3313 = vpack.c.b16 %v3297, %v3297
        %v3314 = vpack.c.b16 %v3298, %v3298
        %v3315 = vpack.c.b16 %v3299, %v3299
        %v3316 = vpack.c.b16 %v3300, %v3300
        %v3317 = vpack.c.b16 %v3301, %v3301
        %v3319 = vshrl.u32 %v3254, 16
        %v3321 = vshll.u32 %v3254, 16
        %v3323 = vrot.slane %v3321, 1
        %v3324 = vor.u32 %v3319, %v3323
        %v3326 = vshll.u32 %v3302, 16
        %v3328 = vrot.slane %v3326, 1
        %v3329 = vsel %vm1471, %v3324, %v3328
        %v3331 = vshrl.u32 %v3255, 16
        %v3333 = vshll.u32 %v3255, 16
        %v3335 = vrot.slane %v3333, 1
        %v3336 = vor.u32 %v3331, %v3335
        %v3338 = vshll.u32 %v3303, 16
        %v3340 = vrot.slane %v3338, 1
        %v3341 = vsel %vm1471, %v3336, %v3340
        %v3343 = vshrl.u32 %v3256, 16
        %v3345 = vshll.u32 %v3256, 16
        %v3347 = vrot.slane %v3345, 1
        %v3348 = vor.u32 %v3343, %v3347
        %v3350 = vshll.u32 %v3304, 16
        %v3352 = vrot.slane %v3350, 1
        %v3353 = vsel %vm1471, %v3348, %v3352
        %v3355 = vshrl.u32 %v3257, 16
        %v3357 = vshll.u32 %v3257, 16
        %v3359 = vrot.slane %v3357, 1
        %v3360 = vor.u32 %v3355, %v3359
        %v3362 = vshll.u32 %v3305, 16
        %v3364 = vrot.slane %v3362, 1
        %v3365 = vsel %vm1471, %v3360, %v3364
        %v3367 = vshrl.u32 %v3258, 16
        %v3369 = vshll.u32 %v3258, 16
        %v3371 = vrot.slane %v3369, 1
        %v3372 = vor.u32 %v3367, %v3371
        %v3374 = vshll.u32 %v3306, 16
        %v3376 = vrot.slane %v3374, 1
        %v3377 = vsel %vm1471, %v3372, %v3376
        %v3379 = vshrl.u32 %v3259, 16
        %v3381 = vshll.u32 %v3259, 16
        %v3383 = vrot.slane %v3381, 1
        %v3384 = vor.u32 %v3379, %v3383
        %v3386 = vshll.u32 %v3307, 16
        %v3388 = vrot.slane %v3386, 1
        %v3389 = vsel %vm1471, %v3384, %v3388
        %v3391 = vshrl.u32 %v3260, 16
        %v3393 = vshll.u32 %v3260, 16
        %v3395 = vrot.slane %v3393, 1
        %v3396 = vor.u32 %v3391, %v3395
        %v3398 = vshll.u32 %v3308, 16
        %v3400 = vrot.slane %v3398, 1
        %v3401 = vsel %vm1471, %v3396, %v3400
        %v3403 = vshrl.u32 %v3261, 16
        %v3405 = vshll.u32 %v3261, 16
        %v3407 = vrot.slane %v3405, 1
        %v3408 = vor.u32 %v3403, %v3407
        %v3410 = vshll.u32 %v3309, 16
        %v3412 = vrot.slane %v3410, 1
        %v3413 = vsel %vm1471, %v3408, %v3412
        %v3415 = vshrl.u32 %v3262, 16
        %v3417 = vshll.u32 %v3262, 16
        %v3419 = vrot.slane %v3417, 1
        %v3420 = vor.u32 %v3415, %v3419
        %v3422 = vshll.u32 %v3310, 16
        %v3424 = vrot.slane %v3422, 1
        %v3425 = vsel %vm1471, %v3420, %v3424
        %v3427 = vshrl.u32 %v3263, 16
        %v3429 = vshll.u32 %v3263, 16
        %v3431 = vrot.slane %v3429, 1
        %v3432 = vor.u32 %v3427, %v3431
        %v3434 = vshll.u32 %v3311, 16
        %v3436 = vrot.slane %v3434, 1
        %v3437 = vsel %vm1471, %v3432, %v3436
        %v3439 = vshrl.u32 %v3264, 16
        %v3441 = vshll.u32 %v3264, 16
        %v3443 = vrot.slane %v3441, 1
        %v3444 = vor.u32 %v3439, %v3443
        %v3446 = vshll.u32 %v3312, 16
        %v3448 = vrot.slane %v3446, 1
        %v3449 = vsel %vm1471, %v3444, %v3448
        %v3451 = vshrl.u32 %v3265, 16
        %v3453 = vshll.u32 %v3265, 16
        %v3455 = vrot.slane %v3453, 1
        %v3456 = vor.u32 %v3451, %v3455
        %v3458 = vshll.u32 %v3313, 16
        %v3460 = vrot.slane %v3458, 1
        %v3461 = vsel %vm1471, %v3456, %v3460
        %v3463 = vshrl.u32 %v3266, 16
        %v3465 = vshll.u32 %v3266, 16
        %v3467 = vrot.slane %v3465, 1
        %v3468 = vor.u32 %v3463, %v3467
        %v3470 = vshll.u32 %v3314, 16
        %v3472 = vrot.slane %v3470, 1
        %v3473 = vsel %vm1471, %v3468, %v3472
        %v3475 = vshrl.u32 %v3267, 16
        %v3477 = vshll.u32 %v3267, 16
        %v3479 = vrot.slane %v3477, 1
        %v3480 = vor.u32 %v3475, %v3479
        %v3482 = vshll.u32 %v3315, 16
        %v3484 = vrot.slane %v3482, 1
        %v3485 = vsel %vm1471, %v3480, %v3484
        %v3487 = vshrl.u32 %v3268, 16
        %v3489 = vshll.u32 %v3268, 16
        %v3491 = vrot.slane %v3489, 1
        %v3492 = vor.u32 %v3487, %v3491
        %v3494 = vshll.u32 %v3316, 16
        %v3496 = vrot.slane %v3494, 1
        %v3497 = vsel %vm1471, %v3492, %v3496
        %v3499 = vshrl.u32 %v3269, 16
        %v3501 = vshll.u32 %v3269, 16
        %v3503 = vrot.slane %v3501, 1
        %v3504 = vor.u32 %v3499, %v3503
        %v3506 = vshll.u32 %v3317, 16
        %v3508 = vrot.slane %v3506, 1
        %v3509 = vsel %vm1471, %v3504, %v3508
        %3510 = vrot.lane.b32.xlu0 %v3329, 4
        %v3511 = vpop.permute.xlu0 %3510
        %3512 = vrot.lane.b32.xlu0 %v3341, 4
        %v3513 = vpop.permute.xlu0 %3512
        %3514 = vrot.lane.b32.xlu0 %v3353, 4
        %v3515 = vpop.permute.xlu0 %3514
        %3516 = vrot.lane.b32.xlu0 %v3365, 4
        %v3517 = vpop.permute.xlu0 %3516
        %3518 = vrot.lane.b32.xlu0 %v3377, 4
        %v3519 = vpop.permute.xlu0 %3518
        %3520 = vrot.lane.b32.xlu0 %v3389, 4
        %v3521 = vpop.permute.xlu0 %3520
        %3522 = vrot.lane.b32.xlu0 %v3401, 4
        %v3523 = vpop.permute.xlu0 %3522
        %3524 = vrot.lane.b32.xlu0 %v3413, 4
        %v3525 = vpop.permute.xlu0 %3524
        %3526 = vrot.lane.b32.xlu0 %v3425, 4
        %v3527 = vpop.permute.xlu0 %3526
        %3528 = vrot.lane.b32.xlu0 %v3437, 4
        %v3529 = vpop.permute.xlu0 %3528
        %3530 = vrot.lane.b32.xlu0 %v3449, 4
        %v3531 = vpop.permute.xlu0 %3530
        %3532 = vrot.lane.b32.xlu0 %v3461, 4
        %v3533 = vpop.permute.xlu0 %3532
        %3534 = vrot.lane.b32.xlu0 %v3473, 4
        %v3535 = vpop.permute.xlu0 %3534
        %3536 = vrot.lane.b32.xlu0 %v3485, 4
        %v3537 = vpop.permute.xlu0 %3536
        %3538 = vrot.lane.b32.xlu0 %v3497, 4
        %v3539 = vpop.permute.xlu0 %3538
        %3540 = vrot.lane.b32.xlu0 %v3509, 4
        %v3541 = vpop.permute.xlu0 %3540
        %v3542 = vrot.slane %v3254, 1
        %v3543 = vrot.slane %v3302, 1
        %v3544 = vsel %vm1696, %v3542, %v3543
        %v3545 = vrot.slane %v3255, 1
        %v3546 = vrot.slane %v3303, 1
        %v3547 = vsel %vm1696, %v3545, %v3546
        %v3548 = vrot.slane %v3256, 1
        %v3549 = vrot.slane %v3304, 1
        %v3550 = vsel %vm1696, %v3548, %v3549
        %v3551 = vrot.slane %v3257, 1
        %v3552 = vrot.slane %v3305, 1
        %v3553 = vsel %vm1696, %v3551, %v3552
        %v3554 = vrot.slane %v3258, 1
        %v3555 = vrot.slane %v3306, 1
        %v3556 = vsel %vm1696, %v3554, %v3555
        %v3557 = vrot.slane %v3259, 1
        %v3558 = vrot.slane %v3307, 1
        %v3559 = vsel %vm1696, %v3557, %v3558
        %v3560 = vrot.slane %v3260, 1
        %v3561 = vrot.slane %v3308, 1
        %v3562 = vsel %vm1696, %v3560, %v3561
        %v3563 = vrot.slane %v3261, 1
        %v3564 = vrot.slane %v3309, 1
        %v3565 = vsel %vm1696, %v3563, %v3564
        %v3566 = vrot.slane %v3262, 1
        %v3567 = vrot.slane %v3310, 1
        %v3568 = vsel %vm1696, %v3566, %v3567
        %v3569 = vrot.slane %v3263, 1
        %v3570 = vrot.slane %v3311, 1
        %v3571 = vsel %vm1696, %v3569, %v3570
        %v3572 = vrot.slane %v3264, 1
        %v3573 = vrot.slane %v3312, 1
        %v3574 = vsel %vm1696, %v3572, %v3573
        %v3575 = vrot.slane %v3265, 1
        %v3576 = vrot.slane %v3313, 1
        %v3577 = vsel %vm1696, %v3575, %v3576
        %v3578 = vrot.slane %v3266, 1
        %v3579 = vrot.slane %v3314, 1
        %v3580 = vsel %vm1696, %v3578, %v3579
        %v3581 = vrot.slane %v3267, 1
        %v3582 = vrot.slane %v3315, 1
        %v3583 = vsel %vm1696, %v3581, %v3582
        %v3584 = vrot.slane %v3268, 1
        %v3585 = vrot.slane %v3316, 1
        %v3586 = vsel %vm1696, %v3584, %v3585
        %v3587 = vrot.slane %v3269, 1
        %v3588 = vrot.slane %v3317, 1
        %v3589 = vsel %vm1696, %v3587, %v3588
        %3590 = vrot.lane.b32.xlu0 %v3544, 8
        %v3591 = vpop.permute.xlu0 %3590
        %3592 = vrot.lane.b32.xlu0 %v3547, 8
        %v3593 = vpop.permute.xlu0 %3592
        %3594 = vrot.lane.b32.xlu0 %v3550, 8
        %v3595 = vpop.permute.xlu0 %3594
        %3596 = vrot.lane.b32.xlu0 %v3553, 8
        %v3597 = vpop.permute.xlu0 %3596
        %3598 = vrot.lane.b32.xlu0 %v3556, 8
        %v3599 = vpop.permute.xlu0 %3598
        %3600 = vrot.lane.b32.xlu0 %v3559, 8
        %v3601 = vpop.permute.xlu0 %3600
        %3602 = vrot.lane.b32.xlu0 %v3562, 8
        %v3603 = vpop.permute.xlu0 %3602
        %3604 = vrot.lane.b32.xlu0 %v3565, 8
        %v3605 = vpop.permute.xlu0 %3604
        %3606 = vrot.lane.b32.xlu0 %v3568, 8
        %v3607 = vpop.permute.xlu0 %3606
        %3608 = vrot.lane.b32.xlu0 %v3571, 8
        %v3609 = vpop.permute.xlu0 %3608
        %3610 = vrot.lane.b32.xlu0 %v3574, 8
        %v3611 = vpop.permute.xlu0 %3610
        %3612 = vrot.lane.b32.xlu0 %v3577, 8
        %v3613 = vpop.permute.xlu0 %3612
        %3614 = vrot.lane.b32.xlu0 %v3580, 8
        %v3615 = vpop.permute.xlu0 %3614
        %3616 = vrot.lane.b32.xlu0 %v3583, 8
        %v3617 = vpop.permute.xlu0 %3616
        %3618 = vrot.lane.b32.xlu0 %v3586, 8
        %v3619 = vpop.permute.xlu0 %3618
        %3620 = vrot.lane.b32.xlu0 %v3589, 8
        %v3621 = vpop.permute.xlu0 %3620
        %v3624 = vunpack.c.l.b16 %v3184
        %v3625 = vunpack.c.l.b16 %v3185
        %v3626 = vpack.c.b16 %v3625, %v3624
        %3627 = vrot.lane.b32.xlu0 %v3255, 12
        %v3628 = vpop.permute.xlu0 %3627
        %3629 = vrot.lane.b32.xlu0 %v3256, 12
        %v3630 = vpop.permute.xlu0 %3629
        %3631 = vrot.lane.b32.xlu0 %v3257, 12
        %v3632 = vpop.permute.xlu0 %3631
        %3633 = vrot.lane.b32.xlu0 %v3258, 12
        %v3634 = vpop.permute.xlu0 %3633
        %3635 = vrot.lane.b32.xlu0 %v3259, 12
        %v3636 = vpop.permute.xlu0 %3635
        %3637 = vrot.lane.b32.xlu0 %v3260, 12
        %v3638 = vpop.permute.xlu0 %3637
        %3639 = vrot.lane.b32.xlu0 %v3261, 12
        %v3640 = vpop.permute.xlu0 %3639
        %3641 = vrot.lane.b32.xlu0 %v3262, 12
        %v3642 = vpop.permute.xlu0 %3641
        %3643 = vrot.lane.b32.xlu0 %v3263, 12
        %v3644 = vpop.permute.xlu0 %3643
        %3645 = vrot.lane.b32.xlu0 %v3264, 12
        %v3646 = vpop.permute.xlu0 %3645
        %3647 = vrot.lane.b32.xlu0 %v3265, 12
        %v3648 = vpop.permute.xlu0 %3647
        %3649 = vrot.lane.b32.xlu0 %v3266, 12
        %v3650 = vpop.permute.xlu0 %3649
        %3651 = vrot.lane.b32.xlu0 %v3267, 12
        %v3652 = vpop.permute.xlu0 %3651
        %3653 = vrot.lane.b32.xlu0 %v3268, 12
        %v3654 = vpop.permute.xlu0 %3653
        %3655 = vrot.lane.b32.xlu0 %v3269, 12
        %v3656 = vpop.permute.xlu0 %3655
        %3657 = vrot.lane.b32.xlu0 %v3626, 12
        %v3658 = vpop.permute.xlu0 %3657
        %v3660 = vunpack.c.l.b16 %v3186
        %v3661 = vpack.c.b16 %v3660, %v3660
        %v3663 = vshrl.u32 %v3626, 16
        %v3665 = vshll.u32 %v3626, 16
        %v3667 = vrot.slane %v3665, 1
        %v3668 = vor.u32 %v3663, %v3667
        %v3670 = vshll.u32 %v3661, 16
        %v3672 = vrot.slane %v3670, 1
        %v3673 = vsel %vm1471, %v3668, %v3672
        %3674 = vrot.lane.b32.xlu0 %v3341, 16
        %v3675 = vpop.permute.xlu0 %3674
        %3676 = vrot.lane.b32.xlu0 %v3353, 16
        %v3677 = vpop.permute.xlu0 %3676
        %3678 = vrot.lane.b32.xlu0 %v3365, 16
        %v3679 = vpop.permute.xlu0 %3678
        %3680 = vrot.lane.b32.xlu0 %v3377, 16
        %v3681 = vpop.permute.xlu0 %3680
        %3682 = vrot.lane.b32.xlu0 %v3389, 16
        %v3683 = vpop.permute.xlu0 %3682
        %3684 = vrot.lane.b32.xlu0 %v3401, 16
        %v3685 = vpop.permute.xlu0 %3684
        %3686 = vrot.lane.b32.xlu0 %v3413, 16
        %v3687 = vpop.permute.xlu0 %3686
        %3688 = vrot.lane.b32.xlu0 %v3425, 16
        %v3689 = vpop.permute.xlu0 %3688
        %3690 = vrot.lane.b32.xlu0 %v3437, 16
        %v3691 = vpop.permute.xlu0 %3690
        %3692 = vrot.lane.b32.xlu0 %v3449, 16
        %v3693 = vpop.permute.xlu0 %3692
        %3694 = vrot.lane.b32.xlu0 %v3461, 16
        %v3695 = vpop.permute.xlu0 %3694
        %3696 = vrot.lane.b32.xlu0 %v3473, 16
        %v3697 = vpop.permute.xlu0 %3696
        %3698 = vrot.lane.b32.xlu0 %v3485, 16
        %v3699 = vpop.permute.xlu0 %3698
        %3700 = vrot.lane.b32.xlu0 %v3497, 16
        %v3701 = vpop.permute.xlu0 %3700
        %3702 = vrot.lane.b32.xlu0 %v3509, 16
        %v3703 = vpop.permute.xlu0 %3702
        %3704 = vrot.lane.b32.xlu0 %v3673, 16
        %v3705 = vpop.permute.xlu0 %3704
        %v3706 = vrot.slane %v3626, 1
        %v3707 = vrot.slane %v3661, 1
        %v3708 = vsel %vm1696, %v3706, %v3707
        %3709 = vrot.lane.b32.xlu0 %v3547, 20
        %v3710 = vpop.permute.xlu0 %3709
        %3711 = vrot.lane.b32.xlu0 %v3550, 20
        %v3712 = vpop.permute.xlu0 %3711
        %3713 = vrot.lane.b32.xlu0 %v3553, 20
        %v3714 = vpop.permute.xlu0 %3713
        %3715 = vrot.lane.b32.xlu0 %v3556, 20
        %v3716 = vpop.permute.xlu0 %3715
        %3717 = vrot.lane.b32.xlu0 %v3559, 20
        %v3718 = vpop.permute.xlu0 %3717
        %3719 = vrot.lane.b32.xlu0 %v3562, 20
        %v3720 = vpop.permute.xlu0 %3719
        %3721 = vrot.lane.b32.xlu0 %v3565, 20
        %v3722 = vpop.permute.xlu0 %3721
        %3723 = vrot.lane.b32.xlu0 %v3568, 20
        %v3724 = vpop.permute.xlu0 %3723
        %3725 = vrot.lane.b32.xlu0 %v3571, 20
        %v3726 = vpop.permute.xlu0 %3725
        %3727 = vrot.lane.b32.xlu0 %v3574, 20
        %v3728 = vpop.permute.xlu0 %3727
        %3729 = vrot.lane.b32.xlu0 %v3577, 20
        %v3730 = vpop.permute.xlu0 %3729
        %3731 = vrot.lane.b32.xlu0 %v3580, 20
        %v3732 = vpop.permute.xlu0 %3731
        %3733 = vrot.lane.b32.xlu0 %v3583, 20
        %v3734 = vpop.permute.xlu0 %3733
        %3735 = vrot.lane.b32.xlu0 %v3586, 20
        %v3736 = vpop.permute.xlu0 %3735
        %3737 = vrot.lane.b32.xlu0 %v3589, 20
        %v3738 = vpop.permute.xlu0 %3737
        %3739 = vrot.lane.b32.xlu0 %v3708, 20
        %v3740 = vpop.permute.xlu0 %3739
        %v3743 = vunpack.c.l.b16 %v3187
        %v3744 = vunpack.c.l.b16 %v3188
        %v3745 = vpack.c.b16 %v3744, %v3743
        %3746 = vrot.lane.b32.xlu0 %v3256, 24
        %v3747 = vpop.permute.xlu0 %3746
        %3748 = vrot.lane.b32.xlu0 %v3257, 24
        %v3749 = vpop.permute.xlu0 %3748
        %3750 = vrot.lane.b32.xlu0 %v3258, 24
        %v3751 = vpop.permute.xlu0 %3750
        %3752 = vrot.lane.b32.xlu0 %v3259, 24
        %v3753 = vpop.permute.xlu0 %3752
        %3754 = vrot.lane.b32.xlu0 %v3260, 24
        %v3755 = vpop.permute.xlu0 %3754
        %3756 = vrot.lane.b32.xlu0 %v3261, 24
        %v3757 = vpop.permute.xlu0 %3756
        %3758 = vrot.lane.b32.xlu0 %v3262, 24
        %v3759 = vpop.permute.xlu0 %3758
        %3760 = vrot.lane.b32.xlu0 %v3263, 24
        %v3761 = vpop.permute.xlu0 %3760
        %3762 = vrot.lane.b32.xlu0 %v3264, 24
        %v3763 = vpop.permute.xlu0 %3762
        %3764 = vrot.lane.b32.xlu0 %v3265, 24
        %v3765 = vpop.permute.xlu0 %3764
        %3766 = vrot.lane.b32.xlu0 %v3266, 24
        %v3767 = vpop.permute.xlu0 %3766
        %3768 = vrot.lane.b32.xlu0 %v3267, 24
        %v3769 = vpop.permute.xlu0 %3768
        %3770 = vrot.lane.b32.xlu0 %v3268, 24
        %v3771 = vpop.permute.xlu0 %3770
        %3772 = vrot.lane.b32.xlu0 %v3269, 24
        %v3773 = vpop.permute.xlu0 %3772
        %3774 = vrot.lane.b32.xlu0 %v3626, 24
        %v3775 = vpop.permute.xlu0 %3774
        %3776 = vrot.lane.b32.xlu0 %v3745, 24
        %v3777 = vpop.permute.xlu0 %3776
        %v3779 = vunpack.c.l.b16 %v3189
        %v3780 = vpack.c.b16 %v3779, %v3779
        %v3782 = vshrl.u32 %v3745, 16
        %v3784 = vshll.u32 %v3745, 16
        %v3786 = vrot.slane %v3784, 1
        %v3787 = vor.u32 %v3782, %v3786
        %v3789 = vshll.u32 %v3780, 16
        %v3791 = vrot.slane %v3789, 1
        %v3792 = vsel %vm1471, %v3787, %v3791
        %3793 = vrot.lane.b32.xlu0 %v3353, 28
        %v3794 = vpop.permute.xlu0 %3793
        %3795 = vrot.lane.b32.xlu0 %v3365, 28
        %v3796 = vpop.permute.xlu0 %3795
        %3797 = vrot.lane.b32.xlu0 %v3377, 28
        %v3798 = vpop.permute.xlu0 %3797
        %3799 = vrot.lane.b32.xlu0 %v3389, 28
        %v3800 = vpop.permute.xlu0 %3799
        %3801 = vrot.lane.b32.xlu0 %v3401, 28
        %v3802 = vpop.permute.xlu0 %3801
        %3803 = vrot.lane.b32.xlu0 %v3413, 28
        %v3804 = vpop.permute.xlu0 %3803
        %3805 = vrot.lane.b32.xlu0 %v3425, 28
        %v3806 = vpop.permute.xlu0 %3805
        %3807 = vrot.lane.b32.xlu0 %v3437, 28
        %v3808 = vpop.permute.xlu0 %3807
        %3809 = vrot.lane.b32.xlu0 %v3449, 28
        %v3810 = vpop.permute.xlu0 %3809
        %3811 = vrot.lane.b32.xlu0 %v3461, 28
        %v3812 = vpop.permute.xlu0 %3811
        %3813 = vrot.lane.b32.xlu0 %v3473, 28
        %v3814 = vpop.permute.xlu0 %3813
        %3815 = vrot.lane.b32.xlu0 %v3485, 28
        %v3816 = vpop.permute.xlu0 %3815
        %3817 = vrot.lane.b32.xlu0 %v3497, 28
        %v3818 = vpop.permute.xlu0 %3817
        %3819 = vrot.lane.b32.xlu0 %v3509, 28
        %v3820 = vpop.permute.xlu0 %3819
        %3821 = vrot.lane.b32.xlu0 %v3673, 28
        %v3822 = vpop.permute.xlu0 %3821
        %3823 = vrot.lane.b32.xlu0 %v3792, 28
        %v3824 = vpop.permute.xlu0 %3823
        %v3825 = vrot.slane %v3745, 1
        %v3826 = vrot.slane %v3780, 1
        %v3827 = vsel %vm1696, %v3825, %v3826
        %3828 = vrot.lane.b32.xlu0 %v3550, 32
        %v3829 = vpop.permute.xlu0 %3828
        %3830 = vrot.lane.b32.xlu0 %v3553, 32
        %v3831 = vpop.permute.xlu0 %3830
        %3832 = vrot.lane.b32.xlu0 %v3556, 32
        %v3833 = vpop.permute.xlu0 %3832
        %3834 = vrot.lane.b32.xlu0 %v3559, 32
        %v3835 = vpop.permute.xlu0 %3834
        %3836 = vrot.lane.b32.xlu0 %v3562, 32
        %v3837 = vpop.permute.xlu0 %3836
        %3838 = vrot.lane.b32.xlu0 %v3565, 32
        %v3839 = vpop.permute.xlu0 %3838
        %3840 = vrot.lane.b32.xlu0 %v3568, 32
        %v3841 = vpop.permute.xlu0 %3840
        %3842 = vrot.lane.b32.xlu0 %v3571, 32
        %v3843 = vpop.permute.xlu0 %3842
        %3844 = vrot.lane.b32.xlu0 %v3574, 32
        %v3845 = vpop.permute.xlu0 %3844
        %3846 = vrot.lane.b32.xlu0 %v3577, 32
        %v3847 = vpop.permute.xlu0 %3846
        %3848 = vrot.lane.b32.xlu0 %v3580, 32
        %v3849 = vpop.permute.xlu0 %3848
        %3850 = vrot.lane.b32.xlu0 %v3583, 32
        %v3851 = vpop.permute.xlu0 %3850
        %3852 = vrot.lane.b32.xlu0 %v3586, 32
        %v3853 = vpop.permute.xlu0 %3852
        %3854 = vrot.lane.b32.xlu0 %v3589, 32
        %v3855 = vpop.permute.xlu0 %3854
        %3856 = vrot.lane.b32.xlu0 %v3708, 32
        %v3857 = vpop.permute.xlu0 %3856
        %3858 = vrot.lane.b32.xlu0 %v3827, 32
        %v3859 = vpop.permute.xlu0 %3858
        %v3861 = vsel %vm2015, %v3254, %v3511
        %v3863 = vsel %vm2015, %v3255, %v3513
        %v3865 = vsel %vm2015, %v3256, %v3515
        %v3867 = vsel %vm2015, %v3257, %v3517
        %v3869 = vsel %vm2015, %v3258, %v3519
        %v3871 = vsel %vm2015, %v3259, %v3521
        %v3873 = vsel %vm2015, %v3260, %v3523
        %v3875 = vsel %vm2015, %v3261, %v3525
        %v3877 = vsel %vm2015, %v3262, %v3527
        %v3879 = vsel %vm2015, %v3263, %v3529
        %v3881 = vsel %vm2015, %v3264, %v3531
        %v3883 = vsel %vm2015, %v3265, %v3533
        %v3885 = vsel %vm2015, %v3266, %v3535
        %v3887 = vsel %vm2015, %v3267, %v3537
        %v3889 = vsel %vm2015, %v3268, %v3539
        %v3891 = vsel %vm2015, %v3269, %v3541
        %v3893 = vsel %vm2048, %v3861, %v3591
        %v3895 = vsel %vm2048, %v3863, %v3593
        %v3897 = vsel %vm2048, %v3865, %v3595
        %v3899 = vsel %vm2048, %v3867, %v3597
        %v3901 = vsel %vm2048, %v3869, %v3599
        %v3903 = vsel %vm2048, %v3871, %v3601
        %v3905 = vsel %vm2048, %v3873, %v3603
        %v3907 = vsel %vm2048, %v3875, %v3605
        %v3909 = vsel %vm2048, %v3877, %v3607
        %v3911 = vsel %vm2048, %v3879, %v3609
        %v3913 = vsel %vm2048, %v3881, %v3611
        %v3915 = vsel %vm2048, %v3883, %v3613
        %v3917 = vsel %vm2048, %v3885, %v3615
        %v3919 = vsel %vm2048, %v3887, %v3617
        %v3921 = vsel %vm2048, %v3889, %v3619
        %v3923 = vsel %vm2048, %v3891, %v3621
        %v3925 = vsel %vm2081, %v3893, %v3628
        %v3927 = vsel %vm2081, %v3895, %v3630
        %v3929 = vsel %vm2081, %v3897, %v3632
        %v3931 = vsel %vm2081, %v3899, %v3634
        %v3933 = vsel %vm2081, %v3901, %v3636
        %v3935 = vsel %vm2081, %v3903, %v3638
        %v3937 = vsel %vm2081, %v3905, %v3640
        %v3939 = vsel %vm2081, %v3907, %v3642
        %v3941 = vsel %vm2081, %v3909, %v3644
        %v3943 = vsel %vm2081, %v3911, %v3646
        %v3945 = vsel %vm2081, %v3913, %v3648
        %v3947 = vsel %vm2081, %v3915, %v3650
        %v3949 = vsel %vm2081, %v3917, %v3652
        %v3951 = vsel %vm2081, %v3919, %v3654
        %v3953 = vsel %vm2081, %v3921, %v3656
        %v3955 = vsel %vm2081, %v3923, %v3658
        %v3957 = vsel %vm2114, %v3925, %v3675
        %v3959 = vsel %vm2114, %v3927, %v3677
        %v3961 = vsel %vm2114, %v3929, %v3679
        %v3963 = vsel %vm2114, %v3931, %v3681
        %v3965 = vsel %vm2114, %v3933, %v3683
        %v3967 = vsel %vm2114, %v3935, %v3685
        %v3969 = vsel %vm2114, %v3937, %v3687
        %v3971 = vsel %vm2114, %v3939, %v3689
        %v3973 = vsel %vm2114, %v3941, %v3691
        %v3975 = vsel %vm2114, %v3943, %v3693
        %v3977 = vsel %vm2114, %v3945, %v3695
        %v3979 = vsel %vm2114, %v3947, %v3697
        %v3981 = vsel %vm2114, %v3949, %v3699
        %v3983 = vsel %vm2114, %v3951, %v3701
        %v3985 = vsel %vm2114, %v3953, %v3703
        %v3987 = vsel %vm2114, %v3955, %v3705
        %v3989 = vsel %vm2147, %v3957, %v3710
        %v3991 = vsel %vm2147, %v3959, %v3712
        %v3993 = vsel %vm2147, %v3961, %v3714
        %v3995 = vsel %vm2147, %v3963, %v3716
        %v3997 = vsel %vm2147, %v3965, %v3718
        %v3999 = vsel %vm2147, %v3967, %v3720
        %v4001 = vsel %vm2147, %v3969, %v3722
        %v4003 = vsel %vm2147, %v3971, %v3724
        %v4005 = vsel %vm2147, %v3973, %v3726
        %v4007 = vsel %vm2147, %v3975, %v3728
        %v4009 = vsel %vm2147, %v3977, %v3730
        %v4011 = vsel %vm2147, %v3979, %v3732
        %v4013 = vsel %vm2147, %v3981, %v3734
        %v4015 = vsel %vm2147, %v3983, %v3736
        %v4017 = vsel %vm2147, %v3985, %v3738
        %v4019 = vsel %vm2147, %v3987, %v3740
        %v4021 = vsel %vm2180, %v3989, %v3747
        %v4023 = vsel %vm2180, %v3991, %v3749
        %v4025 = vsel %vm2180, %v3993, %v3751
        %v4027 = vsel %vm2180, %v3995, %v3753
        %v4029 = vsel %vm2180, %v3997, %v3755
        %v4031 = vsel %vm2180, %v3999, %v3757
        %v4033 = vsel %vm2180, %v4001, %v3759
        %v4035 = vsel %vm2180, %v4003, %v3761
        %v4037 = vsel %vm2180, %v4005, %v3763
        %v4039 = vsel %vm2180, %v4007, %v3765
        %v4041 = vsel %vm2180, %v4009, %v3767
        %v4043 = vsel %vm2180, %v4011, %v3769
        %v4045 = vsel %vm2180, %v4013, %v3771
        %v4047 = vsel %vm2180, %v4015, %v3773
        %v4049 = vsel %vm2180, %v4017, %v3775
        %v4051 = vsel %vm2180, %v4019, %v3777
        %v4053 = vsel %vm2213, %v4021, %v3794
        %v4055 = vsel %vm2213, %v4023, %v3796
        %v4057 = vsel %vm2213, %v4025, %v3798
        %v4059 = vsel %vm2213, %v4027, %v3800
        %v4061 = vsel %vm2213, %v4029, %v3802
        %v4063 = vsel %vm2213, %v4031, %v3804
        %v4065 = vsel %vm2213, %v4033, %v3806
        %v4067 = vsel %vm2213, %v4035, %v3808
        %v4069 = vsel %vm2213, %v4037, %v3810
        %v4071 = vsel %vm2213, %v4039, %v3812
        %v4073 = vsel %vm2213, %v4041, %v3814
        %v4075 = vsel %vm2213, %v4043, %v3816
        %v4077 = vsel %vm2213, %v4045, %v3818
        %v4079 = vsel %vm2213, %v4047, %v3820
        %v4081 = vsel %vm2213, %v4049, %v3822
        %v4083 = vsel %vm2213, %v4051, %v3824
        %v4085 = vsel %vm2246, %v4053, %v3829
        %v4087 = vsel %vm2246, %v4055, %v3831
        %v4089 = vsel %vm2246, %v4057, %v3833
        %v4091 = vsel %vm2246, %v4059, %v3835
        %v4093 = vsel %vm2246, %v4061, %v3837
        %v4095 = vsel %vm2246, %v4063, %v3839
        %v4097 = vsel %vm2246, %v4065, %v3841
        %v4099 = vsel %vm2246, %v4067, %v3843
        %v4101 = vsel %vm2246, %v4069, %v3845
        %v4103 = vsel %vm2246, %v4071, %v3847
        %v4105 = vsel %vm2246, %v4073, %v3849
        %v4107 = vsel %vm2246, %v4075, %v3851
        %v4109 = vsel %vm2246, %v4077, %v3853
        %v4111 = vsel %vm2246, %v4079, %v3855
        %v4113 = vsel %vm2246, %v4081, %v3857
        %v4115 = vsel %vm2246, %v4083, %v3859
        %v4116 = vld [vmem:[#allocation15] sm:$0xf]
        %v4117 = vld [vmem:[#allocation15 + $0x4] sm:$0xf]
        %v4118 = vld [vmem:[#allocation15 + $0x8] sm:$0xf]
        %v4119 = vld [vmem:[#allocation15 + $0xc] sm:$0xf]
        %v4120 = vld [vmem:[#allocation15 + $0x10] sm:$0x3]
        %v4126 = vunpack.c.l.b16 %v4116
        %v4127 = vunpack.c.l.b16 %v4117
        %v4128 = vunpack.c.l.b16 %v4118
        %v4129 = vunpack.c.l.b16 %v4119
        %v4130 = vunpack.c.l.b16 %v4120
        %v4131 = vpack.c.b16 %v4127, %v4126
        %v4132 = vpack.c.b16 %v4129, %v4128
        %v4133 = vpack.c.b16 %v4130, %v4130
        %v4136 = vsel %vm2299, %v4085, 0
        %v4138 = vsel %vm2299, %v4087, 0
        %v4140 = vsel %vm2299, %v4089, 0
        %v4142 = vsel %vm2299, %v4091, 0
        %v4144 = vsel %vm2299, %v4093, 0
        %v4146 = vsel %vm2299, %v4095, 0
        %v4148 = vsel %vm2299, %v4097, 0
        %v4150 = vsel %vm2299, %v4099, 0
        %v4152 = vsel %vm2299, %v4101, 0
        %v4154 = vsel %vm2299, %v4103, 0
        %v4156 = vsel %vm2299, %v4105, 0
        %v4158 = vsel %vm2299, %v4107, 0
        %v4160 = vsel %vm2299, %v4109, 0
        %v4162 = vsel %vm2299, %v4111, 0
        %v4164 = vsel %vm2299, %v4113, 0
        %v4166 = vsel %vm2299, %v4115, 0
        %v4169 = vsel %vm2332, %v4133, 0
        %4171 = vmatprep.subr.bf16.mxu0 0
        %4172 = vmatpush1.bf16.msra.mxu0 %v4131
        %4173 = vmatprep.subr.bf16.mxu0 0
        %4174 = vmatpush1.bf16.msra.mxu0 %v4132
        %4175 = vmatprep.subr.bf16.mxu0 0
        %4176 = vmatpush1.bf16.msra.mxu0 %v4169
        %4177 = vmatprep.subr.bf16.mxu0 0
        %4178 = vmatpush1.bf16.msra.mxu0 0
        %4179 = vmatprep.subr.bf16.mxu0 0
        %4180 = vmatpush1.bf16.msra.mxu0 0
        %4181 = vmatprep.subr.bf16.mxu0 0
        %4182 = vmatpush1.bf16.msra.mxu0 0
        %4183 = vmatprep.subr.bf16.mxu0 0
        %4184 = vmatpush1.bf16.msra.mxu0 0
        %4185 = vmatprep.subr.bf16.mxu0 0
        %4186 = vmatpush1.bf16.msra.mxu0 0
        %4187 = vmatprep.subr.bf16.mxu0 0
        %4188 = vmatpush1.bf16.msra.mxu0 0
        %4189 = vmatprep.subr.bf16.mxu0 0
        %4190 = vmatpush1.bf16.msra.mxu0 0
        %4191 = vmatprep.subr.bf16.mxu0 0
        %4192 = vmatpush1.bf16.msra.mxu0 0
        %4193 = vmatprep.subr.bf16.mxu0 0
        %4194 = vmatpush1.bf16.msra.mxu0 0
        %4195 = vmatprep.subr.bf16.mxu0 0
        %4196 = vmatpush1.bf16.msra.mxu0 0
        %4197 = vmatprep.subr.bf16.mxu0 0
        %4198 = vmatpush1.bf16.msra.mxu0 0
        %4199 = vmatprep.subr.bf16.mxu0 0
        %4200 = vmatpush1.bf16.msra.mxu0 0
        %4201 = vmatprep.subr.bf16.mxu0 0
        %4202 = vmatpush1.bf16.msra.mxu0 0
        %4203 = vmatprep.mubr.bf16.mxu0 0
        %4204 = vmatmul.mubr.bf16.gmra.mrb[0].mxu0 %v4136
        %v4205 = vpop.f32.mrb[0].mxu0
        %v4206 = vadd.f32 0.0, %v4205
        %v4207 = vpop.f32.mrb[0].mxu0
        %v4208 = vpop.f32.mrb[0].mxu0
        %v4209 = vadd.f32 0.0, %v4208
        %v4210 = vpop.f32.mrb[0].mxu0
        %4211 = vmatprep.mubr.bf16.mxu0 0
        %4212 = vmatmul.mubr.bf16.gmra.mrb[0].mxu0 %v4138
        %v4213 = vpop.f32.mrb[0].mxu0
        %v4214 = vadd.f32 0.0, %v4213
        %v4215 = vpop.f32.mrb[0].mxu0
        %v4216 = vpop.f32.mrb[0].mxu0
        %v4217 = vadd.f32 0.0, %v4216
        %v4218 = vpop.f32.mrb[0].mxu0
        %4219 = vmatprep.mubr.bf16.mxu0 0
        %4220 = vmatmul.mubr.bf16.gmra.mrb[0].mxu0 %v4140
        %v4221 = vpop.f32.mrb[0].mxu0
        %v4222 = vadd.f32 0.0, %v4221
        %v4223 = vpop.f32.mrb[0].mxu0
        %v4224 = vpop.f32.mrb[0].mxu0
        %v4225 = vadd.f32 0.0, %v4224
        %v4226 = vpop.f32.mrb[0].mxu0
        %4227 = vmatprep.mubr.bf16.mxu0 0
        %4228 = vmatmul.mubr.bf16.gmra.mrb[0].mxu0 %v4142
        %v4229 = vpop.f32.mrb[0].mxu0
        %v4230 = vadd.f32 0.0, %v4229
        %v4231 = vpop.f32.mrb[0].mxu0
        %v4232 = vpop.f32.mrb[0].mxu0
        %v4233 = vadd.f32 0.0, %v4232
        %v4234 = vpop.f32.mrb[0].mxu0
        %4235 = vmatprep.mubr.bf16.mxu0 0
        %4236 = vmatmul.mubr.bf16.gmra.mrb[0].mxu0 %v4144
        %v4237 = vpop.f32.mrb[0].mxu0
        %v4238 = vadd.f32 0.0, %v4237
        %v4239 = vpop.f32.mrb[0].mxu0
        %v4240 = vpop.f32.mrb[0].mxu0
        %v4241 = vadd.f32 0.0, %v4240
        %v4242 = vpop.f32.mrb[0].mxu0
        %4243 = vmatprep.mubr.bf16.mxu0 0
        %4244 = vmatmul.mubr.bf16.gmra.mrb[0].mxu0 %v4146
        %v4245 = vpop.f32.mrb[0].mxu0
        %v4246 = vadd.f32 0.0, %v4245
        %v4247 = vpop.f32.mrb[0].mxu0
        %v4248 = vpop.f32.mrb[0].mxu0
        %v4249 = vadd.f32 0.0, %v4248
        %v4250 = vpop.f32.mrb[0].mxu0
        %4251 = vmatprep.mubr.bf16.mxu0 0
        %4252 = vmatmul.mubr.bf16.gmra.mrb[0].mxu0 %v4148
        %v4253 = vpop.f32.mrb[0].mxu0
        %v4254 = vadd.f32 0.0, %v4253
        %v4255 = vpop.f32.mrb[0].mxu0
        %v4256 = vpop.f32.mrb[0].mxu0
        %v4257 = vadd.f32 0.0, %v4256
        %v4258 = vpop.f32.mrb[0].mxu0
        %4259 = vmatprep.mubr.bf16.mxu0 0
        %4260 = vmatmul.mubr.bf16.gmra.mrb[0].mxu0 %v4150
        %v4261 = vpop.f32.mrb[0].mxu0
        %v4262 = vadd.f32 0.0, %v4261
        %v4263 = vpop.f32.mrb[0].mxu0
        %v4264 = vpop.f32.mrb[0].mxu0
        %v4265 = vadd.f32 0.0, %v4264
        %v4266 = vpop.f32.mrb[0].mxu0
        %4267 = vmatprep.mubr.bf16.mxu0 0
        %4268 = vmatmul.mubr.bf16.gmra.mrb[0].mxu0 %v4152
        %v4269 = vpop.f32.mrb[0].mxu0
        %v4270 = vadd.f32 0.0, %v4269
        %v4271 = vpop.f32.mrb[0].mxu0
        %v4272 = vpop.f32.mrb[0].mxu0
        %v4273 = vadd.f32 0.0, %v4272
        %v4274 = vpop.f32.mrb[0].mxu0
        %4275 = vmatprep.mubr.bf16.mxu0 0
        %4276 = vmatmul.mubr.bf16.gmra.mrb[0].mxu0 %v4154
        %v4277 = vpop.f32.mrb[0].mxu0
        %v4278 = vadd.f32 0.0, %v4277
        %v4279 = vpop.f32.mrb[0].mxu0
        %v4280 = vpop.f32.mrb[0].mxu0
        %v4281 = vadd.f32 0.0, %v4280
        %v4282 = vpop.f32.mrb[0].mxu0
        %4283 = vmatprep.mubr.bf16.mxu0 0
        %4284 = vmatmul.mubr.bf16.gmra.mrb[0].mxu0 %v4156
        %v4285 = vpop.f32.mrb[0].mxu0
        %v4286 = vadd.f32 0.0, %v4285
        %v4287 = vpop.f32.mrb[0].mxu0
        %v4288 = vpop.f32.mrb[0].mxu0
        %v4289 = vadd.f32 0.0, %v4288
        %v4290 = vpop.f32.mrb[0].mxu0
        %4291 = vmatprep.mubr.bf16.mxu0 0
        %4292 = vmatmul.mubr.bf16.gmra.mrb[0].mxu0 %v4158
        %v4293 = vpop.f32.mrb[0].mxu0
        %v4294 = vadd.f32 0.0, %v4293
        %v4295 = vpop.f32.mrb[0].mxu0
        %v4296 = vpop.f32.mrb[0].mxu0
        %v4297 = vadd.f32 0.0, %v4296
        %v4298 = vpop.f32.mrb[0].mxu0
        %4299 = vmatprep.mubr.bf16.mxu0 0
        %4300 = vmatmul.mubr.bf16.gmra.mrb[0].mxu0 %v4160
        %v4301 = vpop.f32.mrb[0].mxu0
        %v4302 = vadd.f32 0.0, %v4301
        %v4303 = vpop.f32.mrb[0].mxu0
        %v4304 = vpop.f32.mrb[0].mxu0
        %v4305 = vadd.f32 0.0, %v4304
        %v4306 = vpop.f32.mrb[0].mxu0
        %4307 = vmatprep.mubr.bf16.mxu0 0
        %4308 = vmatmul.mubr.bf16.gmra.mrb[0].mxu0 %v4162
        %v4309 = vpop.f32.mrb[0].mxu0
        %v4310 = vadd.f32 0.0, %v4309
        %v4311 = vpop.f32.mrb[0].mxu0
        %v4312 = vpop.f32.mrb[0].mxu0
        %v4313 = vadd.f32 0.0, %v4312
        %v4314 = vpop.f32.mrb[0].mxu0
        %4315 = vmatprep.mubr.bf16.mxu0 0
        %4316 = vmatmul.mubr.bf16.gmra.mrb[0].mxu0 %v4164
        %v4317 = vpop.f32.mrb[0].mxu0
        %v4318 = vadd.f32 0.0, %v4317
        %v4319 = vpop.f32.mrb[0].mxu0
        %v4320 = vpop.f32.mrb[0].mxu0
        %v4321 = vadd.f32 0.0, %v4320
        %v4322 = vpop.f32.mrb[0].mxu0
        %4323 = vmatprep.mubr.bf16.mxu0 0
        %4324 = vmatmul.mubr.bf16.gmra.mrb[0].mxu0 %v4166
        %v4325 = vpop.f32.mrb[0].mxu0
        %v4326 = vadd.f32 0.0, %v4325
        %v4327 = vpop.f32.mrb[0].mxu0
        %v4328 = vpop.f32.mrb[0].mxu0
        %v4329 = vadd.f32 0.0, %v4328
        %v4330 = vpop.f32.mrb[0].mxu0
        %4331 = vdwg.mxu0
        %v4332 = vadd.f32 %v4206, %v614
        %v4333 = vadd.f32 %v4209, %v615
        %v4334 = vadd.f32 %v4214, %v616
        %v4335 = vadd.f32 %v4217, %v617
        %v4336 = vadd.f32 %v4222, %v618
        %v4337 = vadd.f32 %v4225, %v619
        %v4338 = vadd.f32 %v4230, %v620
        %v4339 = vadd.f32 %v4233, %v621
        %v4340 = vadd.f32 %v4238, %v622
        %v4341 = vadd.f32 %v4241, %v623
        %v4342 = vadd.f32 %v4246, %v624
        %v4343 = vadd.f32 %v4249, %v625
        %v4344 = vadd.f32 %v4254, %v626
        %v4345 = vadd.f32 %v4257, %v627
        %v4346 = vadd.f32 %v4262, %v628
        %v4347 = vadd.f32 %v4265, %v629
        %v4348 = vadd.f32 %v4270, %v630
        %v4349 = vadd.f32 %v4273, %v631
        %v4350 = vadd.f32 %v4278, %v632
        %v4351 = vadd.f32 %v4281, %v633
        %v4352 = vadd.f32 %v4286, %v634
        %v4353 = vadd.f32 %v4289, %v635
        %v4354 = vadd.f32 %v4294, %v636
        %v4355 = vadd.f32 %v4297, %v637
        %v4356 = vadd.f32 %v4302, %v638
        %v4357 = vadd.f32 %v4305, %v639
        %v4358 = vadd.f32 %v4310, %v640
        %v4359 = vadd.f32 %v4313, %v641
        %v4360 = vadd.f32 %v4318, %v642
        %v4361 = vadd.f32 %v4321, %v643
        %v4362 = vadd.f32 %v4326, %v644
        %v4363 = vadd.f32 %v4329, %v645
        %4364 = vst [vmem:[%s375] sm:$0xff] %v4332
        %4365 = vst [vmem:[%s375 + $0x8] sm:$0xff] %v4333
        %4366 = vst [vmem:[%s375 + $0x10] sm:$0xff] %v4334
        %4367 = vst [vmem:[%s375 + $0x18] sm:$0xff] %v4335
        %4368 = vst [vmem:[%s375 + $0x20] sm:$0xff] %v4336
        %4369 = vst [vmem:[%s375 + $0x28] sm:$0xff] %v4337
        %4370 = vst [vmem:[%s375 + $0x30] sm:$0xff] %v4338
        %4371 = vst [vmem:[%s375 + $0x38] sm:$0xff] %v4339
        %4372 = vst [vmem:[%s375 + $0x40] sm:$0xff] %v4340
        %4373 = vst [vmem:[%s375 + $0x48] sm:$0xff] %v4341
        %4374 = vst [vmem:[%s375 + $0x50] sm:$0xff] %v4342
        %4375 = vst [vmem:[%s375 + $0x58] sm:$0xff] %v4343
        %4376 = vst [vmem:[%s375 + $0x60] sm:$0xff] %v4344
        %4377 = vst [vmem:[%s375 + $0x68] sm:$0xff] %v4345
        %4378 = vst [vmem:[%s375 + $0x70] sm:$0xff] %v4346
        %4379 = vst [vmem:[%s375 + $0x78] sm:$0xff] %v4347
        %4380 = vst [vmem:[%s375 + $0x80] sm:$0xff] %v4348
        %4381 = vst [vmem:[%s375 + $0x88] sm:$0xff] %v4349
        %4382 = vst [vmem:[%s375 + $0x90] sm:$0xff] %v4350
        %4383 = vst [vmem:[%s375 + $0x98] sm:$0xff] %v4351
        %4384 = vst [vmem:[%s375 + $0xa0] sm:$0xff] %v4352
        %4385 = vst [vmem:[%s375 + $0xa8] sm:$0xff] %v4353
        %4386 = vst [vmem:[%s375 + $0xb0] sm:$0xff] %v4354
        %4387 = vst [vmem:[%s375 + $0xb8] sm:$0xff] %v4355
        %4388 = vst [vmem:[%s375 + $0xc0] sm:$0xff] %v4356
        %4389 = vst [vmem:[%s375 + $0xc8] sm:$0xff] %v4357
        %4390 = vst [vmem:[%s375 + $0xd0] sm:$0xff] %v4358
        %4391 = vst [vmem:[%s375 + $0xd8] sm:$0xff] %v4359
        %4392 = vst [vmem:[%s375 + $0xe0] sm:$0xff] %v4360
        %4393 = vst [vmem:[%s375 + $0xe8] sm:$0xff] %v4361
        %4394 = vst [vmem:[%s375 + $0xf0] sm:$0xff] %v4362
        %4395 = vst [vmem:[%s375 + $0xf8] sm:$0xff] %v4363
        %s4396 = sand.u32 %s187, 1
        %s4397 = scalar_lea.sflag [#allocation6], %s4396
        %s4398 = sand.u32 %s187, 1
        %s4399 = smul.addr %s4398, 256
        %s4400 = scalar_lea.vmem [#allocation16], %s4399
        // Predicated region
        $region77: #{tpu_custom_call.1} parent=47 // pred_check
          %p4401 = pneg %p197
        $region78: #{tpu_custom_call.1} parent=47 // pred_check_branch
          %4403 = sbr.rel (%p4401) target = $region80
        $region79: #{tpu_custom_call.1} parent=47 // pred_region
          %s4405 = ssub.s32 4096, 4096
          %4406 = vsyncadd %s4397, %s4405
          %s4407 = smul.addr %s27, 32
          %s4408 = smul.addr %s4407, 128
          %s4409 = scalar_lea.hbm %s7, %s4408
          %s4410 = sshll.u32 %s4400, 4
          %s4411 = int_to_ptr.vmem [resolvable:$true] %s4410
          %4416 = dma.vmem_to_hbm [thread:$0]  %s4411, 4096, %s4409, %s4397, 128, 128, 8
        $region80: #{tpu_custom_call.1} parent=47 // pred_fallthru
          _
      $region48: #{tpu_custom_call.1} parent=5 // pred_fallthru
        _
      %p4417 = scmp.le.s32.totalorder 2, %s22
      // Predicated region
      $region81: #{tpu_custom_call.1} parent=5 // pred_check
        %p4418 = pneg %p4417
      $region82: #{tpu_custom_call.1} parent=5 // pred_check_branch
        %4420 = sbr.rel (%p4418) target = $region84
      $region83: #{tpu_custom_call.1} parent=5 // pred_region
        %s4421 = ssub.s32 %s22, 2
        // Predicated region
        $region85: #{tpu_custom_call.1} parent=83 // pred_check
          %p4422 = pneg %p203
        $region86: #{tpu_custom_call.1} parent=83 // pred_check_branch
          %4424 = sbr.rel (%p4422) target = $region88
        $region87: #{tpu_custom_call.1} parent=83 // pred_region
          %s4425 = sand.u32 %s188, 1
          %s4426 = scalar_lea.sflag [#allocation6], %s4425
          %s4427 = sand.u32 %s188, 1
          %s4428 = smul.addr %s4427, 256
          %s4429 = scalar_lea.vmem [#allocation16], %s4428
          %4430 = dma.done %s4426, 4096
        $region88: #{tpu_custom_call.1} parent=83 // pred_fallthru
          _
      $region84: #{tpu_custom_call.1} parent=5 // pred_fallthru
        _
    $region6: #{tpu_custom_call.1} parent=1 // loop_footer
      %s26 = sadd.s32 1, %s22
    $region7: #{tpu_custom_call.1} parent=1 // loop_footer_branch
      %21 = sbr.rel target = $region3
    $region8: #{tpu_custom_call.1} parent=1 // loop_exit
      _
    %4431 = vsyncpa [#allocation5], 1
    %s4432 = scalar_lea.sflag [#allocation5], 1
    %4433 = vsyncpa %s4432, 1
    %4434 = vsyncpa [#allocation8], 1
    %4435 = vsyncpa [#allocation11], 1
    %4436 = vsyncpa [#allocation14], 1
    %4437 = vsyncpa [#allocation6], 1
    %s4438 = scalar_lea.sflag [#allocation6], 1
    %4439 = vsyncpa %s4438, 1

</llo_original>
